<compile_context>
chip_gen: v7x
topology: tpu7x:2x2x1
jax: 0.10.0
libtpu: 0.0.40
codegen_flags: <defaults>
</compile_context>

<pallas_src>
import functools
import math

import jax
import jax.numpy as jnp
from jax import lax
from jax.experimental import pallas as pl
from jax.experimental.pallas import tpu as pltpu


# ----------------------------- host-side helpers -----------------------------

def _round_up(x, m):
    return ((x + m - 1) // m) * m


def _group_size(L):
    for g in (8, 4, 2, 1):
        if L % g == 0:
            return g
    return 1


def _largest_divisor(n, cap, step=1):
    """Largest multiple of `step` that divides n and is <= cap (>= step)."""
    best = step if n % step == 0 else 1
    for d in range(step, min(n, cap) + 1, step):
        if n % d == 0:
            best = d
    return best


# ----------------------------- in-kernel helpers -----------------------------

def _silu(x):
    return x * jax.nn.sigmoid(x)


def _softplus(x):
    return jnp.maximum(x, 0.0) + jnp.log1p(jnp.exp(-jnp.abs(x)))


def _layernorm(x, w, b, eps):
    mu = jnp.mean(x, axis=-1, keepdims=True)
    xc = x - mu
    var = jnp.mean(xc * xc, axis=-1, keepdims=True)
    return xc * jax.lax.rsqrt(var + eps) * w + b


# ------------------------------ the fused kernel ------------------------------
# Grid = (batch_blocks, n_layer).  One grid step = one Mamba Block applied to a
# block of Bt sequences.  The residual stream lives in VMEM across the layer
# axis; the final LayerNorm is applied (and the only HBM write happens) on the
# last layer.

def mixer_layer_kernel(h_ref, ln_w_ref, ln_b_ref, w_in_ref, conv_w_ref,
                       conv_b_ref, w_xbc_ref, dtp_b_ref, A_t_ref, d_skip_ref,
                       out_w_ref, fn_w_ref, fn_b_ref, o_ref,
                       hcar_ref, dA_scr, dBx_scr, delta_scr, xdp_scr,
                       B_scr, C_scr, y_scr, *,
                       Bt, L, D, Di, Dp, N, Np, K, G, Lc, eps):
    layer = pl.program_id(1)

    # Layer 0: pull the residual stream into the resident VMEM carrier.
    @pl.when(layer == 0)
    def _():
        hcar_ref[...] = h_ref[...]

    M = Bt * L
    h = hcar_ref[...].reshape(M, D)                         # (M, D) f32

    # ---- pre-norm LayerNorm (f32) ----
    hn = _layernorm(h, ln_w_ref[...], ln_b_ref[...], eps)

    # ---- fused in_proj: (M, D) @ (D, 2*Dp), bf16 operands / f32 accumulate ----
    xz = jnp.dot(hn.astype(jnp.bfloat16), w_in_ref[...],
                 preferred_element_type=jnp.float32)        # (M, 2*Dp)
    x = xz[:, :Di]                                          # lane-aligned segment
    z = xz[:, Dp:Dp + Di]                                   # lane-aligned segment

    # ---- causal depthwise conv along L: sublane rolls + per-sequence mask ----
    # Rolling the flattened (Bt*L, Di) block crosses sequence boundaries, but
    # the (row % L) >= s mask zeroes exactly those rows (same as zero padding).
    row = jax.lax.broadcasted_iota(jnp.int32, (M, Di), 0) % L
    x_conv = conv_b_ref[...] + conv_w_ref[K - 1:K, :] * x
    for s in range(1, K):
        shifted = pltpu.roll(x, shift=s, axis=0)            # shifted[r] = x[r - s]
        shifted = jnp.where(row >= s, shifted, 0.0)
        x_conv = x_conv + conv_w_ref[K - 1 - s:K - s, :] * shifted
    x = _silu(x_conv)                                       # (M, Di)

    # ---- fused x_proj (+ folded dt_proj): (M, Di) @ (Di, Dp + 2*Np) ----
    dbc = jnp.dot(x.astype(jnp.bfloat16), w_xbc_ref[...],
                  preferred_element_type=jnp.float32)
    delta = _softplus(dbc[:, :Di] + dtp_b_ref[...])         # (M, Di)
    Bm = dbc[:, Dp:Dp + N]                                  # 128-aligned start
    Cm = dbc[:, Dp + Np:Dp + Np + N]                        # 128-aligned start

    delta_scr[...] = delta
    xdp_scr[...] = delta * x
    B_scr[...] = Bm
    C_scr[...] = Cm

    A_t = A_t_ref[...]                                      # (N, Di) = (-exp(A_log)).T

    # ---- selective scan: chunked over L, grouped over G timesteps ----
    # Di on lanes, N on sublanes.  dA/dBx are built one L-chunk at a time
    # (VMEM O(Lc*N*Di)); within a chunk only the 2-op recurrence is serial —
    # the C multiply, sublane(N) reduce and y store run once per G-row group.
    n_chunks = L // Lc
    n_groups = Lc // G
    for b in range(Bt):                                     # small static batch block
        def chunk_body(c, state, b=b):
            base = pl.multiple_of(b * L + c * Lc, G)
            d_c = delta_scr[pl.ds(base, Lc), :]             # (Lc, Di)
            dA_scr[...] = jnp.exp(d_c[:, None, :] * A_t[None, :, :])     # (Lc,N,Di)
            dBx_scr[...] = (xdp_scr[pl.ds(base, Lc), :][:, None, :]
                            * B_scr[pl.ds(base, Lc), :][:, :, None])      # (Lc,N,Di)

            def group_body(g, st):
                off = pl.multiple_of(g * G, G)
                states = []
                for t in range(G):                          # serial recurrence only
                    st = dA_scr[off + t] * st + dBx_scr[off + t]
                    states.append(st)
                stg = jnp.stack(states, axis=0)             # (G, N, Di)
                start = pl.multiple_of(base + off, G)
                cg = C_scr[pl.ds(start, G), :]              # (G, N)
                y_scr[pl.ds(start, G), :] = jnp.sum(
                    stg * cg[:, :, None], axis=1)           # sublane reduce, G-row store
                return st

            return lax.fori_loop(0, n_groups, group_body, state)

        lax.fori_loop(0, n_chunks, chunk_body,
                      jnp.zeros((N, Di), jnp.float32))

    # ---- skip, gate, out_proj, residual ----
    y = (y_scr[...] + d_skip_ref[...] * x) * _silu(z)       # (M, Di)
    out = jnp.dot(y.astype(jnp.bfloat16), out_w_ref[...],
                  preferred_element_type=jnp.float32)       # (M, D)
    res = h + out
    hcar_ref[...] = res.reshape(Bt, L, D)                   # stays resident

    # ---- fused final LayerNorm; single HBM writeback of h ----
    @pl.when(layer == pl.num_programs(1) - 1)
    def _():
        o_ref[...] = _layernorm(res, fn_w_ref[...], fn_b_ref[...],
                                eps).reshape(Bt, L, D)


# --------------------------------- wrappers -----------------------------------

def mixer_forward_pallas(h, sp, normf_w, normf_b, *, eps):
    B, L, D = h.shape
    n_layer, Di, _ = sp["out_w"].shape
    N = sp["A_t"].shape[1]
    K = sp["conv_w"].shape[1]
    Dp = sp["w_in"].shape[2] // 2
    Np = (sp["w_xbc"].shape[2] - Dp) // 2

    G = _group_size(L)
    # Scan L-chunk: dA/dBx VMEM is 2*Lc*N*Di*4 B.  128 is sized for v5e/v6e
    # (128 MiB VMEM); halve for v7x (64 MiB) at production Di.
    Lc = _largest_divisor(L, cap=128, step=G)
    # Fold batch elements into the matmul M dimension (target >= 256 rows).
    Bt = _largest_divisor(B, cap=max(1, 256 // L))
    Bb = B // Bt
    M = Bt * L

    kernel = functools.partial(
        mixer_layer_kernel, Bt=Bt, L=L, D=D, Di=Di, Dp=Dp, N=N, Np=Np, K=K,
        G=G, Lc=Lc, eps=eps)

    weight_names = ("ln_w", "ln_b", "w_in", "conv_w", "conv_b", "w_xbc",
                    "dtp_b", "A_t", "d_skip", "out_w")
    weights = [sp[k] for k in weight_names]
    # Per-layer weights: leading layer axis squeezed out, re-fetched per layer
    # step (double-buffered by the pipeline -> next layer's weights prefetch
    # while the current layer computes).
    w_specs = [pl.BlockSpec((None,) + w.shape[1:], lambda b, l: (l, 0, 0))
               for w in weights]
    fn_specs = [pl.BlockSpec(normf_w.shape, lambda b, l: (0, 0)),
                pl.BlockSpec(normf_b.shape, lambda b, l: (0, 0))]

    scratch_shapes = [
        pltpu.VMEM((Bt, L, D), jnp.float32),   # resident residual stream
        pltpu.VMEM((Lc, N, Di), jnp.float32),  # dA chunk
        pltpu.VMEM((Lc, N, Di), jnp.float32),  # dBx chunk
        pltpu.VMEM((M, Di), jnp.float32),      # delta
        pltpu.VMEM((M, Di), jnp.float32),      # delta * x
        pltpu.VMEM((M, N), jnp.float32),       # B
        pltpu.VMEM((M, N), jnp.float32),       # C
        pltpu.VMEM((M, Di), jnp.float32),      # scan output y
    ]

    return pl.pallas_call(
        kernel,
        out_shape=jax.ShapeDtypeStruct((B, L, D), jnp.float32),
        grid=(Bb, n_layer),
        in_specs=[pl.BlockSpec((Bt, L, D), lambda b, l: (b, 0, 0))]
                 + w_specs + fn_specs,
        out_specs=pl.BlockSpec((Bt, L, D), lambda b, l: (b, 0, 0)),
        scratch_shapes=scratch_shapes,
        input_output_aliases={0: 0},           # h updated in place
        compiler_params=pltpu.CompilerParams(
            dimension_semantics=("parallel", "arbitrary"),
            vmem_limit_bytes=48 * 1024 * 1024),
    )(h, *weights, normf_w, normf_b)


def mixer_model_forward(input_ids, pos, stacked_params, normf_w, normf_b, *, eps):
    h = (input_ids + pos).astype(jnp.float32)
    if stacked_params is None:
        # Degenerate case (no layers): plain-JAX final LayerNorm, not the hot path.
        mu = jnp.mean(h, -1, keepdims=True)
        var = jnp.mean((h - mu) ** 2, -1, keepdims=True)
        h = (h - mu) * jax.lax.rsqrt(var + eps) * normf_w.reshape(1, 1, -1) \
            + normf_b.reshape(1, 1, -1)
        return h.astype(pos.dtype)
    out = mixer_forward_pallas(h, stacked_params, normf_w, normf_b, eps=eps)
    # drop_out / drop_path are 0.0 -> identity
    return out.astype(pos.dtype)


# ------------------------- deterministic parameter init -----------------------

def init_layer_params(key, d_model, d_inner, d_state, d_conv, dt_rank, n_layer):
    ks = jax.random.split(key, 6)

    def rn(k, shape, scale):
        return jax.random.normal(k, shape, jnp.float32) * scale

    in_w = rn(ks[0], (2 * d_inner, d_model), 0.02)          # torch Linear (out, in)
    conv_w = rn(ks[1], (d_inner, d_conv), 1.0 / math.sqrt(d_conv))
    x_proj = rn(ks[2], (dt_rank + 2 * d_state, d_inner), 0.02)
    dtp_w = rn(ks[3], (d_inner, dt_rank), dt_rank ** -0.5)

    # dt_proj bias = inverse softplus of dt in [1e-3, 0.1] (standard Mamba init)
    u = jax.random.uniform(ks[4], (d_inner,), jnp.float32)
    dt = jnp.exp(u * (math.log(0.1) - math.log(1e-3)) + math.log(1e-3))
    dt = jnp.maximum(dt, 1e-4)
    dtp_b = (dt + jnp.log(-jnp.expm1(-dt))).reshape(1, d_inner)

    A_log = jnp.log(jnp.broadcast_to(
        jnp.arange(1, d_state + 1, dtype=jnp.float32), (d_inner, d_state)))
    out_w = rn(ks[5], (d_model, d_inner), 0.02) / math.sqrt(n_layer)  # prenorm rescale

    Dp = _round_up(d_inner, 128)
    Np = _round_up(d_state, 128)

    # fused, 128-lane-aligned in_proj: columns [x | pad | z | pad]
    w_in = jnp.zeros((d_model, 2 * Dp), jnp.float32)
    w_in = w_in.at[:, :d_inner].set(in_w.T[:, :d_inner])
    w_in = w_in.at[:, Dp:Dp + d_inner].set(in_w.T[:, d_inner:])

    # fused, 128-lane-aligned x_proj with dt_proj folded in:
    # columns [delta | pad | B | pad | C | pad].  dt_proj is linear with no
    # intervening nonlinearity -> fold it into x_proj (keeps the tiny dt_rank
    # contraction off the MXU).
    w_dt = x_proj[:dt_rank].T                               # (Di, R)
    w_B = x_proj[dt_rank:dt_rank + d_state].T               # (Di, N)
    w_C = x_proj[dt_rank + d_state:].T                      # (Di, N)
    w_delta = w_dt @ dtp_w.T                                # (Di, Di)
    w_xbc = jnp.zeros((d_inner, Dp + 2 * Np), jnp.float32)
    w_xbc = w_xbc.at[:, :d_inner].set(w_delta)
    w_xbc = w_xbc.at[:, Dp:Dp + d_state].set(w_B)
    w_xbc = w_xbc.at[:, Dp + Np:Dp + Np + d_state].set(w_C)

    return dict(
        ln_w=jnp.ones((1, d_model), jnp.float32),
        ln_b=jnp.zeros((1, d_model), jnp.float32),
        w_in=w_in.astype(jnp.bfloat16),                     # (D, 2*Dp)
        conv_w=conv_w.T,                                    # (K, Di)
        conv_b=jnp.zeros((1, d_inner), jnp.float32),
        w_xbc=w_xbc.astype(jnp.bfloat16),                   # (Di, Dp + 2*Np)
        dtp_b=dtp_b,                                        # (1, Di)
        A_t=(-jnp.exp(A_log)).T,                            # (N, Di)  hoisted -exp
        d_skip=jnp.ones((1, d_inner), jnp.float32),
        out_w=out_w.T.astype(jnp.bfloat16),                 # (Di, D)
    )


# ------------------------------------ main -------------------------------------

if __name__ == "__main__":
    B, L, D = 2, 8, 32
    n_layer = 2
    d_state, d_conv, expand = 16, 4, 2
    d_inner = expand * D
    dt_rank = math.ceil(D / 16)
    eps = 1e-5

    key = jax.random.PRNGKey(0)
    k_in, k_pos, *k_layers = jax.random.split(key, 2 + n_layer)
    input_ids = jax.random.normal(k_in, (B, L, D), jnp.float32)
    pos = jax.random.normal(k_pos, (B, L, D), jnp.float32)

    layer_params = [
        init_layer_params(k, D, d_inner, d_state, d_conv, dt_rank, n_layer)
        for k in k_layers
    ]
    # Stack per-layer weights on a leading layer axis for the layer grid axis.
    stacked_params = jax.tree_util.tree_map(
        lambda *xs: jnp.stack(xs, axis=0), *layer_params)
    normf_w = jnp.ones((1, D), jnp.float32)
    normf_b = jnp.zeros((1, D), jnp.float32)

    fwd = jax.jit(functools.partial(mixer_model_forward, eps=eps))
    out = fwd(input_ids, pos, stacked_params, normf_w, normf_b)
    out = jax.block_until_ready(out)
    assert out.shape == (B, L, D) and out.dtype == pos.dtype
    assert bool(jnp.all(jnp.isfinite(out)))
    print("KERNEL_OK")
</pallas_src>

<mosaic_0001>
module attributes {stable_mosaic.version = 11 : i64} {
  func.func @mixer_layer_kernel(%arg0: i32, %arg1: i32, %arg2: memref<2x8x32xf32, #tpu.memory_space<vmem>>, %arg3: memref<1x1x32xf32, #tpu.memory_space<vmem>>, %arg4: memref<1x1x32xf32, #tpu.memory_space<vmem>>, %arg5: memref<1x32x256xbf16, #tpu.memory_space<vmem>>, %arg6: memref<1x4x64xf32, #tpu.memory_space<vmem>>, %arg7: memref<1x1x64xf32, #tpu.memory_space<vmem>>, %arg8: memref<1x64x384xbf16, #tpu.memory_space<vmem>>, %arg9: memref<1x1x64xf32, #tpu.memory_space<vmem>>, %arg10: memref<1x16x64xf32, #tpu.memory_space<vmem>>, %arg11: memref<1x1x64xf32, #tpu.memory_space<vmem>>, %arg12: memref<1x64x32xbf16, #tpu.memory_space<vmem>>, %arg13: memref<1x32xf32, #tpu.memory_space<vmem>>, %arg14: memref<1x32xf32, #tpu.memory_space<vmem>>, %arg15: memref<2x8x32xf32, #tpu.memory_space<vmem>>, %arg16: memref<2x8x32xf32, #tpu.memory_space<vmem>>, %arg17: memref<8x16x64xf32, #tpu.memory_space<vmem>>, %arg18: memref<8x16x64xf32, #tpu.memory_space<vmem>>, %arg19: memref<16x64xf32, #tpu.memory_space<vmem>>, %arg20: memref<16x64xf32, #tpu.memory_space<vmem>>, %arg21: memref<16x16xf32, #tpu.memory_space<vmem>>, %arg22: memref<16x16xf32, #tpu.memory_space<vmem>>, %arg23: memref<16x64xf32, #tpu.memory_space<vmem>>) attributes {dimension_semantics = [#tpu.dimension_semantics<parallel>, #tpu.dimension_semantics<arbitrary>], iteration_bounds = array<i64: 1, 2>, scalar_prefetch = 0 : i64, scratch_operands = 8 : i64, tpu.core_type = #tpu.core_type<tc>, window_params = [{transform_indices = @transform_0, window_bounds = array<i64: 2, 8, 32>}, {transform_indices = @transform_1, window_bounds = array<i64: 1, 1, 32>}, {transform_indices = @transform_2, window_bounds = array<i64: 1, 1, 32>}, {transform_indices = @transform_3, window_bounds = array<i64: 1, 32, 256>}, {transform_indices = @transform_4, window_bounds = array<i64: 1, 4, 64>}, {transform_indices = @transform_5, window_bounds = array<i64: 1, 1, 64>}, {transform_indices = @transform_6, window_bounds = array<i64: 1, 64, 384>}, {transform_indices = @transform_7, window_bounds = array<i64: 1, 1, 64>}, {transform_indices = @transform_8, window_bounds = array<i64: 1, 16, 64>}, {transform_indices = @transform_9, window_bounds = array<i64: 1, 1, 64>}, {transform_indices = @transform_10, window_bounds = array<i64: 1, 64, 32>}, {pipeline_mode = #tpu.pipeline_mode<synchronous>, transform_indices = @transform_11, window_bounds = array<i64: 1, 32>}, {pipeline_mode = #tpu.pipeline_mode<synchronous>, transform_indices = @transform_12, window_bounds = array<i64: 1, 32>}, {transform_indices = @transform_13, window_bounds = array<i64: 2, 8, 32>}]} {
    %c0_i32 = arith.constant 0 : i32
    %0 = arith.cmpi eq, %arg1, %c0_i32 : i32
    %1 = arith.extui %0 : i1 to i32
    %c0_i32_0 = arith.constant 0 : i32
    %2 = arith.cmpi ne, %1, %c0_i32_0 : i32
    scf.if %2 {
      %c0_208 = arith.constant 0 : index
      %c0_209 = arith.constant 0 : index
      %c0_210 = arith.constant 0 : index
      %393 = vector.load %arg2[%c0_208, %c0_209, %c0_210] : memref<2x8x32xf32, #tpu.memory_space<vmem>>, vector<2x8x32xf32>
      %c0_211 = arith.constant 0 : index
      %c0_212 = arith.constant 0 : index
      %c0_213 = arith.constant 0 : index
      %394 = vector.load %arg16[%c0_211, %c0_212, %c0_213] : memref<2x8x32xf32, #tpu.memory_space<vmem>>, vector<2x8x32xf32>
      tpu.vector_store %arg16[%c0_211, %c0_212, %c0_213], %393 {strides = array<i32>} : memref<2x8x32xf32, #tpu.memory_space<vmem>>, vector<2x8x32xf32>,
    } else {
    }
    %c0 = arith.constant 0 : index
    %c0_1 = arith.constant 0 : index
    %c0_2 = arith.constant 0 : index
    %3 = vector.load %arg16[%c0, %c0_1, %c0_2] : memref<2x8x32xf32, #tpu.memory_space<vmem>>, vector<2x8x32xf32>
    %4 = vector.shape_cast %3 : vector<2x8x32xf32> to vector<16x32xf32>
    %c0_3 = arith.constant 0 : index
    %c0_4 = arith.constant 0 : index
    %c0_5 = arith.constant 0 : index
    %5 = vector.load %arg3[%c0_3, %c0_4, %c0_5] : memref<1x1x32xf32, #tpu.memory_space<vmem>>, vector<1x1x32xf32>
    %6 = vector.shape_cast %5 : vector<1x1x32xf32> to vector<1x32xf32>
    %c0_6 = arith.constant 0 : index
    %c0_7 = arith.constant 0 : index
    %c0_8 = arith.constant 0 : index
    %7 = vector.load %arg4[%c0_6, %c0_7, %c0_8] : memref<1x1x32xf32, #tpu.memory_space<vmem>>, vector<1x1x32xf32>
    %8 = vector.shape_cast %7 : vector<1x1x32xf32> to vector<1x32xf32>
    %cst = arith.constant dense<0.000000e+00> : vector<16xf32>
    %9 = vector.multi_reduction <add>, %4, %cst [1] : vector<16x32xf32> to vector<16xf32>
    %10 = vector.shape_cast %9 : vector<16xf32> to vector<16x1xf32>
    %cst_9 = arith.constant 3.200000e+01 : f32
    %11 = vector.broadcast %cst_9 : f32 to vector<16x1xf32>
    %12 = arith.divf %10, %11 : vector<16x1xf32>
    %13 = vector.broadcast %12 : vector<16x1xf32> to vector<16x32xf32>
    %14 = arith.subf %4, %13 : vector<16x32xf32>
    %15 = arith.mulf %14, %14 : vector<16x32xf32>
    %cst_10 = arith.constant dense<0.000000e+00> : vector<16xf32>
    %16 = vector.multi_reduction <add>, %15, %cst_10 [1] : vector<16x32xf32> to vector<16xf32>
    %17 = vector.shape_cast %16 : vector<16xf32> to vector<16x1xf32>
    %cst_11 = arith.constant 3.200000e+01 : f32
    %18 = vector.broadcast %cst_11 : f32 to vector<16x1xf32>
    %19 = arith.divf %17, %18 : vector<16x1xf32>
    %cst_12 = arith.constant 9.99999974E-6 : f32
    %20 = vector.broadcast %cst_12 : f32 to vector<16x1xf32>
    %21 = arith.addf %19, %20 : vector<16x1xf32>
    %22 = math.rsqrt %21 : vector<16x1xf32>
    %23 = vector.broadcast %22 : vector<16x1xf32> to vector<16x32xf32>
    %24 = arith.mulf %14, %23 : vector<16x32xf32>
    %25 = vector.broadcast %6 : vector<1x32xf32> to vector<16x32xf32>
    %26 = arith.mulf %24, %25 : vector<16x32xf32>
    %27 = vector.broadcast %8 : vector<1x32xf32> to vector<16x32xf32>
    %28 = arith.addf %26, %27 : vector<16x32xf32>
    %29 = arith.truncf %28 : vector<16x32xf32> to vector<16x32xbf16>
    %c0_13 = arith.constant 0 : index
    %c0_14 = arith.constant 0 : index
    %c0_15 = arith.constant 0 : index
    %30 = vector.load %arg5[%c0_13, %c0_14, %c0_15] : memref<1x32x256xbf16, #tpu.memory_space<vmem>>, vector<1x32x256xbf16>
    %31 = vector.shape_cast %30 : vector<1x32x256xbf16> to vector<32x256xbf16>
    %cst_16 = arith.constant dense<0.000000e+00> : vector<16x256xf32>
    %32 = tpu.matmul %29, %31, %cst_16 {dimension_numbers = #tpu.dot_dimension_numbers<[1], [0], [0], [1], [0, 0, 1, 1], [], []>} : vector<16x32xbf16>, vector<32x256xbf16>, vector<16x256xf32> -> vector<16x256xf32>
    %33 = vector.extract_strided_slice %32 {offsets = [0, 0], sizes = [16, 64], strides = [1, 1]} : vector<16x256xf32> to vector<16x64xf32>
    %34 = vector.extract_strided_slice %32 {offsets = [0, 128], sizes = [16, 64], strides = [1, 1]} : vector<16x256xf32> to vector<16x64xf32>
    %35 = tpu.iota {dimensions = array<i32: 0>} : vector<16x64xi32>
    %c8_i32 = arith.constant 8 : i32
    %c0_i32_17 = arith.constant 0 : i32
    %36 = arith.cmpi eq, %c8_i32, %c0_i32_17 : i32
    %c1_i32 = arith.constant 1 : i32
    %37 = arith.select %36, %c1_i32, %c8_i32 : i32
    %38 = vector.broadcast %37 : i32 to vector<16x64xi32>
    %39 = arith.remsi %35, %38 : vector<16x64xi32>
    %c0_i32_18 = arith.constant 0 : i32
    %40 = vector.broadcast %c0_i32_18 : i32 to vector<16x64xi32>
    %41 = arith.cmpi ne, %39, %40 : vector<16x64xi32>
    %c0_i32_19 = arith.constant 0 : i32
    %42 = vector.broadcast %c0_i32_19 : i32 to vector<16x64xi32>
    %43 = arith.cmpi slt, %39, %42 : vector<16x64xi32>
    %c0_i32_20 = arith.constant 0 : i32
    %44 = arith.cmpi slt, %37, %c0_i32_20 : i32
    %45 = vector.broadcast %44 : i1 to vector<16x64xi1>
    %46 = vector.broadcast %45 : vector<16x64xi1> to vector<16x64xi1>
    %47 = arith.xori %43, %46 : vector<16x64xi1>
    %48 = arith.andi %47, %41 : vector<16x64xi1>
    %49 = vector.broadcast %37 : i32 to vector<16x64xi32>
    %50 = arith.addi %39, %49 : vector<16x64xi32>
    %51 = arith.select %48, %50, %39 : vector<16x64xi1>, vector<16x64xi32>
    %c0_21 = arith.constant 0 : index
    %c0_22 = arith.constant 0 : index
    %c0_23 = arith.constant 0 : index
    %52 = vector.load %arg7[%c0_21, %c0_22, %c0_23] : memref<1x1x64xf32, #tpu.memory_space<vmem>>, vector<1x1x64xf32>
    %53 = vector.shape_cast %52 : vector<1x1x64xf32> to vector<1x64xf32>
    %c0_24 = arith.constant 0 : index
    %c3 = arith.constant 3 : index
    %c0_25 = arith.constant 0 : index
    %54 = vector.load %arg6[%c0_24, %c3, %c0_25] : memref<1x4x64xf32, #tpu.memory_space<vmem>>, vector<1x1x64xf32>
    %55 = vector.shape_cast %54 : vector<1x1x64xf32> to vector<1x64xf32>
    %56 = vector.broadcast %55 : vector<1x64xf32> to vector<16x64xf32>
    %57 = arith.mulf %56, %33 : vector<16x64xf32>
    %58 = vector.broadcast %53 : vector<1x64xf32> to vector<16x64xf32>
    %59 = arith.addf %58, %57 : vector<16x64xf32>
    %c1_i32_26 = arith.constant 1 : i32
    %60 = tpu.dynamic_rotate %33 by %c1_i32_26 dim 0 : vector<16x64xf32>, i32 -> vector<16x64xf32>
    %c1_i32_27 = arith.constant 1 : i32
    %61 = vector.broadcast %c1_i32_27 : i32 to vector<16x64xi32>
    %62 = arith.cmpi sge, %51, %61 : vector<16x64xi32>
    %cst_28 = arith.constant 0.000000e+00 : f32
    %63 = vector.broadcast %cst_28 : f32 to vector<16x64xf32>
    %64 = arith.select %62, %60, %63 : vector<16x64xi1>, vector<16x64xf32>
    %c0_29 = arith.constant 0 : index
    %c2 = arith.constant 2 : index
    %c0_30 = arith.constant 0 : index
    %65 = vector.load %arg6[%c0_29, %c2, %c0_30] : memref<1x4x64xf32, #tpu.memory_space<vmem>>, vector<1x1x64xf32>
    %66 = vector.shape_cast %65 : vector<1x1x64xf32> to vector<1x64xf32>
    %67 = vector.broadcast %66 : vector<1x64xf32> to vector<16x64xf32>
    %68 = arith.mulf %67, %64 : vector<16x64xf32>
    %69 = arith.addf %59, %68 : vector<16x64xf32>
    %c2_i32 = arith.constant 2 : i32
    %70 = tpu.dynamic_rotate %33 by %c2_i32 dim 0 : vector<16x64xf32>, i32 -> vector<16x64xf32>
    %c2_i32_31 = arith.constant 2 : i32
    %71 = vector.broadcast %c2_i32_31 : i32 to vector<16x64xi32>
    %72 = arith.cmpi sge, %51, %71 : vector<16x64xi32>
    %cst_32 = arith.constant 0.000000e+00 : f32
    %73 = vector.broadcast %cst_32 : f32 to vector<16x64xf32>
    %74 = arith.select %72, %70, %73 : vector<16x64xi1>, vector<16x64xf32>
    %c0_33 = arith.constant 0 : index
    %c1 = arith.constant 1 : index
    %c0_34 = arith.constant 0 : index
    %75 = vector.load %arg6[%c0_33, %c1, %c0_34] : memref<1x4x64xf32, #tpu.memory_space<vmem>>, vector<1x1x64xf32>
    %76 = vector.shape_cast %75 : vector<1x1x64xf32> to vector<1x64xf32>
    %77 = vector.broadcast %76 : vector<1x64xf32> to vector<16x64xf32>
    %78 = arith.mulf %77, %74 : vector<16x64xf32>
    %79 = arith.addf %69, %78 : vector<16x64xf32>
    %c3_i32 = arith.constant 3 : i32
    %80 = tpu.dynamic_rotate %33 by %c3_i32 dim 0 : vector<16x64xf32>, i32 -> vector<16x64xf32>
    %c3_i32_35 = arith.constant 3 : i32
    %81 = vector.broadcast %c3_i32_35 : i32 to vector<16x64xi32>
    %82 = arith.cmpi sge, %51, %81 : vector<16x64xi32>
    %cst_36 = arith.constant 0.000000e+00 : f32
    %83 = vector.broadcast %cst_36 : f32 to vector<16x64xf32>
    %84 = arith.select %82, %80, %83 : vector<16x64xi1>, vector<16x64xf32>
    %c0_37 = arith.constant 0 : index
    %c0_38 = arith.constant 0 : index
    %c0_39 = arith.constant 0 : index
    %85 = vector.load %arg6[%c0_37, %c0_38, %c0_39] : memref<1x4x64xf32, #tpu.memory_space<vmem>>, vector<1x1x64xf32>
    %86 = vector.shape_cast %85 : vector<1x1x64xf32> to vector<1x64xf32>
    %87 = vector.broadcast %86 : vector<1x64xf32> to vector<16x64xf32>
    %88 = arith.mulf %87, %84 : vector<16x64xf32>
    %89 = arith.addf %79, %88 : vector<16x64xf32>
    %90 = arith.negf %89 : vector<16x64xf32>
    %91 = math.exp %90 : vector<16x64xf32>
    %cst_40 = arith.constant 1.000000e+00 : f32
    %92 = vector.broadcast %cst_40 : f32 to vector<16x64xf32>
    %93 = arith.addf %92, %91 : vector<16x64xf32>
    %94 = arith.divf %92, %93 : vector<16x64xf32>
    %95 = arith.mulf %89, %94 : vector<16x64xf32>
    %96 = arith.truncf %95 : vector<16x64xf32> to vector<16x64xbf16>
    %c0_41 = arith.constant 0 : index
    %c0_42 = arith.constant 0 : index
    %c0_43 = arith.constant 0 : index
    %97 = vector.load %arg8[%c0_41, %c0_42, %c0_43] : memref<1x64x384xbf16, #tpu.memory_space<vmem>>, vector<1x64x384xbf16>
    %98 = vector.shape_cast %97 : vector<1x64x384xbf16> to vector<64x384xbf16>
    %cst_44 = arith.constant dense<0.000000e+00> : vector<16x384xf32>
    %99 = tpu.matmul %96, %98, %cst_44 {dimension_numbers = #tpu.dot_dimension_numbers<[1], [0], [0], [1], [0, 0, 1, 1], [], []>} : vector<16x64xbf16>, vector<64x384xbf16>, vector<16x384xf32> -> vector<16x384xf32>
    %100 = vector.extract_strided_slice %99 {offsets = [0, 0], sizes = [16, 64], strides = [1, 1]} : vector<16x384xf32> to vector<16x64xf32>
    %c0_45 = arith.constant 0 : index
    %c0_46 = arith.constant 0 : index
    %c0_47 = arith.constant 0 : index
    %101 = vector.load %arg9[%c0_45, %c0_46, %c0_47] : memref<1x1x64xf32, #tpu.memory_space<vmem>>, vector<1x1x64xf32>
    %102 = vector.shape_cast %101 : vector<1x1x64xf32> to vector<1x64xf32>
    %103 = vector.broadcast %102 : vector<1x64xf32> to vector<16x64xf32>
    %104 = arith.addf %100, %103 : vector<16x64xf32>
    %cst_48 = arith.constant 0.000000e+00 : f32
    %105 = vector.broadcast %cst_48 : f32 to vector<16x64xf32>
    %106 = arith.maximumf %104, %105 : vector<16x64xf32>
    %107 = math.absf %104 : vector<16x64xf32>
    %cst_49 = arith.constant 0.000000e+00 : f32
    %108 = vector.broadcast %cst_49 : f32 to vector<16x64xf32>
    %109 = arith.subf %108, %107 : vector<16x64xf32>
    %110 = math.exp %109 : vector<16x64xf32>
    %111 = math.log1p %110 : vector<16x64xf32>
    %112 = arith.addf %106, %111 : vector<16x64xf32>
    %113 = vector.extract_strided_slice %99 {offsets = [0, 128], sizes = [16, 16], strides = [1, 1]} : vector<16x384xf32> to vector<16x16xf32>
    %114 = vector.extract_strided_slice %99 {offsets = [0, 256], sizes = [16, 16], strides = [1, 1]} : vector<16x384xf32> to vector<16x16xf32>
    %c0_50 = arith.constant 0 : index
    %c0_51 = arith.constant 0 : index
    %115 = vector.load %arg19[%c0_50, %c0_51] : memref<16x64xf32, #tpu.memory_space<vmem>>, vector<16x64xf32>
    tpu.vector_store %arg19[%c0_50, %c0_51], %112 {strides = array<i32>} : memref<16x64xf32, #tpu.memory_space<vmem>>, vector<16x64xf32>,
    %116 = arith.mulf %112, %95 : vector<16x64xf32>
    %c0_52 = arith.constant 0 : index
    %c0_53 = arith.constant 0 : index
    %117 = vector.load %arg20[%c0_52, %c0_53] : memref<16x64xf32, #tpu.memory_space<vmem>>, vector<16x64xf32>
    tpu.vector_store %arg20[%c0_52, %c0_53], %116 {strides = array<i32>} : memref<16x64xf32, #tpu.memory_space<vmem>>, vector<16x64xf32>,
    %c0_54 = arith.constant 0 : index
    %c0_55 = arith.constant 0 : index
    %118 = vector.load %arg21[%c0_54, %c0_55] : memref<16x16xf32, #tpu.memory_space<vmem>>, vector<16x16xf32>
    tpu.vector_store %arg21[%c0_54, %c0_55], %113 {strides = array<i32>} : memref<16x16xf32, #tpu.memory_space<vmem>>, vector<16x16xf32>,
    %c0_56 = arith.constant 0 : index
    %c0_57 = arith.constant 0 : index
    %119 = vector.load %arg22[%c0_56, %c0_57] : memref<16x16xf32, #tpu.memory_space<vmem>>, vector<16x16xf32>
    tpu.vector_store %arg22[%c0_56, %c0_57], %114 {strides = array<i32>} : memref<16x16xf32, #tpu.memory_space<vmem>>, vector<16x16xf32>,
    %c0_58 = arith.constant 0 : index
    %c0_59 = arith.constant 0 : index
    %c0_60 = arith.constant 0 : index
    %120 = vector.load %arg10[%c0_58, %c0_59, %c0_60] : memref<1x16x64xf32, #tpu.memory_space<vmem>>, vector<1x16x64xf32>
    %121 = vector.shape_cast %120 : vector<1x16x64xf32> to vector<16x64xf32>
    %cst_61 = arith.constant 0.000000e+00 : f32
    %122 = vector.broadcast %cst_61 : f32 to vector<16x64xf32>
    %c0_i32_62 = arith.constant 0 : i32
    %c8_i32_63 = arith.constant 8 : i32
    %123 = arith.muli %c0_i32_62, %c8_i32_63 : i32
    %c0_i32_64 = arith.constant 0 : i32
    %124 = arith.addi %c0_i32_64, %123 : i32
    %125 = tpu.assume_multiple %124, 8 : i32
    %126 = arith.index_cast %125 : i32 to index
    %c0_65 = arith.constant 0 : index
    %127 = vector.load %arg19[%126, %c0_65] : memref<16x64xf32, #tpu.memory_space<vmem>>, vector<8x64xf32>
    %128 = vector.shape_cast %127 : vector<8x64xf32> to vector<8x1x64xf32>
    %129 = vector.shape_cast %121 : vector<16x64xf32> to vector<1x16x64xf32>
    %130 = vector.broadcast %128 : vector<8x1x64xf32> to vector<8x16x64xf32>
    %131 = vector.broadcast %129 : vector<1x16x64xf32> to vector<8x16x64xf32>
    %132 = arith.mulf %130, %131 : vector<8x16x64xf32>
    %133 = math.exp %132 : vector<8x16x64xf32>
    %c0_66 = arith.constant 0 : index
    %c0_67 = arith.constant 0 : index
    %c0_68 = arith.constant 0 : index
    %134 = vector.load %arg17[%c0_66, %c0_67, %c0_68] : memref<8x16x64xf32, #tpu.memory_space<vmem>>, vector<8x16x64xf32>
    tpu.vector_store %arg17[%c0_66, %c0_67, %c0_68], %133 {strides = array<i32>} : memref<8x16x64xf32, #tpu.memory_space<vmem>>, vector<8x16x64xf32>,
    %135 = arith.index_cast %125 : i32 to index
    %c0_69 = arith.constant 0 : index
    %136 = vector.load %arg20[%135, %c0_69] : memref<16x64xf32, #tpu.memory_space<vmem>>, vector<8x64xf32>
    %137 = vector.shape_cast %136 : vector<8x64xf32> to vector<8x1x64xf32>
    %138 = arith.index_cast %125 : i32 to index
    %c0_70 = arith.constant 0 : index
    %139 = vector.load %arg21[%138, %c0_70] : memref<16x16xf32, #tpu.memory_space<vmem>>, vector<8x16xf32>
    %140 = vector.shape_cast %139 : vector<8x16xf32> to vector<8x16x1xf32>
    %141 = vector.broadcast %137 : vector<8x1x64xf32> to vector<8x16x64xf32>
    %142 = vector.broadcast %140 : vector<8x16x1xf32> to vector<8x16x64xf32>
    %143 = arith.mulf %141, %142 : vector<8x16x64xf32>
    %c0_71 = arith.constant 0 : index
    %c0_72 = arith.constant 0 : index
    %c0_73 = arith.constant 0 : index
    %144 = vector.load %arg18[%c0_71, %c0_72, %c0_73] : memref<8x16x64xf32, #tpu.memory_space<vmem>>, vector<8x16x64xf32>
    tpu.vector_store %arg18[%c0_71, %c0_72, %c0_73], %143 {strides = array<i32>} : memref<8x16x64xf32, #tpu.memory_space<vmem>>, vector<8x16x64xf32>,
    %c0_i32_74 = arith.constant 0 : i32
    %c8_i32_75 = arith.constant 8 : i32
    %145 = arith.muli %c0_i32_74, %c8_i32_75 : i32
    %146 = tpu.assume_multiple %145, 8 : i32
    %c0_i32_76 = arith.constant 0 : i32
    %147 = arith.addi %146, %c0_i32_76 : i32
    %148 = arith.index_cast %147 : i32 to index
    %c0_77 = arith.constant 0 : index
    %c0_78 = arith.constant 0 : index
    %149 = vector.load %arg17[%148, %c0_77, %c0_78] : memref<8x16x64xf32, #tpu.memory_space<vmem>>, vector<1x16x64xf32>
    %150 = vector.shape_cast %149 : vector<1x16x64xf32> to vector<16x64xf32>
    %151 = arith.mulf %150, %122 : vector<16x64xf32>
    %c0_i32_79 = arith.constant 0 : i32
    %152 = arith.addi %146, %c0_i32_79 : i32
    %153 = arith.index_cast %152 : i32 to index
    %c0_80 = arith.constant 0 : index
    %c0_81 = arith.constant 0 : index
    %154 = vector.load %arg18[%153, %c0_80, %c0_81] : memref<8x16x64xf32, #tpu.memory_space<vmem>>, vector<1x16x64xf32>
    %155 = vector.shape_cast %154 : vector<1x16x64xf32> to vector<16x64xf32>
    %156 = arith.addf %151, %155 : vector<16x64xf32>
    %c1_i32_82 = arith.constant 1 : i32
    %157 = arith.addi %146, %c1_i32_82 : i32
    %158 = arith.index_cast %157 : i32 to index
    %c0_83 = arith.constant 0 : index
    %c0_84 = arith.constant 0 : index
    %159 = vector.load %arg17[%158, %c0_83, %c0_84] : memref<8x16x64xf32, #tpu.memory_space<vmem>>, vector<1x16x64xf32>
    %160 = vector.shape_cast %159 : vector<1x16x64xf32> to vector<16x64xf32>
    %161 = arith.mulf %160, %156 : vector<16x64xf32>
    %c1_i32_85 = arith.constant 1 : i32
    %162 = arith.addi %146, %c1_i32_85 : i32
    %163 = arith.index_cast %162 : i32 to index
    %c0_86 = arith.constant 0 : index
    %c0_87 = arith.constant 0 : index
    %164 = vector.load %arg18[%163, %c0_86, %c0_87] : memref<8x16x64xf32, #tpu.memory_space<vmem>>, vector<1x16x64xf32>
    %165 = vector.shape_cast %164 : vector<1x16x64xf32> to vector<16x64xf32>
    %166 = arith.addf %161, %165 : vector<16x64xf32>
    %c2_i32_88 = arith.constant 2 : i32
    %167 = arith.addi %146, %c2_i32_88 : i32
    %168 = arith.index_cast %167 : i32 to index
    %c0_89 = arith.constant 0 : index
    %c0_90 = arith.constant 0 : index
    %169 = vector.load %arg17[%168, %c0_89, %c0_90] : memref<8x16x64xf32, #tpu.memory_space<vmem>>, vector<1x16x64xf32>
    %170 = vector.shape_cast %169 : vector<1x16x64xf32> to vector<16x64xf32>
    %171 = arith.mulf %170, %166 : vector<16x64xf32>
    %c2_i32_91 = arith.constant 2 : i32
    %172 = arith.addi %146, %c2_i32_91 : i32
    %173 = arith.index_cast %172 : i32 to index
    %c0_92 = arith.constant 0 : index
    %c0_93 = arith.constant 0 : index
    %174 = vector.load %arg18[%173, %c0_92, %c0_93] : memref<8x16x64xf32, #tpu.memory_space<vmem>>, vector<1x16x64xf32>
    %175 = vector.shape_cast %174 : vector<1x16x64xf32> to vector<16x64xf32>
    %176 = arith.addf %171, %175 : vector<16x64xf32>
    %c3_i32_94 = arith.constant 3 : i32
    %177 = arith.addi %146, %c3_i32_94 : i32
    %178 = arith.index_cast %177 : i32 to index
    %c0_95 = arith.constant 0 : index
    %c0_96 = arith.constant 0 : index
    %179 = vector.load %arg17[%178, %c0_95, %c0_96] : memref<8x16x64xf32, #tpu.memory_space<vmem>>, vector<1x16x64xf32>
    %180 = vector.shape_cast %179 : vector<1x16x64xf32> to vector<16x64xf32>
    %181 = arith.mulf %180, %176 : vector<16x64xf32>
    %c3_i32_97 = arith.constant 3 : i32
    %182 = arith.addi %146, %c3_i32_97 : i32
    %183 = arith.index_cast %182 : i32 to index
    %c0_98 = arith.constant 0 : index
    %c0_99 = arith.constant 0 : index
    %184 = vector.load %arg18[%183, %c0_98, %c0_99] : memref<8x16x64xf32, #tpu.memory_space<vmem>>, vector<1x16x64xf32>
    %185 = vector.shape_cast %184 : vector<1x16x64xf32> to vector<16x64xf32>
    %186 = arith.addf %181, %185 : vector<16x64xf32>
    %c4_i32 = arith.constant 4 : i32
    %187 = arith.addi %146, %c4_i32 : i32
    %188 = arith.index_cast %187 : i32 to index
    %c0_100 = arith.constant 0 : index
    %c0_101 = arith.constant 0 : index
    %189 = vector.load %arg17[%188, %c0_100, %c0_101] : memref<8x16x64xf32, #tpu.memory_space<vmem>>, vector<1x16x64xf32>
    %190 = vector.shape_cast %189 : vector<1x16x64xf32> to vector<16x64xf32>
    %191 = arith.mulf %190, %186 : vector<16x64xf32>
    %c4_i32_102 = arith.constant 4 : i32
    %192 = arith.addi %146, %c4_i32_102 : i32
    %193 = arith.index_cast %192 : i32 to index
    %c0_103 = arith.constant 0 : index
    %c0_104 = arith.constant 0 : index
    %194 = vector.load %arg18[%193, %c0_103, %c0_104] : memref<8x16x64xf32, #tpu.memory_space<vmem>>, vector<1x16x64xf32>
    %195 = vector.shape_cast %194 : vector<1x16x64xf32> to vector<16x64xf32>
    %196 = arith.addf %191, %195 : vector<16x64xf32>
    %c5_i32 = arith.constant 5 : i32
    %197 = arith.addi %146, %c5_i32 : i32
    %198 = arith.index_cast %197 : i32 to index
    %c0_105 = arith.constant 0 : index
    %c0_106 = arith.constant 0 : index
    %199 = vector.load %arg17[%198, %c0_105, %c0_106] : memref<8x16x64xf32, #tpu.memory_space<vmem>>, vector<1x16x64xf32>
    %200 = vector.shape_cast %199 : vector<1x16x64xf32> to vector<16x64xf32>
    %201 = arith.mulf %200, %196 : vector<16x64xf32>
    %c5_i32_107 = arith.constant 5 : i32
    %202 = arith.addi %146, %c5_i32_107 : i32
    %203 = arith.index_cast %202 : i32 to index
    %c0_108 = arith.constant 0 : index
    %c0_109 = arith.constant 0 : index
    %204 = vector.load %arg18[%203, %c0_108, %c0_109] : memref<8x16x64xf32, #tpu.memory_space<vmem>>, vector<1x16x64xf32>
    %205 = vector.shape_cast %204 : vector<1x16x64xf32> to vector<16x64xf32>
    %206 = arith.addf %201, %205 : vector<16x64xf32>
    %c6_i32 = arith.constant 6 : i32
    %207 = arith.addi %146, %c6_i32 : i32
    %208 = arith.index_cast %207 : i32 to index
    %c0_110 = arith.constant 0 : index
    %c0_111 = arith.constant 0 : index
    %209 = vector.load %arg17[%208, %c0_110, %c0_111] : memref<8x16x64xf32, #tpu.memory_space<vmem>>, vector<1x16x64xf32>
    %210 = vector.shape_cast %209 : vector<1x16x64xf32> to vector<16x64xf32>
    %211 = arith.mulf %210, %206 : vector<16x64xf32>
    %c6_i32_112 = arith.constant 6 : i32
    %212 = arith.addi %146, %c6_i32_112 : i32
    %213 = arith.index_cast %212 : i32 to index
    %c0_113 = arith.constant 0 : index
    %c0_114 = arith.constant 0 : index
    %214 = vector.load %arg18[%213, %c0_113, %c0_114] : memref<8x16x64xf32, #tpu.memory_space<vmem>>, vector<1x16x64xf32>
    %215 = vector.shape_cast %214 : vector<1x16x64xf32> to vector<16x64xf32>
    %216 = arith.addf %211, %215 : vector<16x64xf32>
    %c7_i32 = arith.constant 7 : i32
    %217 = arith.addi %146, %c7_i32 : i32
    %218 = arith.index_cast %217 : i32 to index
    %c0_115 = arith.constant 0 : index
    %c0_116 = arith.constant 0 : index
    %219 = vector.load %arg17[%218, %c0_115, %c0_116] : memref<8x16x64xf32, #tpu.memory_space<vmem>>, vector<1x16x64xf32>
    %220 = vector.shape_cast %219 : vector<1x16x64xf32> to vector<16x64xf32>
    %221 = arith.mulf %220, %216 : vector<16x64xf32>
    %c7_i32_117 = arith.constant 7 : i32
    %222 = arith.addi %146, %c7_i32_117 : i32
    %223 = arith.index_cast %222 : i32 to index
    %c0_118 = arith.constant 0 : index
    %c0_119 = arith.constant 0 : index
    %224 = vector.load %arg18[%223, %c0_118, %c0_119] : memref<8x16x64xf32, #tpu.memory_space<vmem>>, vector<1x16x64xf32>
    %225 = vector.shape_cast %224 : vector<1x16x64xf32> to vector<16x64xf32>
    %226 = arith.addf %221, %225 : vector<16x64xf32>
    %227 = vector.shape_cast %156 : vector<16x64xf32> to vector<1x16x64xf32>
    %228 = vector.shape_cast %166 : vector<16x64xf32> to vector<1x16x64xf32>
    %229 = vector.shape_cast %176 : vector<16x64xf32> to vector<1x16x64xf32>
    %230 = vector.shape_cast %186 : vector<16x64xf32> to vector<1x16x64xf32>
    %231 = vector.shape_cast %196 : vector<16x64xf32> to vector<1x16x64xf32>
    %232 = vector.shape_cast %206 : vector<16x64xf32> to vector<1x16x64xf32>
    %233 = vector.shape_cast %216 : vector<16x64xf32> to vector<1x16x64xf32>
    %234 = vector.shape_cast %226 : vector<16x64xf32> to vector<1x16x64xf32>
    %235 = tpu.concatenate %227, %228, %229, %230, %231, %232, %233, %234 in 0 : vector<1x16x64xf32>, vector<1x16x64xf32>, vector<1x16x64xf32>, vector<1x16x64xf32>, vector<1x16x64xf32>, vector<1x16x64xf32>, vector<1x16x64xf32>, vector<1x16x64xf32> -> vector<8x16x64xf32>
    %236 = arith.addi %125, %146 : i32
    %237 = tpu.assume_multiple %236, 8 : i32
    %238 = arith.index_cast %237 : i32 to index
    %c0_120 = arith.constant 0 : index
    %239 = vector.load %arg22[%238, %c0_120] : memref<16x16xf32, #tpu.memory_space<vmem>>, vector<8x16xf32>
    %240 = vector.shape_cast %239 : vector<8x16xf32> to vector<8x16x1xf32>
    %241 = vector.broadcast %240 : vector<8x16x1xf32> to vector<8x16x64xf32>
    %242 = arith.mulf %235, %241 : vector<8x16x64xf32>
    %cst_121 = arith.constant dense<0.000000e+00> : vector<8x64xf32>
    %243 = vector.multi_reduction <add>, %242, %cst_121 [1] : vector<8x16x64xf32> to vector<8x64xf32>
    %244 = arith.index_cast %237 : i32 to index
    %c0_122 = arith.constant 0 : index
    %245 = vector.load %arg23[%244, %c0_122] : memref<16x64xf32, #tpu.memory_space<vmem>>, vector<8x64xf32>
    tpu.vector_store %arg23[%244, %c0_122], %243 {strides = array<i32>} : memref<16x64xf32, #tpu.memory_space<vmem>>, vector<8x64xf32>,
    %c1_i32_123 = arith.constant 1 : i32
    %c1_i32_124 = arith.constant 1 : i32
    %cst_125 = arith.constant 0.000000e+00 : f32
    %246 = vector.broadcast %cst_125 : f32 to vector<16x64xf32>
    %c0_i32_126 = arith.constant 0 : i32
    %c8_i32_127 = arith.constant 8 : i32
    %247 = arith.muli %c0_i32_126, %c8_i32_127 : i32
    %c8_i32_128 = arith.constant 8 : i32
    %248 = arith.addi %c8_i32_128, %247 : i32
    %249 = tpu.assume_multiple %248, 8 : i32
    %250 = arith.index_cast %249 : i32 to index
    %c0_129 = arith.constant 0 : index
    %251 = vector.load %arg19[%250, %c0_129] : memref<16x64xf32, #tpu.memory_space<vmem>>, vector<8x64xf32>
    %252 = vector.shape_cast %251 : vector<8x64xf32> to vector<8x1x64xf32>
    %253 = vector.shape_cast %121 : vector<16x64xf32> to vector<1x16x64xf32>
    %254 = vector.broadcast %252 : vector<8x1x64xf32> to vector<8x16x64xf32>
    %255 = vector.broadcast %253 : vector<1x16x64xf32> to vector<8x16x64xf32>
    %256 = arith.mulf %254, %255 : vector<8x16x64xf32>
    %257 = math.exp %256 : vector<8x16x64xf32>
    %c0_130 = arith.constant 0 : index
    %c0_131 = arith.constant 0 : index
    %c0_132 = arith.constant 0 : index
    %258 = vector.load %arg17[%c0_130, %c0_131, %c0_132] : memref<8x16x64xf32, #tpu.memory_space<vmem>>, vector<8x16x64xf32>
    tpu.vector_store %arg17[%c0_130, %c0_131, %c0_132], %257 {strides = array<i32>} : memref<8x16x64xf32, #tpu.memory_space<vmem>>, vector<8x16x64xf32>,
    %259 = arith.index_cast %249 : i32 to index
    %c0_133 = arith.constant 0 : index
    %260 = vector.load %arg20[%259, %c0_133] : memref<16x64xf32, #tpu.memory_space<vmem>>, vector<8x64xf32>
    %261 = vector.shape_cast %260 : vector<8x64xf32> to vector<8x1x64xf32>
    %262 = arith.index_cast %249 : i32 to index
    %c0_134 = arith.constant 0 : index
    %263 = vector.load %arg21[%262, %c0_134] : memref<16x16xf32, #tpu.memory_space<vmem>>, vector<8x16xf32>
    %264 = vector.shape_cast %263 : vector<8x16xf32> to vector<8x16x1xf32>
    %265 = vector.broadcast %261 : vector<8x1x64xf32> to vector<8x16x64xf32>
    %266 = vector.broadcast %264 : vector<8x16x1xf32> to vector<8x16x64xf32>
    %267 = arith.mulf %265, %266 : vector<8x16x64xf32>
    %c0_135 = arith.constant 0 : index
    %c0_136 = arith.constant 0 : index
    %c0_137 = arith.constant 0 : index
    %268 = vector.load %arg18[%c0_135, %c0_136, %c0_137] : memref<8x16x64xf32, #tpu.memory_space<vmem>>, vector<8x16x64xf32>
    tpu.vector_store %arg18[%c0_135, %c0_136, %c0_137], %267 {strides = array<i32>} : memref<8x16x64xf32, #tpu.memory_space<vmem>>, vector<8x16x64xf32>,
    %c0_i32_138 = arith.constant 0 : i32
    %c8_i32_139 = arith.constant 8 : i32
    %269 = arith.muli %c0_i32_138, %c8_i32_139 : i32
    %270 = tpu.assume_multiple %269, 8 : i32
    %c0_i32_140 = arith.constant 0 : i32
    %271 = arith.addi %270, %c0_i32_140 : i32
    %272 = arith.index_cast %271 : i32 to index
    %c0_141 = arith.constant 0 : index
    %c0_142 = arith.constant 0 : index
    %273 = vector.load %arg17[%272, %c0_141, %c0_142] : memref<8x16x64xf32, #tpu.memory_space<vmem>>, vector<1x16x64xf32>
    %274 = vector.shape_cast %273 : vector<1x16x64xf32> to vector<16x64xf32>
    %275 = arith.mulf %274, %246 : vector<16x64xf32>
    %c0_i32_143 = arith.constant 0 : i32
    %276 = arith.addi %270, %c0_i32_143 : i32
    %277 = arith.index_cast %276 : i32 to index
    %c0_144 = arith.constant 0 : index
    %c0_145 = arith.constant 0 : index
    %278 = vector.load %arg18[%277, %c0_144, %c0_145] : memref<8x16x64xf32, #tpu.memory_space<vmem>>, vector<1x16x64xf32>
    %279 = vector.shape_cast %278 : vector<1x16x64xf32> to vector<16x64xf32>
    %280 = arith.addf %275, %279 : vector<16x64xf32>
    %c1_i32_146 = arith.constant 1 : i32
    %281 = arith.addi %270, %c1_i32_146 : i32
    %282 = arith.index_cast %281 : i32 to index
    %c0_147 = arith.constant 0 : index
    %c0_148 = arith.constant 0 : index
    %283 = vector.load %arg17[%282, %c0_147, %c0_148] : memref<8x16x64xf32, #tpu.memory_space<vmem>>, vector<1x16x64xf32>
    %284 = vector.shape_cast %283 : vector<1x16x64xf32> to vector<16x64xf32>
    %285 = arith.mulf %284, %280 : vector<16x64xf32>
    %c1_i32_149 = arith.constant 1 : i32
    %286 = arith.addi %270, %c1_i32_149 : i32
    %287 = arith.index_cast %286 : i32 to index
    %c0_150 = arith.constant 0 : index
    %c0_151 = arith.constant 0 : index
    %288 = vector.load %arg18[%287, %c0_150, %c0_151] : memref<8x16x64xf32, #tpu.memory_space<vmem>>, vector<1x16x64xf32>
    %289 = vector.shape_cast %288 : vector<1x16x64xf32> to vector<16x64xf32>
    %290 = arith.addf %285, %289 : vector<16x64xf32>
    %c2_i32_152 = arith.constant 2 : i32
    %291 = arith.addi %270, %c2_i32_152 : i32
    %292 = arith.index_cast %291 : i32 to index
    %c0_153 = arith.constant 0 : index
    %c0_154 = arith.constant 0 : index
    %293 = vector.load %arg17[%292, %c0_153, %c0_154] : memref<8x16x64xf32, #tpu.memory_space<vmem>>, vector<1x16x64xf32>
    %294 = vector.shape_cast %293 : vector<1x16x64xf32> to vector<16x64xf32>
    %295 = arith.mulf %294, %290 : vector<16x64xf32>
    %c2_i32_155 = arith.constant 2 : i32
    %296 = arith.addi %270, %c2_i32_155 : i32
    %297 = arith.index_cast %296 : i32 to index
    %c0_156 = arith.constant 0 : index
    %c0_157 = arith.constant 0 : index
    %298 = vector.load %arg18[%297, %c0_156, %c0_157] : memref<8x16x64xf32, #tpu.memory_space<vmem>>, vector<1x16x64xf32>
    %299 = vector.shape_cast %298 : vector<1x16x64xf32> to vector<16x64xf32>
    %300 = arith.addf %295, %299 : vector<16x64xf32>
    %c3_i32_158 = arith.constant 3 : i32
    %301 = arith.addi %270, %c3_i32_158 : i32
    %302 = arith.index_cast %301 : i32 to index
    %c0_159 = arith.constant 0 : index
    %c0_160 = arith.constant 0 : index
    %303 = vector.load %arg17[%302, %c0_159, %c0_160] : memref<8x16x64xf32, #tpu.memory_space<vmem>>, vector<1x16x64xf32>
    %304 = vector.shape_cast %303 : vector<1x16x64xf32> to vector<16x64xf32>
    %305 = arith.mulf %304, %300 : vector<16x64xf32>
    %c3_i32_161 = arith.constant 3 : i32
    %306 = arith.addi %270, %c3_i32_161 : i32
    %307 = arith.index_cast %306 : i32 to index
    %c0_162 = arith.constant 0 : index
    %c0_163 = arith.constant 0 : index
    %308 = vector.load %arg18[%307, %c0_162, %c0_163] : memref<8x16x64xf32, #tpu.memory_space<vmem>>, vector<1x16x64xf32>
    %309 = vector.shape_cast %308 : vector<1x16x64xf32> to vector<16x64xf32>
    %310 = arith.addf %305, %309 : vector<16x64xf32>
    %c4_i32_164 = arith.constant 4 : i32
    %311 = arith.addi %270, %c4_i32_164 : i32
    %312 = arith.index_cast %311 : i32 to index
    %c0_165 = arith.constant 0 : index
    %c0_166 = arith.constant 0 : index
    %313 = vector.load %arg17[%312, %c0_165, %c0_166] : memref<8x16x64xf32, #tpu.memory_space<vmem>>, vector<1x16x64xf32>
    %314 = vector.shape_cast %313 : vector<1x16x64xf32> to vector<16x64xf32>
    %315 = arith.mulf %314, %310 : vector<16x64xf32>
    %c4_i32_167 = arith.constant 4 : i32
    %316 = arith.addi %270, %c4_i32_167 : i32
    %317 = arith.index_cast %316 : i32 to index
    %c0_168 = arith.constant 0 : index
    %c0_169 = arith.constant 0 : index
    %318 = vector.load %arg18[%317, %c0_168, %c0_169] : memref<8x16x64xf32, #tpu.memory_space<vmem>>, vector<1x16x64xf32>
    %319 = vector.shape_cast %318 : vector<1x16x64xf32> to vector<16x64xf32>
    %320 = arith.addf %315, %319 : vector<16x64xf32>
    %c5_i32_170 = arith.constant 5 : i32
    %321 = arith.addi %270, %c5_i32_170 : i32
    %322 = arith.index_cast %321 : i32 to index
    %c0_171 = arith.constant 0 : index
    %c0_172 = arith.constant 0 : index
    %323 = vector.load %arg17[%322, %c0_171, %c0_172] : memref<8x16x64xf32, #tpu.memory_space<vmem>>, vector<1x16x64xf32>
    %324 = vector.shape_cast %323 : vector<1x16x64xf32> to vector<16x64xf32>
    %325 = arith.mulf %324, %320 : vector<16x64xf32>
    %c5_i32_173 = arith.constant 5 : i32
    %326 = arith.addi %270, %c5_i32_173 : i32
    %327 = arith.index_cast %326 : i32 to index
    %c0_174 = arith.constant 0 : index
    %c0_175 = arith.constant 0 : index
    %328 = vector.load %arg18[%327, %c0_174, %c0_175] : memref<8x16x64xf32, #tpu.memory_space<vmem>>, vector<1x16x64xf32>
    %329 = vector.shape_cast %328 : vector<1x16x64xf32> to vector<16x64xf32>
    %330 = arith.addf %325, %329 : vector<16x64xf32>
    %c6_i32_176 = arith.constant 6 : i32
    %331 = arith.addi %270, %c6_i32_176 : i32
    %332 = arith.index_cast %331 : i32 to index
    %c0_177 = arith.constant 0 : index
    %c0_178 = arith.constant 0 : index
    %333 = vector.load %arg17[%332, %c0_177, %c0_178] : memref<8x16x64xf32, #tpu.memory_space<vmem>>, vector<1x16x64xf32>
    %334 = vector.shape_cast %333 : vector<1x16x64xf32> to vector<16x64xf32>
    %335 = arith.mulf %334, %330 : vector<16x64xf32>
    %c6_i32_179 = arith.constant 6 : i32
    %336 = arith.addi %270, %c6_i32_179 : i32
    %337 = arith.index_cast %336 : i32 to index
    %c0_180 = arith.constant 0 : index
    %c0_181 = arith.constant 0 : index
    %338 = vector.load %arg18[%337, %c0_180, %c0_181] : memref<8x16x64xf32, #tpu.memory_space<vmem>>, vector<1x16x64xf32>
    %339 = vector.shape_cast %338 : vector<1x16x64xf32> to vector<16x64xf32>
    %340 = arith.addf %335, %339 : vector<16x64xf32>
    %c7_i32_182 = arith.constant 7 : i32
    %341 = arith.addi %270, %c7_i32_182 : i32
    %342 = arith.index_cast %341 : i32 to index
    %c0_183 = arith.constant 0 : index
    %c0_184 = arith.constant 0 : index
    %343 = vector.load %arg17[%342, %c0_183, %c0_184] : memref<8x16x64xf32, #tpu.memory_space<vmem>>, vector<1x16x64xf32>
    %344 = vector.shape_cast %343 : vector<1x16x64xf32> to vector<16x64xf32>
    %345 = arith.mulf %344, %340 : vector<16x64xf32>
    %c7_i32_185 = arith.constant 7 : i32
    %346 = arith.addi %270, %c7_i32_185 : i32
    %347 = arith.index_cast %346 : i32 to index
    %c0_186 = arith.constant 0 : index
    %c0_187 = arith.constant 0 : index
    %348 = vector.load %arg18[%347, %c0_186, %c0_187] : memref<8x16x64xf32, #tpu.memory_space<vmem>>, vector<1x16x64xf32>
    %349 = vector.shape_cast %348 : vector<1x16x64xf32> to vector<16x64xf32>
    %350 = arith.addf %345, %349 : vector<16x64xf32>
    %351 = vector.shape_cast %280 : vector<16x64xf32> to vector<1x16x64xf32>
    %352 = vector.shape_cast %290 : vector<16x64xf32> to vector<1x16x64xf32>
    %353 = vector.shape_cast %300 : vector<16x64xf32> to vector<1x16x64xf32>
    %354 = vector.shape_cast %310 : vector<16x64xf32> to vector<1x16x64xf32>
    %355 = vector.shape_cast %320 : vector<16x64xf32> to vector<1x16x64xf32>
    %356 = vector.shape_cast %330 : vector<16x64xf32> to vector<1x16x64xf32>
    %357 = vector.shape_cast %340 : vector<16x64xf32> to vector<1x16x64xf32>
    %358 = vector.shape_cast %350 : vector<16x64xf32> to vector<1x16x64xf32>
    %359 = tpu.concatenate %351, %352, %353, %354, %355, %356, %357, %358 in 0 : vector<1x16x64xf32>, vector<1x16x64xf32>, vector<1x16x64xf32>, vector<1x16x64xf32>, vector<1x16x64xf32>, vector<1x16x64xf32>, vector<1x16x64xf32>, vector<1x16x64xf32> -> vector<8x16x64xf32>
    %360 = arith.addi %249, %270 : i32
    %361 = tpu.assume_multiple %360, 8 : i32
    %362 = arith.index_cast %361 : i32 to index
    %c0_188 = arith.constant 0 : index
    %363 = vector.load %arg22[%362, %c0_188] : memref<16x16xf32, #tpu.memory_space<vmem>>, vector<8x16xf32>
    %364 = vector.shape_cast %363 : vector<8x16xf32> to vector<8x16x1xf32>
    %365 = vector.broadcast %364 : vector<8x16x1xf32> to vector<8x16x64xf32>
    %366 = arith.mulf %359, %365 : vector<8x16x64xf32>
    %cst_189 = arith.constant dense<0.000000e+00> : vector<8x64xf32>
    %367 = vector.multi_reduction <add>, %366, %cst_189 [1] : vector<8x16x64xf32> to vector<8x64xf32>
    %368 = arith.index_cast %361 : i32 to index
    %c0_190 = arith.constant 0 : index
    %369 = vector.load %arg23[%368, %c0_190] : memref<16x64xf32, #tpu.memory_space<vmem>>, vector<8x64xf32>
    tpu.vector_store %arg23[%368, %c0_190], %367 {strides = array<i32>} : memref<16x64xf32, #tpu.memory_space<vmem>>, vector<8x64xf32>,
    %c1_i32_191 = arith.constant 1 : i32
    %c1_i32_192 = arith.constant 1 : i32
    %c0_193 = arith.constant 0 : index
    %c0_194 = arith.constant 0 : index
    %370 = vector.load %arg23[%c0_193, %c0_194] : memref<16x64xf32, #tpu.memory_space<vmem>>, vector<16x64xf32>
    %c0_195 = arith.constant 0 : index
    %c0_196 = arith.constant 0 : index
    %c0_197 = arith.constant 0 : index
    %371 = vector.load %arg11[%c0_195, %c0_196, %c0_197] : memref<1x1x64xf32, #tpu.memory_space<vmem>>, vector<1x1x64xf32>
    %372 = vector.shape_cast %371 : vector<1x1x64xf32> to vector<1x64xf32>
    %373 = vector.broadcast %372 : vector<1x64xf32> to vector<16x64xf32>
    %374 = arith.mulf %373, %95 : vector<16x64xf32>
    %375 = arith.addf %370, %374 : vector<16x64xf32>
    %376 = arith.negf %34 : vector<16x64xf32>
    %377 = math.exp %376 : vector<16x64xf32>
    %cst_198 = arith.constant 1.000000e+00 : f32
    %378 = vector.broadcast %cst_198 : f32 to vector<16x64xf32>
    %379 = arith.addf %378, %377 : vector<16x64xf32>
    %380 = arith.divf %378, %379 : vector<16x64xf32>
    %381 = arith.mulf %34, %380 : vector<16x64xf32>
    %382 = arith.mulf %375, %381 : vector<16x64xf32>
    %383 = arith.truncf %382 : vector<16x64xf32> to vector<16x64xbf16>
    %c0_199 = arith.constant 0 : index
    %c0_200 = arith.constant 0 : index
    %c0_201 = arith.constant 0 : index
    %384 = vector.load %arg12[%c0_199, %c0_200, %c0_201] : memref<1x64x32xbf16, #tpu.memory_space<vmem>>, vector<1x64x32xbf16>
    %385 = vector.shape_cast %384 : vector<1x64x32xbf16> to vector<64x32xbf16>
    %cst_202 = arith.constant dense<0.000000e+00> : vector<16x32xf32>
    %386 = tpu.matmul %383, %385, %cst_202 {dimension_numbers = #tpu.dot_dimension_numbers<[1], [0], [0], [1], [0, 0, 1, 1], [], []>} : vector<16x64xbf16>, vector<64x32xbf16>, vector<16x32xf32> -> vector<16x32xf32>
    %387 = arith.addf %4, %386 : vector<16x32xf32>
    %388 = vector.shape_cast %387 : vector<16x32xf32> to vector<2x8x32xf32>
    %c0_203 = arith.constant 0 : index
    %c0_204 = arith.constant 0 : index
    %c0_205 = arith.constant 0 : index
    %389 = vector.load %arg16[%c0_203, %c0_204, %c0_205] : memref<2x8x32xf32, #tpu.memory_space<vmem>>, vector<2x8x32xf32>
    tpu.vector_store %arg16[%c0_203, %c0_204, %c0_205], %388 {strides = array<i32>} : memref<2x8x32xf32, #tpu.memory_space<vmem>>, vector<2x8x32xf32>,
    %c1_i32_206 = arith.constant 1 : i32
    %390 = arith.cmpi eq, %arg1, %c1_i32_206 : i32
    %391 = arith.extui %390 : i1 to i32
    %c0_i32_207 = arith.constant 0 : i32
    %392 = arith.cmpi ne, %391, %c0_i32_207 : i32
    scf.if %392 {
      %c0_208 = arith.constant 0 : index
      %c0_209 = arith.constant 0 : index
      %393 = vector.load %arg13[%c0_208, %c0_209] : memref<1x32xf32, #tpu.memory_space<vmem>>, vector<1x32xf32>
      %c0_210 = arith.constant 0 : index
      %c0_211 = arith.constant 0 : index
      %394 = vector.load %arg14[%c0_210, %c0_211] : memref<1x32xf32, #tpu.memory_space<vmem>>, vector<1x32xf32>
      %cst_212 = arith.constant dense<0.000000e+00> : vector<16xf32>
      %395 = vector.multi_reduction <add>, %387, %cst_212 [1] : vector<16x32xf32> to vector<16xf32>
      %396 = vector.shape_cast %395 : vector<16xf32> to vector<16x1xf32>
      %cst_213 = arith.constant 3.200000e+01 : f32
      %397 = vector.broadcast %cst_213 : f32 to vector<16x1xf32>
      %398 = arith.divf %396, %397 : vector<16x1xf32>
      %399 = vector.broadcast %398 : vector<16x1xf32> to vector<16x32xf32>
      %400 = arith.subf %387, %399 : vector<16x32xf32>
      %401 = arith.mulf %400, %400 : vector<16x32xf32>
      %cst_214 = arith.constant dense<0.000000e+00> : vector<16xf32>
      %402 = vector.multi_reduction <add>, %401, %cst_214 [1] : vector<16x32xf32> to vector<16xf32>
      %403 = vector.shape_cast %402 : vector<16xf32> to vector<16x1xf32>
      %cst_215 = arith.constant 3.200000e+01 : f32
      %404 = vector.broadcast %cst_215 : f32 to vector<16x1xf32>
      %405 = arith.divf %403, %404 : vector<16x1xf32>
      %cst_216 = arith.constant 9.99999974E-6 : f32
      %406 = vector.broadcast %cst_216 : f32 to vector<16x1xf32>
      %407 = arith.addf %405, %406 : vector<16x1xf32>
      %408 = math.rsqrt %407 : vector<16x1xf32>
      %409 = vector.broadcast %408 : vector<16x1xf32> to vector<16x32xf32>
      %410 = arith.mulf %400, %409 : vector<16x32xf32>
      %411 = vector.broadcast %393 : vector<1x32xf32> to vector<16x32xf32>
      %412 = arith.mulf %410, %411 : vector<16x32xf32>
      %413 = vector.broadcast %394 : vector<1x32xf32> to vector<16x32xf32>
      %414 = arith.addf %412, %413 : vector<16x32xf32>
      %415 = vector.shape_cast %414 : vector<16x32xf32> to vector<2x8x32xf32>
      %c0_217 = arith.constant 0 : index
      %c0_218 = arith.constant 0 : index
      %c0_219 = arith.constant 0 : index
      %416 = vector.load %arg15[%c0_217, %c0_218, %c0_219] : memref<2x8x32xf32, #tpu.memory_space<vmem>>, vector<2x8x32xf32>
      tpu.vector_store %arg15[%c0_217, %c0_218, %c0_219], %415 {strides = array<i32>} : memref<2x8x32xf32, #tpu.memory_space<vmem>>, vector<2x8x32xf32>,
    } else {
    }
    return
  }
  func.func @transform_0(%arg0: i32, %arg1: i32) -> (i32, i32, i32) {
    %c0_i32 = arith.constant 0 : i32
    %c0_i32_0 = arith.constant 0 : i32
    %c0_i32_1 = arith.constant 0 : i32
    return %arg0, %c0_i32, %c0_i32_0 : i32, i32, i32
  }
  func.func @transform_1(%arg0: i32, %arg1: i32) -> (i32, i32, i32) {
    %c0_i32 = arith.constant 0 : i32
    %c0_i32_0 = arith.constant 0 : i32
    %c0_i32_1 = arith.constant 0 : i32
    return %arg1, %c0_i32, %c0_i32_0 : i32, i32, i32
  }
  func.func @transform_2(%arg0: i32, %arg1: i32) -> (i32, i32, i32) {
    %c0_i32 = arith.constant 0 : i32
    %c0_i32_0 = arith.constant 0 : i32
    %c0_i32_1 = arith.constant 0 : i32
    return %arg1, %c0_i32, %c0_i32_0 : i32, i32, i32
  }
  func.func @transform_3(%arg0: i32, %arg1: i32) -> (i32, i32, i32) {
    %c0_i32 = arith.constant 0 : i32
    %c0_i32_0 = arith.constant 0 : i32
    %c0_i32_1 = arith.constant 0 : i32
    return %arg1, %c0_i32, %c0_i32_0 : i32, i32, i32
  }
  func.func @transform_4(%arg0: i32, %arg1: i32) -> (i32, i32, i32) {
    %c0_i32 = arith.constant 0 : i32
    %c0_i32_0 = arith.constant 0 : i32
    %c0_i32_1 = arith.constant 0 : i32
    return %arg1, %c0_i32, %c0_i32_0 : i32, i32, i32
  }
  func.func @transform_5(%arg0: i32, %arg1: i32) -> (i32, i32, i32) {
    %c0_i32 = arith.constant 0 : i32
    %c0_i32_0 = arith.constant 0 : i32
    %c0_i32_1 = arith.constant 0 : i32
    return %arg1, %c0_i32, %c0_i32_0 : i32, i32, i32
  }
  func.func @transform_6(%arg0: i32, %arg1: i32) -> (i32, i32, i32) {
    %c0_i32 = arith.constant 0 : i32
    %c0_i32_0 = arith.constant 0 : i32
    %c0_i32_1 = arith.constant 0 : i32
    return %arg1, %c0_i32, %c0_i32_0 : i32, i32, i32
  }
  func.func @transform_7(%arg0: i32, %arg1: i32) -> (i32, i32, i32) {
    %c0_i32 = arith.constant 0 : i32
    %c0_i32_0 = arith.constant 0 : i32
    %c0_i32_1 = arith.constant 0 : i32
    return %arg1, %c0_i32, %c0_i32_0 : i32, i32, i32
  }
  func.func @transform_8(%arg0: i32, %arg1: i32) -> (i32, i32, i32) {
    %c0_i32 = arith.constant 0 : i32
    %c0_i32_0 = arith.constant 0 : i32
    %c0_i32_1 = arith.constant 0 : i32
    return %arg1, %c0_i32, %c0_i32_0 : i32, i32, i32
  }
  func.func @transform_9(%arg0: i32, %arg1: i32) -> (i32, i32, i32) {
    %c0_i32 = arith.constant 0 : i32
    %c0_i32_0 = arith.constant 0 : i32
    %c0_i32_1 = arith.constant 0 : i32
    return %arg1, %c0_i32, %c0_i32_0 : i32, i32, i32
  }
  func.func @transform_10(%arg0: i32, %arg1: i32) -> (i32, i32, i32) {
    %c0_i32 = arith.constant 0 : i32
    %c0_i32_0 = arith.constant 0 : i32
    %c0_i32_1 = arith.constant 0 : i32
    return %arg1, %c0_i32, %c0_i32_0 : i32, i32, i32
  }
  func.func @transform_11(%arg0: i32, %arg1: i32) -> (i32, i32) {
    %c0_i32 = arith.constant 0 : i32
    %c0_i32_0 = arith.constant 0 : i32
    %c0_i32_1 = arith.constant 0 : i32
    return %c0_i32, %c0_i32_0 : i32, i32
  }
  func.func @transform_12(%arg0: i32, %arg1: i32) -> (i32, i32) {
    %c0_i32 = arith.constant 0 : i32
    %c0_i32_0 = arith.constant 0 : i32
    %c0_i32_1 = arith.constant 0 : i32
    return %c0_i32, %c0_i32_0 : i32, i32
  }
  func.func @transform_13(%arg0: i32, %arg1: i32) -> (i32, i32, i32) {
    %c0_i32 = arith.constant 0 : i32
    %c0_i32_0 = arith.constant 0 : i32
    %c0_i32_1 = arith.constant 0 : i32
    return %arg0, %c0_i32, %c0_i32_0 : i32, i32, i32
  }
}

</mosaic_0001>

<llo_original>
// kernel: mixer_model_forward.1
$region0: #{mixer_model_forward.1}
  #allocation0 [shape = 'u32[]', space=smem, size = 0x4, offset = 0x4, fixed_abs, tag = 'smem constant byte address 0x4 - core index']
  #allocation1 [shape = 'u32[144,128]{1,0:T(1,128)}', space=vmem, size = 0x12000, scoped, tag = 'internal scratch']
  #allocation2 [shape = 'f32[2,8,32]{2,1,0:T(8,128)}', space=vmem, size = 0x2000, scoped, tag = 'scratch operand']
  #allocation3 [shape = 'f32[8,16,64]{2,1,0:T(8,128)}', space=vmem, size = 0x10000, scoped, tag = 'scratch operand']
  #allocation4 [shape = 'f32[8,16,64]{2,1,0:T(8,128)}', space=vmem, size = 0x10000, scoped, tag = 'scratch operand']
  #allocation5 [shape = 'f32[16,64]{1,0:T(8,128)}', space=vmem, size = 0x2000, scoped, tag = 'scratch operand']
  #allocation6 [shape = 'f32[16,64]{1,0:T(8,128)}', space=vmem, size = 0x2000, scoped, tag = 'scratch operand']
  #allocation7 [shape = 'f32[16,16]{1,0:T(8,128)}', space=vmem, size = 0x2000, scoped, tag = 'scratch operand']
  #allocation8 [shape = 'f32[16,16]{1,0:T(8,128)}', space=vmem, size = 0x2000, scoped, tag = 'scratch operand']
  #allocation9 [shape = 'f32[16,64]{1,0:T(8,128)}', space=vmem, size = 0x2000, scoped, tag = 'scratch operand']
  %s0 = inlined_call_operand.hbm [shape: f32[2,8,32], index: 0, kind: input, shape index: {}, may-alias: {0,13}]
  %s1 = inlined_call_operand.vmem [shape: f32[2,1,32], index: 1, kind: input, shape index: {}]
  %s2 = inlined_call_operand.vmem [shape: f32[2,1,32], index: 2, kind: input, shape index: {}]
  %s3 = inlined_call_operand.vmem [shape: bf16[2,32,256], index: 3, kind: input, shape index: {}]
  %s4 = inlined_call_operand.vmem [shape: f32[2,4,64], index: 4, kind: input, shape index: {}]
  %s5 = inlined_call_operand.vmem [shape: f32[2,1,64], index: 5, kind: input, shape index: {}]
  %s6 = inlined_call_operand.hbm [shape: bf16[2,64,384], index: 6, kind: input, shape index: {}]
  %s7 = inlined_call_operand.vmem [shape: f32[2,1,64], index: 7, kind: input, shape index: {}]
  %s8 = inlined_call_operand.vmem [shape: f32[2,16,64], index: 8, kind: input, shape index: {}]
  %s9 = inlined_call_operand.vmem [shape: f32[2,1,64], index: 9, kind: input, shape index: {}]
  %s10 = inlined_call_operand.vmem [shape: bf16[2,64,32], index: 10, kind: input, shape index: {}]
  %s11 = inlined_call_operand.vmem [shape: f32[1,32], index: 11, kind: input, shape index: {}]
  %s12 = inlined_call_operand.vmem [shape: f32[1,32], index: 12, kind: input, shape index: {}]
  %s13 = inlined_call_operand.hbm [shape: f32[2,8,32], index: 13, kind: output, shape index: {}, may-alias: {0,13}]
  %s14 = sld [smem:[#allocation0]]
  $region101: #{mixer_model_forward.1} parent=0
    _
  %s16 = ssub.s32 1, %s14
  %s17 = scalar_select 0, %s16, %s14
  $region1: #{mixer_model_forward.1} parent=0
    #allocation10 [shape = 'u8[8192]{0}', space=vmem, size = 0x2000, scoped, tag = 'input window, operand 0, single buffered']
    #allocation11 [shape = 's32[2]{0}', space=sflag, size = 0x8, scoped, tag = 'scoped memory for mixer_model_forward.1']
    #allocation12 [shape = 's32[2]{0}', space=sflag, size = 0x8, scoped, tag = 'scoped memory for mixer_model_forward.1']
    #allocation13 [shape = 'u8[98304]{0}', space=vmem, size = 0x18000, scoped, tag = 'input window, operand 6']
    #allocation14 [shape = 's32[2]{0}', space=sflag, size = 0x8, scoped, tag = 'scoped memory for mixer_model_forward.1']
    #allocation15 [shape = 'u8[8192]{0}', space=vmem, size = 0x2000, scoped, tag = 'output window, operand 0, single buffered']
    %18 = vsyncpa [#allocation11], 0
    %19 = vsyncpa [#allocation14], 0
    %s20 = scalar_lea.sflag [#allocation14], 1
    %21 = vsyncpa %s20, 0
    %22 = vsyncpa [#allocation12], 0
    loop: start=0, step=1, limit=4
    $region2: #{mixer_model_forward.1} parent=1 // loop_pre_header
      _
    $region3: #{mixer_model_forward.1} parent=1 // loop_header
      %s24 = sphi 0, %s28
      %p25 = scmp.ge.s32.totalorder %s24, 4
      %s31 = sphi 0, %s43
      %s32 = sphi 0, %s39
      %s33 = sphi 0, %s31
      %s34 = sphi 0, %s32
      %s35 = sphi 0, %s33
      %s36 = sphi 0, %s34
      %s46 = sphi 0, %s48
      %s49 = sphi 0, %s46
      %s50 = sphi 0, %s49
      %s66 = sphi 0, %s50
      %s72 = sphi 0, %s74
      %s75 = sphi 0, %s72
      %s76 = sphi 0, %s75
      %s92 = sphi 0, %s76
      %s98 = sphi 0, %s100
      %s101 = sphi 0, %s98
      %s102 = sphi 0, %s101
      %s118 = sphi 0, %s102
      %s124 = sphi 0, %s126
      %s127 = sphi 0, %s124
      %s128 = sphi 0, %s127
      %s144 = sphi 0, %s128
      %s150 = sphi 0, %s152
      %s153 = sphi 0, %s150
      %s154 = sphi 0, %s153
      %s170 = sphi 0, %s154
      %s176 = sphi 0, %s178
      %s179 = sphi 0, %s176
      %s180 = sphi 0, %s179
      %s196 = sphi 0, %s180
      %s202 = sphi 0, %s204
      %s205 = sphi 0, %s202
      %s206 = sphi 0, %s205
      %s222 = sphi 0, %s206
      %s228 = sphi 0, %s230
      %s231 = sphi 0, %s228
      %s232 = sphi 0, %s231
      %s248 = sphi 0, %s232
      %s254 = sphi 0, %s256
      %s257 = sphi 0, %s254
      %s258 = sphi 0, %s257
      %s274 = sphi 0, %s258
      %s280 = sphi 0, %s282
      %s283 = sphi 0, %s280
      %s284 = sphi 0, %s283
      %s300 = sphi 0, %s284
      %s306 = sphi 0, %s308
      %s309 = sphi 0, %s306
      %s310 = sphi 0, %s309
      %s326 = sphi 0, %s310
      %s330 = sphi 0, %s330
      %s332 = sphi 0, %s330
      %s333 = sphi 0, %s332
      %s347 = sphi 0, %s333
      %s351 = sphi 0, %s351
      %s353 = sphi 0, %s351
      %s354 = sphi 0, %s353
      %s368 = sphi 0, %s354
      %s374 = sphi 0, %s376
      %s377 = sphi 0, %s374
      %s378 = sphi 0, %s377
      %s394 = sphi 0, %s378
    $region4: #{mixer_model_forward.1} parent=1 // loop_header_branch
      %27 = sbr.rel (%p25) target = $region8
    $region5: #{mixer_model_forward.1} parent=1 // loop_body
      %s29 = ssub.s32 %s24, 1
      %s30 = ssub.s32 %s24, 2
      %s37 = sadd.s32 1, %s32
      %p38 = scmp.ge.s32.totalorder %s37, 2
      %s39 = scalar_select %p38, 0, %s37
      %s40 = sadd.s32 1, %s31
      %s41 = scalar_select %p38, %s40, %s31
      %p42 = scmp.ge.s32.totalorder %s41, 1
      %s43 = scalar_select %p42, 0, %s41
      %s44 = ssub.s32 %s31, %s43
      %p45 = scmp.eq.s32.totalorder %s44, 0
      %s47 = sadd.s32 %s46, 1
      %s48 = scalar_select %p45, %s46, %s47
      %p51 = pneg %p45
      %p52 = scmp.eq.s32.totalorder %s24, 1
      %p53 = por %p51, %p52
      %p54 = scmp.ne.s32.totalorder %s46, %s49
      %p55 = scmp.eq.s32.totalorder %s24, 0
      %p56 = por %p54, %p55
      %p57 = scmp.ne.s32.totalorder %s46, %s49
      %p58 = scmp.eq.s32.totalorder %s29, 1
      %p59 = por %p57, %p58
      %p60 = scmp.ne.s32.totalorder %s49, %s50
      %p61 = scmp.eq.s32.totalorder %s29, 0
      %p62 = por %p60, %p61
      %p63 = scmp.ne.s32.totalorder %s49, %s50
      %p64 = scmp.eq.s32.totalorder %s30, 1
      %p65 = por %p63, %p64
      %p67 = scmp.ne.s32.totalorder %s50, %s66
      %p68 = scmp.eq.s32.totalorder %s30, 0
      %p69 = por %p67, %p68
      %s70 = ssub.s32 %s32, %s39
      %p71 = scmp.eq.s32.totalorder %s70, 0
      %s73 = sadd.s32 %s72, 1
      %s74 = scalar_select %p71, %s72, %s73
      %p77 = pneg %p71
      %p78 = scmp.eq.s32.totalorder %s24, 1
      %p79 = por %p77, %p78
      %p80 = scmp.ne.s32.totalorder %s72, %s75
      %p81 = scmp.eq.s32.totalorder %s24, 0
      %p82 = por %p80, %p81
      %p83 = scmp.ne.s32.totalorder %s72, %s75
      %p84 = scmp.eq.s32.totalorder %s29, 1
      %p85 = por %p83, %p84
      %p86 = scmp.ne.s32.totalorder %s75, %s76
      %p87 = scmp.eq.s32.totalorder %s29, 0
      %p88 = por %p86, %p87
      %p89 = scmp.ne.s32.totalorder %s75, %s76
      %p90 = scmp.eq.s32.totalorder %s30, 1
      %p91 = por %p89, %p90
      %p93 = scmp.ne.s32.totalorder %s76, %s92
      %p94 = scmp.eq.s32.totalorder %s30, 0
      %p95 = por %p93, %p94
      %s96 = ssub.s32 %s32, %s39
      %p97 = scmp.eq.s32.totalorder %s96, 0
      %s99 = sadd.s32 %s98, 1
      %s100 = scalar_select %p97, %s98, %s99
      %p103 = pneg %p97
      %p104 = scmp.eq.s32.totalorder %s24, 1
      %p105 = por %p103, %p104
      %p106 = scmp.ne.s32.totalorder %s98, %s101
      %p107 = scmp.eq.s32.totalorder %s24, 0
      %p108 = por %p106, %p107
      %p109 = scmp.ne.s32.totalorder %s98, %s101
      %p110 = scmp.eq.s32.totalorder %s29, 1
      %p111 = por %p109, %p110
      %p112 = scmp.ne.s32.totalorder %s101, %s102
      %p113 = scmp.eq.s32.totalorder %s29, 0
      %p114 = por %p112, %p113
      %p115 = scmp.ne.s32.totalorder %s101, %s102
      %p116 = scmp.eq.s32.totalorder %s30, 1
      %p117 = por %p115, %p116
      %p119 = scmp.ne.s32.totalorder %s102, %s118
      %p120 = scmp.eq.s32.totalorder %s30, 0
      %p121 = por %p119, %p120
      %s122 = ssub.s32 %s32, %s39
      %p123 = scmp.eq.s32.totalorder %s122, 0
      %s125 = sadd.s32 %s124, 1
      %s126 = scalar_select %p123, %s124, %s125
      %p129 = pneg %p123
      %p130 = scmp.eq.s32.totalorder %s24, 1
      %p131 = por %p129, %p130
      %p132 = scmp.ne.s32.totalorder %s124, %s127
      %p133 = scmp.eq.s32.totalorder %s24, 0
      %p134 = por %p132, %p133
      %p135 = scmp.ne.s32.totalorder %s124, %s127
      %p136 = scmp.eq.s32.totalorder %s29, 1
      %p137 = por %p135, %p136
      %p138 = scmp.ne.s32.totalorder %s127, %s128
      %p139 = scmp.eq.s32.totalorder %s29, 0
      %p140 = por %p138, %p139
      %p141 = scmp.ne.s32.totalorder %s127, %s128
      %p142 = scmp.eq.s32.totalorder %s30, 1
      %p143 = por %p141, %p142
      %p145 = scmp.ne.s32.totalorder %s128, %s144
      %p146 = scmp.eq.s32.totalorder %s30, 0
      %p147 = por %p145, %p146
      %s148 = ssub.s32 %s32, %s39
      %p149 = scmp.eq.s32.totalorder %s148, 0
      %s151 = sadd.s32 %s150, 1
      %s152 = scalar_select %p149, %s150, %s151
      %p155 = pneg %p149
      %p156 = scmp.eq.s32.totalorder %s24, 1
      %p157 = por %p155, %p156
      %p158 = scmp.ne.s32.totalorder %s150, %s153
      %p159 = scmp.eq.s32.totalorder %s24, 0
      %p160 = por %p158, %p159
      %p161 = scmp.ne.s32.totalorder %s150, %s153
      %p162 = scmp.eq.s32.totalorder %s29, 1
      %p163 = por %p161, %p162
      %p164 = scmp.ne.s32.totalorder %s153, %s154
      %p165 = scmp.eq.s32.totalorder %s29, 0
      %p166 = por %p164, %p165
      %p167 = scmp.ne.s32.totalorder %s153, %s154
      %p168 = scmp.eq.s32.totalorder %s30, 1
      %p169 = por %p167, %p168
      %p171 = scmp.ne.s32.totalorder %s154, %s170
      %p172 = scmp.eq.s32.totalorder %s30, 0
      %p173 = por %p171, %p172
      %s174 = ssub.s32 %s32, %s39
      %p175 = scmp.eq.s32.totalorder %s174, 0
      %s177 = sadd.s32 %s176, 1
      %s178 = scalar_select %p175, %s176, %s177
      %p181 = pneg %p175
      %p182 = scmp.eq.s32.totalorder %s24, 1
      %p183 = por %p181, %p182
      %p184 = scmp.ne.s32.totalorder %s176, %s179
      %p185 = scmp.eq.s32.totalorder %s24, 0
      %p186 = por %p184, %p185
      %p187 = scmp.ne.s32.totalorder %s176, %s179
      %p188 = scmp.eq.s32.totalorder %s29, 1
      %p189 = por %p187, %p188
      %p190 = scmp.ne.s32.totalorder %s179, %s180
      %p191 = scmp.eq.s32.totalorder %s29, 0
      %p192 = por %p190, %p191
      %p193 = scmp.ne.s32.totalorder %s179, %s180
      %p194 = scmp.eq.s32.totalorder %s30, 1
      %p195 = por %p193, %p194
      %p197 = scmp.ne.s32.totalorder %s180, %s196
      %p198 = scmp.eq.s32.totalorder %s30, 0
      %p199 = por %p197, %p198
      %s200 = ssub.s32 %s32, %s39
      %p201 = scmp.eq.s32.totalorder %s200, 0
      %s203 = sadd.s32 %s202, 1
      %s204 = scalar_select %p201, %s202, %s203
      %p207 = pneg %p201
      %p208 = scmp.eq.s32.totalorder %s24, 1
      %p209 = por %p207, %p208
      %p210 = scmp.ne.s32.totalorder %s202, %s205
      %p211 = scmp.eq.s32.totalorder %s24, 0
      %p212 = por %p210, %p211
      %p213 = scmp.ne.s32.totalorder %s202, %s205
      %p214 = scmp.eq.s32.totalorder %s29, 1
      %p215 = por %p213, %p214
      %p216 = scmp.ne.s32.totalorder %s205, %s206
      %p217 = scmp.eq.s32.totalorder %s29, 0
      %p218 = por %p216, %p217
      %p219 = scmp.ne.s32.totalorder %s205, %s206
      %p220 = scmp.eq.s32.totalorder %s30, 1
      %p221 = por %p219, %p220
      %p223 = scmp.ne.s32.totalorder %s206, %s222
      %p224 = scmp.eq.s32.totalorder %s30, 0
      %p225 = por %p223, %p224
      %s226 = ssub.s32 %s32, %s39
      %p227 = scmp.eq.s32.totalorder %s226, 0
      %s229 = sadd.s32 %s228, 1
      %s230 = scalar_select %p227, %s228, %s229
      %p233 = pneg %p227
      %p234 = scmp.eq.s32.totalorder %s24, 1
      %p235 = por %p233, %p234
      %p236 = scmp.ne.s32.totalorder %s228, %s231
      %p237 = scmp.eq.s32.totalorder %s24, 0
      %p238 = por %p236, %p237
      %p239 = scmp.ne.s32.totalorder %s228, %s231
      %p240 = scmp.eq.s32.totalorder %s29, 1
      %p241 = por %p239, %p240
      %p242 = scmp.ne.s32.totalorder %s231, %s232
      %p243 = scmp.eq.s32.totalorder %s29, 0
      %p244 = por %p242, %p243
      %p245 = scmp.ne.s32.totalorder %s231, %s232
      %p246 = scmp.eq.s32.totalorder %s30, 1
      %p247 = por %p245, %p246
      %p249 = scmp.ne.s32.totalorder %s232, %s248
      %p250 = scmp.eq.s32.totalorder %s30, 0
      %p251 = por %p249, %p250
      %s252 = ssub.s32 %s32, %s39
      %p253 = scmp.eq.s32.totalorder %s252, 0
      %s255 = sadd.s32 %s254, 1
      %s256 = scalar_select %p253, %s254, %s255
      %p259 = pneg %p253
      %p260 = scmp.eq.s32.totalorder %s24, 1
      %p261 = por %p259, %p260
      %p262 = scmp.ne.s32.totalorder %s254, %s257
      %p263 = scmp.eq.s32.totalorder %s24, 0
      %p264 = por %p262, %p263
      %p265 = scmp.ne.s32.totalorder %s254, %s257
      %p266 = scmp.eq.s32.totalorder %s29, 1
      %p267 = por %p265, %p266
      %p268 = scmp.ne.s32.totalorder %s257, %s258
      %p269 = scmp.eq.s32.totalorder %s29, 0
      %p270 = por %p268, %p269
      %p271 = scmp.ne.s32.totalorder %s257, %s258
      %p272 = scmp.eq.s32.totalorder %s30, 1
      %p273 = por %p271, %p272
      %p275 = scmp.ne.s32.totalorder %s258, %s274
      %p276 = scmp.eq.s32.totalorder %s30, 0
      %p277 = por %p275, %p276
      %s278 = ssub.s32 %s32, %s39
      %p279 = scmp.eq.s32.totalorder %s278, 0
      %s281 = sadd.s32 %s280, 1
      %s282 = scalar_select %p279, %s280, %s281
      %p285 = pneg %p279
      %p286 = scmp.eq.s32.totalorder %s24, 1
      %p287 = por %p285, %p286
      %p288 = scmp.ne.s32.totalorder %s280, %s283
      %p289 = scmp.eq.s32.totalorder %s24, 0
      %p290 = por %p288, %p289
      %p291 = scmp.ne.s32.totalorder %s280, %s283
      %p292 = scmp.eq.s32.totalorder %s29, 1
      %p293 = por %p291, %p292
      %p294 = scmp.ne.s32.totalorder %s283, %s284
      %p295 = scmp.eq.s32.totalorder %s29, 0
      %p296 = por %p294, %p295
      %p297 = scmp.ne.s32.totalorder %s283, %s284
      %p298 = scmp.eq.s32.totalorder %s30, 1
      %p299 = por %p297, %p298
      %p301 = scmp.ne.s32.totalorder %s284, %s300
      %p302 = scmp.eq.s32.totalorder %s30, 0
      %p303 = por %p301, %p302
      %s304 = ssub.s32 %s32, %s39
      %p305 = scmp.eq.s32.totalorder %s304, 0
      %s307 = sadd.s32 %s306, 1
      %s308 = scalar_select %p305, %s306, %s307
      %p311 = pneg %p305
      %p312 = scmp.eq.s32.totalorder %s24, 1
      %p313 = por %p311, %p312
      %p314 = scmp.ne.s32.totalorder %s306, %s309
      %p315 = scmp.eq.s32.totalorder %s24, 0
      %p316 = por %p314, %p315
      %p317 = scmp.ne.s32.totalorder %s306, %s309
      %p318 = scmp.eq.s32.totalorder %s29, 1
      %p319 = por %p317, %p318
      %p320 = scmp.ne.s32.totalorder %s309, %s310
      %p321 = scmp.eq.s32.totalorder %s29, 0
      %p322 = por %p320, %p321
      %p323 = scmp.ne.s32.totalorder %s309, %s310
      %p324 = scmp.eq.s32.totalorder %s30, 1
      %p325 = por %p323, %p324
      %p327 = scmp.ne.s32.totalorder %s310, %s326
      %p328 = scmp.eq.s32.totalorder %s30, 0
      %p329 = por %p327, %p328
      %s331 = sadd.s32 %s330, 1
      %p334 = scmp.eq.s32.totalorder %s24, 1
      %p335 = scmp.ne.s32.totalorder %s330, %s332
      %p336 = scmp.eq.s32.totalorder %s24, 0
      %p337 = por %p335, %p336
      %p338 = scmp.ne.s32.totalorder %s330, %s332
      %p339 = scmp.eq.s32.totalorder %s29, 1
      %p340 = por %p338, %p339
      %p341 = scmp.ne.s32.totalorder %s332, %s333
      %p342 = scmp.eq.s32.totalorder %s29, 0
      %p343 = por %p341, %p342
      %p344 = scmp.ne.s32.totalorder %s332, %s333
      %p345 = scmp.eq.s32.totalorder %s30, 1
      %p346 = por %p344, %p345
      %p348 = scmp.ne.s32.totalorder %s333, %s347
      %p349 = scmp.eq.s32.totalorder %s30, 0
      %p350 = por %p348, %p349
      %s352 = sadd.s32 %s351, 1
      %p355 = scmp.eq.s32.totalorder %s24, 1
      %p356 = scmp.ne.s32.totalorder %s351, %s353
      %p357 = scmp.eq.s32.totalorder %s24, 0
      %p358 = por %p356, %p357
      %p359 = scmp.ne.s32.totalorder %s351, %s353
      %p360 = scmp.eq.s32.totalorder %s29, 1
      %p361 = por %p359, %p360
      %p362 = scmp.ne.s32.totalorder %s353, %s354
      %p363 = scmp.eq.s32.totalorder %s29, 0
      %p364 = por %p362, %p363
      %p365 = scmp.ne.s32.totalorder %s353, %s354
      %p366 = scmp.eq.s32.totalorder %s30, 1
      %p367 = por %p365, %p366
      %p369 = scmp.ne.s32.totalorder %s354, %s368
      %p370 = scmp.eq.s32.totalorder %s30, 0
      %p371 = por %p369, %p370
      %s372 = ssub.s32 %s31, %s43
      %p373 = scmp.eq.s32.totalorder %s372, 0
      %s375 = sadd.s32 %s374, 1
      %s376 = scalar_select %p373, %s374, %s375
      %p379 = pneg %p373
      %p380 = scmp.eq.s32.totalorder %s24, 1
      %p381 = por %p379, %p380
      %p382 = scmp.ne.s32.totalorder %s374, %s377
      %p383 = scmp.eq.s32.totalorder %s24, 0
      %p384 = por %p382, %p383
      %p385 = scmp.ne.s32.totalorder %s374, %s377
      %p386 = scmp.eq.s32.totalorder %s29, 1
      %p387 = por %p385, %p386
      %p388 = scmp.ne.s32.totalorder %s377, %s378
      %p389 = scmp.eq.s32.totalorder %s29, 0
      %p390 = por %p388, %p389
      %p391 = scmp.ne.s32.totalorder %s377, %s378
      %p392 = scmp.eq.s32.totalorder %s30, 1
      %p393 = por %p391, %p392
      %p395 = scmp.ne.s32.totalorder %s378, %s394
      %p396 = scmp.eq.s32.totalorder %s30, 0
      %p397 = por %p395, %p396
      %p398 = scmp.le.s32.totalorder 1, %s24
      %p399 = scmp.lt.s32.totalorder %s24, 3
      %p400 = pnand %p398, %p399
      %p401 = pneg %p400
      // Predicated region
      $region9: #{mixer_model_forward.1} parent=5 // pred_check
        _
      $region10: #{mixer_model_forward.1} parent=5 // pred_check_branch
        %403 = sbr.rel (%p400) target = $region12
      $region11: #{mixer_model_forward.1} parent=5 // pred_region
        %s404 = ssub.s32 %s24, 1
        // Predicated region
        $region13: #{mixer_model_forward.1} parent=11 // pred_check
          %p405 = pneg %p62
        $region14: #{mixer_model_forward.1} parent=11 // pred_check_branch
          %407 = sbr.rel (%p405) target = $region16
        $region15: #{mixer_model_forward.1} parent=11 // pred_region
          %s408 = smul.u32 2, %s33
          %s410 = ssub.s32 256, 256
          %411 = vsyncadd [#allocation11], %s410
          %s412 = smul.addr %s408, 128
          %s413 = scalar_lea.hbm %s0, %s412
          %s414 = sshll.u32 [#allocation10], 4
          %s415 = int_to_ptr.vmem [resolvable:$true] %s414
          %420 = dma.hbm_to_vmem [thread:$0]  %s413, 256, %s415, [#allocation11], 128, 128, 8
        $region16: #{mixer_model_forward.1} parent=11 // pred_fallthru
          _
        // Predicated region
        $region17: #{mixer_model_forward.1} parent=11 // pred_check
          %p421 = pneg %p343
        $region18: #{mixer_model_forward.1} parent=11 // pred_check_branch
          %423 = sbr.rel (%p421) target = $region20
        $region19: #{mixer_model_forward.1} parent=11 // pred_region
          _
        $region20: #{mixer_model_forward.1} parent=11 // pred_fallthru
          _
        // Predicated region
        $region21: #{mixer_model_forward.1} parent=11 // pred_check
          %p424 = pneg %p364
        $region22: #{mixer_model_forward.1} parent=11 // pred_check_branch
          %426 = sbr.rel (%p424) target = $region24
        $region23: #{mixer_model_forward.1} parent=11 // pred_region
          _
        $region24: #{mixer_model_forward.1} parent=11 // pred_fallthru
          _
      $region12: #{mixer_model_forward.1} parent=5 // pred_fallthru
        _
      %p427 = scmp.lt.s32.totalorder %s24, 2
      // Predicated region
      $region25: #{mixer_model_forward.1} parent=5 // pred_check
        %p428 = pneg %p427
      $region26: #{mixer_model_forward.1} parent=5 // pred_check_branch
        %430 = sbr.rel (%p428) target = $region28
      $region27: #{mixer_model_forward.1} parent=5 // pred_region
        // Predicated region
        $region29: #{mixer_model_forward.1} parent=27 // pred_check
          %p431 = pneg %p82
        $region30: #{mixer_model_forward.1} parent=27 // pred_check_branch
          %433 = sbr.rel (%p431) target = $region32
        $region31: #{mixer_model_forward.1} parent=27 // pred_region
          %p434 = scmp.lt.s32.totalorder %s32, 1
          %s435 = scalar_select %p434, %s32, 1
          %s436 = scalar_lea.vmem %s1, %s435
        $region32: #{mixer_model_forward.1} parent=27 // pred_fallthru
          _
        // Predicated region
        $region33: #{mixer_model_forward.1} parent=27 // pred_check
          %p437 = pneg %p108
        $region34: #{mixer_model_forward.1} parent=27 // pred_check_branch
          %439 = sbr.rel (%p437) target = $region36
        $region35: #{mixer_model_forward.1} parent=27 // pred_region
          %p440 = scmp.lt.s32.totalorder %s32, 1
          %s441 = scalar_select %p440, %s32, 1
          %s442 = scalar_lea.vmem %s2, %s441
        $region36: #{mixer_model_forward.1} parent=27 // pred_fallthru
          _
        // Predicated region
        $region37: #{mixer_model_forward.1} parent=27 // pred_check
          %p443 = pneg %p134
        $region38: #{mixer_model_forward.1} parent=27 // pred_check_branch
          %445 = sbr.rel (%p443) target = $region40
        $region39: #{mixer_model_forward.1} parent=27 // pred_region
          %p446 = scmp.lt.s32.totalorder %s32, 1
          %s447 = scalar_select %p446, %s32, 1
          %s448 = smul.addr %s447, 8
          %s449 = smul.addr %s448, 4
          %s450 = scalar_lea.vmem %s3, %s449
        $region40: #{mixer_model_forward.1} parent=27 // pred_fallthru
          _
        // Predicated region
        $region41: #{mixer_model_forward.1} parent=27 // pred_check
          %p451 = pneg %p160
        $region42: #{mixer_model_forward.1} parent=27 // pred_check_branch
          %453 = sbr.rel (%p451) target = $region44
        $region43: #{mixer_model_forward.1} parent=27 // pred_region
          %p454 = scmp.lt.s32.totalorder %s32, 1
          %s455 = scalar_select %p454, %s32, 1
          %s456 = smul.addr %s455, 4
          %s457 = scalar_lea.vmem %s4, %s456
        $region44: #{mixer_model_forward.1} parent=27 // pred_fallthru
          _
        // Predicated region
        $region45: #{mixer_model_forward.1} parent=27 // pred_check
          %p458 = pneg %p186
        $region46: #{mixer_model_forward.1} parent=27 // pred_check_branch
          %460 = sbr.rel (%p458) target = $region48
        $region47: #{mixer_model_forward.1} parent=27 // pred_region
          %p461 = scmp.lt.s32.totalorder %s32, 1
          %s462 = scalar_select %p461, %s32, 1
          %s463 = scalar_lea.vmem %s5, %s462
        $region48: #{mixer_model_forward.1} parent=27 // pred_fallthru
          _
        // Predicated region
        $region49: #{mixer_model_forward.1} parent=27 // pred_check
          %p464 = pneg %p212
        $region50: #{mixer_model_forward.1} parent=27 // pred_check_branch
          %466 = sbr.rel (%p464) target = $region52
        $region51: #{mixer_model_forward.1} parent=27 // pred_region
          %s467 = sand.u32 %s202, 1
          %s468 = scalar_lea.sflag [#allocation14], %s467
          %s469 = sand.u32 %s202, 1
          %s470 = smul.addr %s469, 96
          %s471 = scalar_lea.vmem [#allocation13], %s470
          %s473 = ssub.s32 1536, 1536
          %474 = vsyncadd %s468, %s473
          %s475 = smul.addr %s32, 24
          %s476 = smul.addr %s475, 64
          %s477 = scalar_lea.hbm %s6, %s476
          %s478 = sshll.u32 %s471, 4
          %s479 = int_to_ptr.vmem [resolvable:$true] %s478
          %484 = dma.hbm_to_vmem [thread:$0]  %s477, 1536, %s479, %s468, 192, 192, 12
        $region52: #{mixer_model_forward.1} parent=27 // pred_fallthru
          _
        // Predicated region
        $region53: #{mixer_model_forward.1} parent=27 // pred_check
          %p485 = pneg %p238
        $region54: #{mixer_model_forward.1} parent=27 // pred_check_branch
          %487 = sbr.rel (%p485) target = $region56
        $region55: #{mixer_model_forward.1} parent=27 // pred_region
          %p488 = scmp.lt.s32.totalorder %s32, 1
          %s489 = scalar_select %p488, %s32, 1
          %s490 = scalar_lea.vmem %s7, %s489
        $region56: #{mixer_model_forward.1} parent=27 // pred_fallthru
          _
        // Predicated region
        $region57: #{mixer_model_forward.1} parent=27 // pred_check
          %p491 = pneg %p264
        $region58: #{mixer_model_forward.1} parent=27 // pred_check_branch
          %493 = sbr.rel (%p491) target = $region60
        $region59: #{mixer_model_forward.1} parent=27 // pred_region
          %p494 = scmp.lt.s32.totalorder %s32, 1
          %s495 = scalar_select %p494, %s32, 1
          %s496 = smul.addr %s495, 2
          %s497 = smul.addr %s496, 8
          %s498 = scalar_lea.vmem %s8, %s497
        $region60: #{mixer_model_forward.1} parent=27 // pred_fallthru
          _
        // Predicated region
        $region61: #{mixer_model_forward.1} parent=27 // pred_check
          %p499 = pneg %p290
        $region62: #{mixer_model_forward.1} parent=27 // pred_check_branch
          %501 = sbr.rel (%p499) target = $region64
        $region63: #{mixer_model_forward.1} parent=27 // pred_region
          %p502 = scmp.lt.s32.totalorder %s32, 1
          %s503 = scalar_select %p502, %s32, 1
          %s504 = scalar_lea.vmem %s9, %s503
        $region64: #{mixer_model_forward.1} parent=27 // pred_fallthru
          _
        // Predicated region
        $region65: #{mixer_model_forward.1} parent=27 // pred_check
          %p505 = pneg %p316
        $region66: #{mixer_model_forward.1} parent=27 // pred_check_branch
          %507 = sbr.rel (%p505) target = $region68
        $region67: #{mixer_model_forward.1} parent=27 // pred_region
          %p508 = scmp.lt.s32.totalorder %s32, 1
          %s509 = scalar_select %p508, %s32, 1
          %s510 = smul.addr %s509, 8
          %s511 = smul.addr %s510, 4
          %s512 = scalar_lea.vmem %s10, %s511
        $region68: #{mixer_model_forward.1} parent=27 // pred_fallthru
          _
      $region28: #{mixer_model_forward.1} parent=5 // pred_fallthru
        _
      %p513 = scmp.le.s32.totalorder 1, %s24
      %p514 = scmp.lt.s32.totalorder %s24, 3
      %p515 = pnand %p513, %p514
      %p516 = pneg %p515
      // Predicated region
      $region69: #{mixer_model_forward.1} parent=5 // pred_check
        _
      $region70: #{mixer_model_forward.1} parent=5 // pred_check_branch
        %518 = sbr.rel (%p515) target = $region72
      $region71: #{mixer_model_forward.1} parent=5 // pred_region
        %s519 = ssub.s32 %s24, 1
        // Predicated region
        $region73: #{mixer_model_forward.1} parent=71 // pred_check
          %p520 = pneg %p62
        $region74: #{mixer_model_forward.1} parent=71 // pred_check_branch
          %522 = sbr.rel (%p520) target = $region76
        $region75: #{mixer_model_forward.1} parent=71 // pred_region
          %523 = dma.done [#allocation11], 256
        $region76: #{mixer_model_forward.1} parent=71 // pred_fallthru
          _
        %s524 = sand.u32 %s205, 1
        %s525 = scalar_lea.sflag [#allocation14], %s524
        %s526 = sand.u32 %s205, 1
        %s527 = smul.addr %s526, 96
        %s528 = scalar_lea.vmem [#allocation13], %s527
        // Predicated region
        $region77: #{mixer_model_forward.1} parent=71 // pred_check
          %p529 = pneg %p218
        $region78: #{mixer_model_forward.1} parent=71 // pred_check_branch
          %531 = sbr.rel (%p529) target = $region80
        $region79: #{mixer_model_forward.1} parent=71 // pred_region
          %532 = dma.done %s525, 1536
        $region80: #{mixer_model_forward.1} parent=71 // pred_fallthru
          _
        %p533 = pneg %p62
        %p534 = pneg %p59
        %p535 = scmp.lt.s32.totalorder %s34, 1
        %s536 = scalar_select %p535, %s34, 1
        %s537 = scalar_lea.vmem %s1, %s536
        %p538 = pneg %p88
        %p539 = pneg %p85
        %p540 = scmp.lt.s32.totalorder %s34, 1
        %s541 = scalar_select %p540, %s34, 1
        %s542 = scalar_lea.vmem %s2, %s541
        %p543 = pneg %p114
        %p544 = pneg %p111
        %p545 = scmp.lt.s32.totalorder %s34, 1
        %s546 = scalar_select %p545, %s34, 1
        %s547 = smul.addr %s546, 8
        %s548 = smul.addr %s547, 4
        %s549 = scalar_lea.vmem %s3, %s548
        %p550 = pneg %p140
        %p551 = pneg %p137
        %p552 = scmp.lt.s32.totalorder %s34, 1
        %s553 = scalar_select %p552, %s34, 1
        %s554 = smul.addr %s553, 4
        %s555 = scalar_lea.vmem %s4, %s554
        %p556 = pneg %p166
        %p557 = pneg %p163
        %p558 = scmp.lt.s32.totalorder %s34, 1
        %s559 = scalar_select %p558, %s34, 1
        %s560 = scalar_lea.vmem %s5, %s559
        %p561 = pneg %p192
        %p562 = pneg %p189
        %s563 = sand.u32 %s205, 1
        %s564 = scalar_lea.sflag [#allocation14], %s563
        %s565 = sand.u32 %s205, 1
        %s566 = smul.addr %s565, 96
        %s567 = scalar_lea.vmem [#allocation13], %s566
        %p568 = pneg %p218
        %p569 = pneg %p215
        %p570 = scmp.lt.s32.totalorder %s34, 1
        %s571 = scalar_select %p570, %s34, 1
        %s572 = scalar_lea.vmem %s7, %s571
        %p573 = pneg %p244
        %p574 = pneg %p241
        %p575 = scmp.lt.s32.totalorder %s34, 1
        %s576 = scalar_select %p575, %s34, 1
        %s577 = smul.addr %s576, 2
        %s578 = smul.addr %s577, 8
        %s579 = scalar_lea.vmem %s8, %s578
        %p580 = pneg %p270
        %p581 = pneg %p267
        %p582 = scmp.lt.s32.totalorder %s34, 1
        %s583 = scalar_select %p582, %s34, 1
        %s584 = scalar_lea.vmem %s9, %s583
        %p585 = pneg %p296
        %p586 = pneg %p293
        %p587 = scmp.lt.s32.totalorder %s34, 1
        %s588 = scalar_select %p587, %s34, 1
        %s589 = smul.addr %s588, 8
        %s590 = smul.addr %s589, 4
        %s591 = scalar_lea.vmem %s10, %s590
        %p592 = pneg %p322
        %p593 = pneg %p319
        %p594 = pneg %p343
        %p595 = pneg %p340
        %p596 = pneg %p364
        %p597 = pneg %p361
        %p598 = pneg %p390
        %p599 = pneg %p387
        %s600 = smul.u32 2, %s33
        %p601 = scmp.lt.s32.totalorder %s34, 1
        %s602 = scalar_select %p601, %s34, 1
        %s603 = scalar_lea.vmem %s1, %s602
        %p604 = scmp.lt.s32.totalorder %s34, 1
        %s605 = scalar_select %p604, %s34, 1
        %s606 = scalar_lea.vmem %s2, %s605
        %p607 = scmp.lt.s32.totalorder %s34, 1
        %s608 = scalar_select %p607, %s34, 1
        %s609 = smul.addr %s608, 8
        %s610 = smul.addr %s609, 4
        %s611 = scalar_lea.vmem %s3, %s610
        %p612 = scmp.lt.s32.totalorder %s34, 1
        %s613 = scalar_select %p612, %s34, 1
        %s614 = smul.addr %s613, 4
        %s615 = scalar_lea.vmem %s4, %s614
        %p616 = scmp.lt.s32.totalorder %s34, 1
        %s617 = scalar_select %p616, %s34, 1
        %s618 = scalar_lea.vmem %s5, %s617
        %p619 = scmp.lt.s32.totalorder %s34, 1
        %s620 = scalar_select %p619, %s34, 1
        %s621 = scalar_lea.vmem %s7, %s620
        %p622 = scmp.lt.s32.totalorder %s34, 1
        %s623 = scalar_select %p622, %s34, 1
        %s624 = smul.addr %s623, 2
        %s625 = smul.addr %s624, 8
        %s626 = scalar_lea.vmem %s8, %s625
        %p627 = scmp.lt.s32.totalorder %s34, 1
        %s628 = scalar_select %p627, %s34, 1
        %s629 = scalar_lea.vmem %s9, %s628
        %p630 = scmp.lt.s32.totalorder %s34, 1
        %s631 = scalar_select %p630, %s34, 1
        %s632 = smul.addr %s631, 8
        %s633 = smul.addr %s632, 4
        %s634 = scalar_lea.vmem %s10, %s633
        %s635 = smul.u32 2, %s33
        %p637 = scmp.eq.s32.totalorder %s34, 0
        // Predicated region
        $region81: #{mixer_model_forward.1} parent=71 // pred_check
          %p638 = pneg %p637
        $region82: #{mixer_model_forward.1} parent=71 // pred_check_branch
          %640 = sbr.rel (%p638) target = $region84
        $region83: #{mixer_model_forward.1} parent=71 // pred_region
          %v641 = vld [vmem:[#allocation10] sm:$0xff]
          %v642 = vld [vmem:[#allocation10 + $0x8] sm:$0xff]
          %vm643 = vcmask 261120
          %644 = vst.msk [vmem:[#allocation2] sm:$0xff] %vm643, %v641
          %645 = vst.msk [vmem:[#allocation2 + $0x8] sm:$0xff] %vm643, %v642
        $region84: #{mixer_model_forward.1} parent=71 // pred_fallthru
          _
        %v646 = vld [vmem:[#allocation2] sm:$0xff]
        %v647 = vld [vmem:[#allocation2 + $0x8] sm:$0xff]
        %v648 = vld [vmem:[%s603] sm:$0x1]
        %v649 = vld [vmem:[%s606] sm:$0x1]
        %vm650 = vcmask 261120
        %v651 = vsel %vm650, %v646, 0.0
        %652 = vadd.xlane.f32.xlu0 %v651
        %v653 = vpop.xlane.xlu0 %652
        %v654 = vsel %vm650, %v647, 0.0
        %655 = vadd.xlane.f32.xlu0 %v654
        %v656 = vpop.xlane.xlu0 %655
        %v657 = vrcp.pop 32.0
        %v658 = vmul.f32 %v653, %v657
        %v659 = vmul.f32 %v656, %v657
        %v660 = vsub.f32 %v646, %v658
        %v661 = vsub.f32 %v647, %v659
        %v662 = vmul.f32 %v660, %v660
        %v663 = vmul.f32 %v661, %v661
        %v664 = vsel %vm650, %v662, 0.0
        %665 = vadd.xlane.f32.xlu0 %v664
        %v666 = vpop.xlane.xlu0 %665
        %v667 = vsel %vm650, %v663, 0.0
        %668 = vadd.xlane.f32.xlu0 %v667
        %v669 = vpop.xlane.xlu0 %668
        %v670 = vmul.f32 %v666, %v657
        %v671 = vmul.f32 %v669, %v657
        %v672 = vadd.f32 %v670, 1e-05
        %v673 = vadd.f32 %v671, 1e-05
        %v674 = vrsqrt.pop %v672
        %v675 = vrsqrt.pop %v673
        %v676 = vmul.f32 %v660, %v674
        %v677 = vmul.f32 %v661, %v675
        %v679 = vlaneseq
        %v680 = vshrl.u32 %v679, 7
        %v681 = vsub.s32 0, %v680
        %v682 = vrot.slane %v648, %v681
        %v684 = vmul.f32 %v676, %v682
        %v685 = vmul.f32 %v677, %v682
        %v687 = vlaneseq
        %v688 = vshrl.u32 %v687, 7
        %v689 = vsub.s32 0, %v688
        %v690 = vrot.slane %v649, %v689
        %v692 = vadd.f32 %v684, %v690
        %v693 = vadd.f32 %v685, %v690
        %v694 = vpack.c.bf16 %v693, %v692
        %v695 = vld [vmem:[%s611] sm:$0xff]
        %v696 = vld [vmem:[%s611 + $0x8] sm:$0xff]
        %v697 = vld [vmem:[%s611 + $0x10] sm:$0xff]
        %v698 = vld [vmem:[%s611 + $0x18] sm:$0xff]
        %v703 = vunpack.c.l.b16 %v695
        %v704 = vunpack.c.h.b16 %v695
        %v705 = vunpack.c.l.b16 %v696
        %v706 = vunpack.c.h.b16 %v696
        %v707 = vunpack.c.l.b16 %v697
        %v708 = vunpack.c.h.b16 %v697
        %v709 = vunpack.c.l.b16 %v698
        %v710 = vunpack.c.h.b16 %v698
        %v711 = vpack.c.b16 %v705, %v703
        %v712 = vpack.c.b16 %v706, %v704
        %v713 = vpack.c.b16 %v709, %v707
        %v714 = vpack.c.b16 %v710, %v708
        %v720 = vsel %vm650, %v694, 0
        %722 = vmatprep.subr.bf16.mxu0 %v712
        %723 = vmatpush1.bf16.msra.mxu0 %v711
        %724 = vmatprep.subr.bf16.mxu0 %v714
        %725 = vmatpush1.bf16.msra.mxu0 %v713
        %726 = vmatprep.subr.bf16.mxu0 0
        %727 = vmatpush1.bf16.msra.mxu0 0
        %728 = vmatprep.subr.bf16.mxu0 0
        %729 = vmatpush1.bf16.msra.mxu0 0
        %730 = vmatprep.subr.bf16.mxu0 0
        %731 = vmatpush1.bf16.msra.mxu0 0
        %732 = vmatprep.subr.bf16.mxu0 0
        %733 = vmatpush1.bf16.msra.mxu0 0
        %734 = vmatprep.subr.bf16.mxu0 0
        %735 = vmatpush1.bf16.msra.mxu0 0
        %736 = vmatprep.subr.bf16.mxu0 0
        %737 = vmatpush1.bf16.msra.mxu0 0
        %738 = vmatprep.subr.bf16.mxu0 0
        %739 = vmatpush1.bf16.msra.mxu0 0
        %740 = vmatprep.subr.bf16.mxu0 0
        %741 = vmatpush1.bf16.msra.mxu0 0
        %742 = vmatprep.subr.bf16.mxu0 0
        %743 = vmatpush1.bf16.msra.mxu0 0
        %744 = vmatprep.subr.bf16.mxu0 0
        %745 = vmatpush1.bf16.msra.mxu0 0
        %746 = vmatprep.subr.bf16.mxu0 0
        %747 = vmatpush1.bf16.msra.mxu0 0
        %748 = vmatprep.subr.bf16.mxu0 0
        %749 = vmatpush1.bf16.msra.mxu0 0
        %750 = vmatprep.subr.bf16.mxu0 0
        %751 = vmatpush1.bf16.msra.mxu0 0
        %752 = vmatprep.subr.bf16.mxu0 0
        %753 = vmatpush1.bf16.msra.mxu0 0
        %754 = vmatprep.mubr.bf16.mxu0 0
        %755 = vmatmul.mubr.bf16.gmra.mrb[0].mxu0 %v720
        %v756 = vpop.f32.mrb[0].mxu0
        %v757 = vadd.f32 0.0, %v756
        %v758 = vpop.f32.mrb[0].mxu0
        %v759 = vadd.f32 0.0, %v758
        %v760 = vpop.f32.mrb[0].mxu0
        %v761 = vadd.f32 0.0, %v760
        %v762 = vpop.f32.mrb[0].mxu0
        %v763 = vadd.f32 0.0, %v762
        %764 = vdwg.mxu0
        %v765 = vlaneseq
        %v766 = vshrl.u32 %v765, 7
        %v767 = vadd.s32 %v766, 8
        %vm768 = vcmp.lt.s32.totalorder %v766, 0
        %v769 = vsub.s32 0, %v766
        %v770 = vsel %vm768, %v769, %v766
        %v771 = vshrl.u32 %v770, 3
        %v772 = vand.u32 %v770, 7
        %v773 = vsub.s32 0, %v772
        %v774 = vsel %vm768, %v773, %v772
        %vm775 = vcmp.lt.s32.totalorder %v767, 0
        %v776 = vsub.s32 0, %v767
        %v777 = vsel %vm775, %v776, %v767
        %v778 = vshrl.u32 %v777, 3
        %v779 = vand.u32 %v777, 7
        %v780 = vsub.s32 0, %v779
        %v781 = vsel %vm775, %v780, %v779
        %vm782 = vcmp.ne.s32.totalorder %v774, 0
        %vm783 = vcmp.ne.s32.totalorder %v781, 0
        %vm784 = vcmp.lt.s32.totalorder %v774, 0
        %vm785 = vcmp.lt.s32.totalorder %v781, 0
        %vm786 = vmand %vm784, %vm782
        %vm787 = vmand %vm785, %vm783
        %v788 = vadd.s32 %v774, 8
        %v789 = vadd.s32 %v781, 8
        %v790 = vsel %vm786, %v788, %v774
        %v791 = vsel %vm787, %v789, %v781
        %v792 = vld [vmem:[%s618] sm:$0x1]
        %v793 = vld [vmem:[%s615 + $0x3] sm:$0x1]
        %v794 = vlaneseq
        %v795 = vshrl.u32 %v794, 7
        %v796 = vsub.s32 0, %v795
        %v797 = vrot.slane %v793, %v796
        %v798 = vmul.f32 %v797, %v757
        %v799 = vmul.f32 %v797, %v761
        %v801 = vlaneseq
        %v802 = vshrl.u32 %v801, 7
        %v803 = vsub.s32 0, %v802
        %v804 = vrot.slane %v792, %v803
        %v806 = vadd.f32 %v804, %v798
        %v807 = vadd.f32 %v804, %v799
        %v808 = vrot.slane %v757, 7
        %v809 = vrot.slane %v761, 7
        %vm810 = vcmp.lt.s32.totalorder %v766, 1
        %v811 = vsel %vm810, %v808, %v809
        %v812 = vsel %vm810, %v809, %v808
        %vm813 = vcmp.ge.s32.totalorder %v790, 1
        %vm814 = vcmp.ge.s32.totalorder %v791, 1
        %v815 = vsel %vm813, %v812, 0.0
        %v816 = vsel %vm814, %v811, 0.0
        %v817 = vld [vmem:[%s615 + $0x2] sm:$0x1]
        %v818 = vlaneseq
        %v819 = vshrl.u32 %v818, 7
        %v820 = vsub.s32 0, %v819
        %v821 = vrot.slane %v817, %v820
        %v822 = vmul.f32 %v821, %v815
        %v823 = vmul.f32 %v821, %v816
        %v824 = vadd.f32 %v806, %v822
        %v825 = vadd.f32 %v807, %v823
        %v826 = vrot.slane %v757, 6
        %v827 = vrot.slane %v761, 6
        %vm828 = vcmp.lt.s32.totalorder %v766, 2
        %v829 = vsel %vm828, %v826, %v827
        %v830 = vsel %vm828, %v827, %v826
        %vm831 = vcmp.ge.s32.totalorder %v790, 2
        %vm832 = vcmp.ge.s32.totalorder %v791, 2
        %v833 = vsel %vm831, %v830, 0.0
        %v834 = vsel %vm832, %v829, 0.0
        %v835 = vld [vmem:[%s615 + $0x1] sm:$0x1]
        %v836 = vlaneseq
        %v837 = vshrl.u32 %v836, 7
        %v838 = vsub.s32 0, %v837
        %v839 = vrot.slane %v835, %v838
        %v840 = vmul.f32 %v839, %v833
        %v841 = vmul.f32 %v839, %v834
        %v842 = vadd.f32 %v824, %v840
        %v843 = vadd.f32 %v825, %v841
        %v844 = vrot.slane %v757, 5
        %v845 = vrot.slane %v761, 5
        %vm846 = vcmp.lt.s32.totalorder %v766, 3
        %v847 = vsel %vm846, %v844, %v845
        %v848 = vsel %vm846, %v845, %v844
        %vm849 = vcmp.ge.s32.totalorder %v790, 3
        %vm850 = vcmp.ge.s32.totalorder %v791, 3
        %v851 = vsel %vm849, %v848, 0.0
        %v852 = vsel %vm850, %v847, 0.0
        %v853 = vld [vmem:[%s615] sm:$0x1]
        %v854 = vlaneseq
        %v855 = vshrl.u32 %v854, 7
        %v856 = vsub.s32 0, %v855
        %v857 = vrot.slane %v853, %v856
        %v858 = vmul.f32 %v857, %v851
        %v859 = vmul.f32 %v857, %v852
        %v860 = vadd.f32 %v842, %v858
        %v861 = vadd.f32 %v843, %v859
        %v862 = vxor.u32 %v860, 2147483648
        %v863 = vxor.u32 %v861, 2147483648
        %v864 = vmul.f32 %v862, 1.442695
        %v865 = vpow.pop %v864
        %v866 = vmul.f32 %v863, 1.442695
        %v867 = vpow.pop %v866
        %v868 = vadd.f32 %v865, 1.0
        %v869 = vadd.f32 %v867, 1.0
        %v870 = vrcp.pop %v868
        %v871 = vmul.f32 1.0, %v870
        %v872 = vrcp.pop %v869
        %v873 = vmul.f32 1.0, %v872
        %v874 = vmul.f32 %v860, %v871
        %v875 = vmul.f32 %v861, %v873
        %v876 = vpack.c.bf16 %v875, %v874
        %v877 = vld [vmem:[%s528] sm:$0xff]
        %v878 = vld [vmem:[%s528 + $0x8] sm:$0xf]
        %v879 = vld [vmem:[%s528 + $0xc] sm:$0xff]
        %v880 = vld [vmem:[%s528 + $0x14] sm:$0xf]
        %v881 = vld [vmem:[%s528 + $0x18] sm:$0xff]
        %v882 = vld [vmem:[%s528 + $0x20] sm:$0xf]
        %v883 = vld [vmem:[%s528 + $0x24] sm:$0xff]
        %v884 = vld [vmem:[%s528 + $0x2c] sm:$0xf]
        %v885 = vld [vmem:[%s528 + $0x30] sm:$0xff]
        %v886 = vld [vmem:[%s528 + $0x38] sm:$0xf]
        %v887 = vld [vmem:[%s528 + $0x3c] sm:$0xff]
        %v888 = vld [vmem:[%s528 + $0x44] sm:$0xf]
        %v889 = vld [vmem:[%s528 + $0x48] sm:$0xff]
        %v890 = vld [vmem:[%s528 + $0x50] sm:$0xf]
        %v891 = vld [vmem:[%s528 + $0x54] sm:$0xff]
        %v892 = vld [vmem:[%s528 + $0x5c] sm:$0xf]
        %v909 = vunpack.c.l.b16 %v877
        %v910 = vunpack.c.h.b16 %v877
        %v911 = vunpack.c.l.b16 %v878
        %v912 = vunpack.c.l.b16 %v879
        %v913 = vunpack.c.h.b16 %v879
        %v914 = vunpack.c.l.b16 %v880
        %v915 = vunpack.c.l.b16 %v881
        %v916 = vunpack.c.h.b16 %v881
        %v917 = vunpack.c.l.b16 %v882
        %v918 = vunpack.c.l.b16 %v883
        %v919 = vunpack.c.h.b16 %v883
        %v920 = vunpack.c.l.b16 %v884
        %v921 = vunpack.c.l.b16 %v885
        %v922 = vunpack.c.h.b16 %v885
        %v923 = vunpack.c.l.b16 %v886
        %v924 = vunpack.c.l.b16 %v887
        %v925 = vunpack.c.h.b16 %v887
        %v926 = vunpack.c.l.b16 %v888
        %v927 = vunpack.c.l.b16 %v889
        %v928 = vunpack.c.h.b16 %v889
        %v929 = vunpack.c.l.b16 %v890
        %v930 = vunpack.c.l.b16 %v891
        %v931 = vunpack.c.h.b16 %v891
        %v932 = vunpack.c.l.b16 %v892
        %v933 = vpack.c.b16 %v912, %v909
        %v934 = vpack.c.b16 %v913, %v910
        %v935 = vpack.c.b16 %v914, %v911
        %v936 = vpack.c.b16 %v918, %v915
        %v937 = vpack.c.b16 %v919, %v916
        %v938 = vpack.c.b16 %v920, %v917
        %v939 = vpack.c.b16 %v924, %v921
        %v940 = vpack.c.b16 %v925, %v922
        %v941 = vpack.c.b16 %v926, %v923
        %v942 = vpack.c.b16 %v930, %v927
        %v943 = vpack.c.b16 %v931, %v928
        %v944 = vpack.c.b16 %v932, %v929
        %vm957 = vcmask 523264
        %v959 = vsel %vm957, %v876, 0
        %961 = vmatprep.subr.bf16.mxu0 %v934
        %962 = vmatpush1.bf16.msra.mxu0 %v933
        %963 = vmatprep.subr.bf16.mxu0 %v937
        %964 = vmatpush1.bf16.msra.mxu0 %v936
        %965 = vmatprep.subr.bf16.mxu0 %v940
        %966 = vmatpush1.bf16.msra.mxu0 %v939
        %967 = vmatprep.subr.bf16.mxu0 %v943
        %968 = vmatpush1.bf16.msra.mxu0 %v942
        %969 = vmatprep.subr.bf16.mxu0 0
        %970 = vmatpush1.bf16.msra.mxu0 0
        %971 = vmatprep.subr.bf16.mxu0 0
        %972 = vmatpush1.bf16.msra.mxu0 0
        %973 = vmatprep.subr.bf16.mxu0 0
        %974 = vmatpush1.bf16.msra.mxu0 0
        %975 = vmatprep.subr.bf16.mxu0 0
        %976 = vmatpush1.bf16.msra.mxu0 0
        %977 = vmatprep.subr.bf16.mxu0 0
        %978 = vmatpush1.bf16.msra.mxu0 0
        %979 = vmatprep.subr.bf16.mxu0 0
        %980 = vmatpush1.bf16.msra.mxu0 0
        %981 = vmatprep.subr.bf16.mxu0 0
        %982 = vmatpush1.bf16.msra.mxu0 0
        %983 = vmatprep.subr.bf16.mxu0 0
        %984 = vmatpush1.bf16.msra.mxu0 0
        %985 = vmatprep.subr.bf16.mxu0 0
        %986 = vmatpush1.bf16.msra.mxu0 0
        %987 = vmatprep.subr.bf16.mxu0 0
        %988 = vmatpush1.bf16.msra.mxu0 0
        %989 = vmatprep.subr.bf16.mxu0 0
        %990 = vmatpush1.bf16.msra.mxu0 0
        %991 = vmatprep.subr.bf16.mxu0 0
        %992 = vmatpush1.bf16.msra.mxu0 0
        %993 = vmatprep.mubr.bf16.mxu0 0
        %994 = vmatmul.mubr.bf16.gmra.mrb[0].mxu0 %v959
        %v995 = vpop.f32.mrb[0].mxu0
        %v996 = vadd.f32 0.0, %v995
        %v997 = vpop.f32.mrb[0].mxu0
        %v998 = vadd.f32 0.0, %v997
        %v999 = vpop.f32.mrb[0].mxu0
        %v1000 = vadd.f32 0.0, %v999
        %v1001 = vpop.f32.mrb[0].mxu0
        %v1002 = vadd.f32 0.0, %v1001
        %1003 = vdwg.mxu0
        %1004 = vmatprep.subr.bf16.mxu0 0
        %1005 = vmatpush1.bf16.msra.mxu0 %v935
        %1006 = vmatprep.subr.bf16.mxu0 0
        %1007 = vmatpush1.bf16.msra.mxu0 %v938
        %1008 = vmatprep.subr.bf16.mxu0 0
        %1009 = vmatpush1.bf16.msra.mxu0 %v941
        %1010 = vmatprep.subr.bf16.mxu0 0
        %1011 = vmatpush1.bf16.msra.mxu0 %v944
        %1012 = vmatprep.subr.bf16.mxu0 0
        %1013 = vmatpush1.bf16.msra.mxu0 0
        %1014 = vmatprep.subr.bf16.mxu0 0
        %1015 = vmatpush1.bf16.msra.mxu0 0
        %1016 = vmatprep.subr.bf16.mxu0 0
        %1017 = vmatpush1.bf16.msra.mxu0 0
        %1018 = vmatprep.subr.bf16.mxu0 0
        %1019 = vmatpush1.bf16.msra.mxu0 0
        %1020 = vmatprep.subr.bf16.mxu0 0
        %1021 = vmatpush1.bf16.msra.mxu0 0
        %1022 = vmatprep.subr.bf16.mxu0 0
        %1023 = vmatpush1.bf16.msra.mxu0 0
        %1024 = vmatprep.subr.bf16.mxu0 0
        %1025 = vmatpush1.bf16.msra.mxu0 0
        %1026 = vmatprep.subr.bf16.mxu0 0
        %1027 = vmatpush1.bf16.msra.mxu0 0
        %1028 = vmatprep.subr.bf16.mxu0 0
        %1029 = vmatpush1.bf16.msra.mxu0 0
        %1030 = vmatprep.subr.bf16.mxu0 0
        %1031 = vmatpush1.bf16.msra.mxu0 0
        %1032 = vmatprep.subr.bf16.mxu0 0
        %1033 = vmatpush1.bf16.msra.mxu0 0
        %1034 = vmatprep.subr.bf16.mxu0 0
        %1035 = vmatpush1.bf16.msra.mxu0 0
        %1036 = vmatprep.mubr.bf16.mxu0 0
        %1037 = vmatmul.mubr.bf16.gmra.mrb[0].mxu0 %v959
        %v1038 = vpop.f32.mrb[0].mxu0
        %v1039 = vadd.f32 0.0, %v1038
        %v1040 = vpop.f32.mrb[0].mxu0
        %v1041 = vpop.f32.mrb[0].mxu0
        %v1042 = vadd.f32 0.0, %v1041
        %v1043 = vpop.f32.mrb[0].mxu0
        %1044 = vdwg.mxu0
        %v1045 = vld [vmem:[%s621] sm:$0x1]
        %v1047 = vlaneseq
        %v1048 = vshrl.u32 %v1047, 7
        %v1049 = vsub.s32 0, %v1048
        %v1050 = vrot.slane %v1045, %v1049
        %v1052 = vadd.f32 %v996, %v1050
        %v1053 = vadd.f32 %v1000, %v1050
        %v1054 = vmax.f32 %v1052, 0.0
        %v1055 = vmax.f32 %v1053, 0.0
        %v1056 = vand.u32 2147483647, %v1052
        %v1057 = vand.u32 2147483647, %v1053
        %v1058 = vsub.f32 0.0, %v1056
        %v1059 = vsub.f32 0.0, %v1057
        %v1060 = vmul.f32 %v1058, 1.442695
        %v1061 = vpow.pop %v1060
        %v1062 = vmul.f32 %v1059, 1.442695
        %v1063 = vpow.pop %v1062
        %v1064 = vadd.f32 %v1061, 1.0
        %v1065 = vlog2.pop %v1064
        %v1066 = vmul.f32 %v1065, 0.6931472
        %v1067 = vmul.f32 -0.5, %v1061
        %v1068 = vadd.f32 %v1067, 1.0
        %v1069 = vmul.f32 %v1068, %v1061
        %v1070 = vand.u32 2147483647, %v1061
        %vm1071 = vcmp.lt.f32.partialorder %v1070, 0.0004427343
        %v1072 = vsel %vm1071, %v1069, %v1066
        %v1073 = vadd.f32 %v1063, 1.0
        %v1074 = vlog2.pop %v1073
        %v1075 = vmul.f32 %v1074, 0.6931472
        %v1076 = vmul.f32 -0.5, %v1063
        %v1077 = vadd.f32 %v1076, 1.0
        %v1078 = vmul.f32 %v1077, %v1063
        %v1079 = vand.u32 2147483647, %v1063
        %vm1080 = vcmp.lt.f32.partialorder %v1079, 0.0004427343
        %v1081 = vsel %vm1080, %v1078, %v1075
        %v1082 = vadd.f32 %v1054, %v1072
        %v1083 = vadd.f32 %v1055, %v1081
        %1084 = vst.msk [vmem:[#allocation5] sm:$0xff] %vm957, %v1082
        %1085 = vst.msk [vmem:[#allocation5 + $0x8] sm:$0xff] %vm957, %v1083
        %v1086 = vmul.f32 %v1082, %v874
        %v1087 = vmul.f32 %v1083, %v875
        %1088 = vst.msk [vmem:[#allocation6] sm:$0xff] %vm957, %v1086
        %1089 = vst.msk [vmem:[#allocation6 + $0x8] sm:$0xff] %vm957, %v1087
        %vm1090 = vcmask 130048
        %1091 = vst.msk [vmem:[#allocation7] sm:$0xff] %vm1090, %v998
        %1092 = vst.msk [vmem:[#allocation7 + $0x8] sm:$0xff] %vm1090, %v1002
        %1093 = vst.msk [vmem:[#allocation8] sm:$0xff] %vm1090, %v1039
        %1094 = vst.msk [vmem:[#allocation8 + $0x8] sm:$0xff] %vm1090, %v1042
        %v1095 = vld [vmem:[%s626] sm:$0xff]
        %v1096 = vld [vmem:[%s626 + $0x8] sm:$0xff]
        %v1097 = vld [vmem:[#allocation5] sm:$0xff]
        %v1099 = vcombine.high %v1097, %v1097
        %v1101 = vunpack.c.l.s4 1966171168
        %v1102 = vunpack.c.0.s8 %v1101
        %v1103 = vlaneseq
        %v1104 = vshrl.u32 %v1103, 7
        %v1105 = vsub.s32 %v1102, %v1104
        %v1106 = vrot.slane %v1097, %v1105
        %v1108 = vunpack.c.l.s4 1966171168
        %v1109 = vunpack.c.0.s8 %v1108
        %v1110 = vlaneseq
        %v1111 = vshrl.u32 %v1110, 7
        %v1112 = vsub.s32 %v1109, %v1111
        %v1113 = vrot.slane %v1099, %v1112
        %v1114 = vcombine.high %v1106, %v1106
        %v1115 = vcombine.high %v1113, %v1113
        %v1117 = vunpack.c.l.s4 1966171168
        %v1118 = vunpack.c.0.s8 %v1117
        %v1119 = vlaneseq
        %v1120 = vshrl.u32 %v1119, 7
        %v1121 = vsub.s32 %v1118, %v1120
        %v1122 = vrot.slane %v1106, %v1121
        %v1124 = vunpack.c.l.s4 1966171168
        %v1125 = vunpack.c.0.s8 %v1124
        %v1126 = vlaneseq
        %v1127 = vshrl.u32 %v1126, 7
        %v1128 = vsub.s32 %v1125, %v1127
        %v1129 = vrot.slane %v1113, %v1128
        %v1131 = vunpack.c.l.s4 1966171168
        %v1132 = vunpack.c.0.s8 %v1131
        %v1133 = vlaneseq
        %v1134 = vshrl.u32 %v1133, 7
        %v1135 = vsub.s32 %v1132, %v1134
        %v1136 = vrot.slane %v1114, %v1135
        %v1138 = vunpack.c.l.s4 1966171168
        %v1139 = vunpack.c.0.s8 %v1138
        %v1140 = vlaneseq
        %v1141 = vshrl.u32 %v1140, 7
        %v1142 = vsub.s32 %v1139, %v1141
        %v1143 = vrot.slane %v1115, %v1142
        %v1144 = vcombine.high %v1122, %v1122
        %v1145 = vcombine.high %v1129, %v1129
        %v1146 = vcombine.high %v1136, %v1136
        %v1147 = vcombine.high %v1143, %v1143
        %v1148 = vlaneseq
        %v1149 = vshrl.u32 %v1148, 7
        %v1150 = vsub.s32 0, %v1149
        %v1151 = vrot.slane %v1122, %v1150
        %v1152 = vlaneseq
        %v1153 = vshrl.u32 %v1152, 7
        %v1154 = vsub.s32 0, %v1153
        %v1155 = vrot.slane %v1136, %v1154
        %v1156 = vlaneseq
        %v1157 = vshrl.u32 %v1156, 7
        %v1158 = vsub.s32 0, %v1157
        %v1159 = vrot.slane %v1144, %v1158
        %v1160 = vlaneseq
        %v1161 = vshrl.u32 %v1160, 7
        %v1162 = vsub.s32 0, %v1161
        %v1163 = vrot.slane %v1146, %v1162
        %v1164 = vlaneseq
        %v1165 = vshrl.u32 %v1164, 7
        %v1166 = vsub.s32 0, %v1165
        %v1167 = vrot.slane %v1129, %v1166
        %v1168 = vlaneseq
        %v1169 = vshrl.u32 %v1168, 7
        %v1170 = vsub.s32 0, %v1169
        %v1171 = vrot.slane %v1143, %v1170
        %v1172 = vlaneseq
        %v1173 = vshrl.u32 %v1172, 7
        %v1174 = vsub.s32 0, %v1173
        %v1175 = vrot.slane %v1145, %v1174
        %v1176 = vlaneseq
        %v1177 = vshrl.u32 %v1176, 7
        %v1178 = vsub.s32 0, %v1177
        %v1179 = vrot.slane %v1147, %v1178
        %v1188 = vmul.f32 %v1151, %v1095
        %v1189 = vmul.f32 %v1151, %v1096
        %v1190 = vmul.f32 %v1155, %v1095
        %v1191 = vmul.f32 %v1155, %v1096
        %v1192 = vmul.f32 %v1159, %v1095
        %v1193 = vmul.f32 %v1159, %v1096
        %v1194 = vmul.f32 %v1163, %v1095
        %v1195 = vmul.f32 %v1163, %v1096
        %v1196 = vmul.f32 %v1167, %v1095
        %v1197 = vmul.f32 %v1167, %v1096
        %v1198 = vmul.f32 %v1171, %v1095
        %v1199 = vmul.f32 %v1171, %v1096
        %v1200 = vmul.f32 %v1175, %v1095
        %v1201 = vmul.f32 %v1175, %v1096
        %v1202 = vmul.f32 %v1179, %v1095
        %v1203 = vmul.f32 %v1179, %v1096
        %v1204 = vmul.f32 %v1188, 1.442695
        %v1205 = vpow.pop %v1204
        %v1206 = vmul.f32 %v1189, 1.442695
        %v1207 = vpow.pop %v1206
        %v1208 = vmul.f32 %v1190, 1.442695
        %v1209 = vpow.pop %v1208
        %v1210 = vmul.f32 %v1191, 1.442695
        %v1211 = vpow.pop %v1210
        %v1212 = vmul.f32 %v1192, 1.442695
        %v1213 = vpow.pop %v1212
        %v1214 = vmul.f32 %v1193, 1.442695
        %v1215 = vpow.pop %v1214
        %v1216 = vmul.f32 %v1194, 1.442695
        %v1217 = vpow.pop %v1216
        %v1218 = vmul.f32 %v1195, 1.442695
        %v1219 = vpow.pop %v1218
        %v1220 = vmul.f32 %v1196, 1.442695
        %v1221 = vpow.pop %v1220
        %v1222 = vmul.f32 %v1197, 1.442695
        %v1223 = vpow.pop %v1222
        %v1224 = vmul.f32 %v1198, 1.442695
        %v1225 = vpow.pop %v1224
        %v1226 = vmul.f32 %v1199, 1.442695
        %v1227 = vpow.pop %v1226
        %v1228 = vmul.f32 %v1200, 1.442695
        %v1229 = vpow.pop %v1228
        %v1230 = vmul.f32 %v1201, 1.442695
        %v1231 = vpow.pop %v1230
        %v1232 = vmul.f32 %v1202, 1.442695
        %v1233 = vpow.pop %v1232
        %v1234 = vmul.f32 %v1203, 1.442695
        %v1235 = vpow.pop %v1234
        %1236 = vst.msk [vmem:[#allocation3] sm:$0xff] %vm957, %v1205
        %1237 = vst.msk [vmem:[#allocation3 + $0x8] sm:$0xff] %vm957, %v1207
        %1238 = vst.msk [vmem:[#allocation3 + $0x10] sm:$0xff] %vm957, %v1209
        %1239 = vst.msk [vmem:[#allocation3 + $0x18] sm:$0xff] %vm957, %v1211
        %1240 = vst.msk [vmem:[#allocation3 + $0x20] sm:$0xff] %vm957, %v1213
        %1241 = vst.msk [vmem:[#allocation3 + $0x28] sm:$0xff] %vm957, %v1215
        %1242 = vst.msk [vmem:[#allocation3 + $0x30] sm:$0xff] %vm957, %v1217
        %1243 = vst.msk [vmem:[#allocation3 + $0x38] sm:$0xff] %vm957, %v1219
        %1244 = vst.msk [vmem:[#allocation3 + $0x40] sm:$0xff] %vm957, %v1221
        %1245 = vst.msk [vmem:[#allocation3 + $0x48] sm:$0xff] %vm957, %v1223
        %1246 = vst.msk [vmem:[#allocation3 + $0x50] sm:$0xff] %vm957, %v1225
        %1247 = vst.msk [vmem:[#allocation3 + $0x58] sm:$0xff] %vm957, %v1227
        %1248 = vst.msk [vmem:[#allocation3 + $0x60] sm:$0xff] %vm957, %v1229
        %1249 = vst.msk [vmem:[#allocation3 + $0x68] sm:$0xff] %vm957, %v1231
        %1250 = vst.msk [vmem:[#allocation3 + $0x70] sm:$0xff] %vm957, %v1233
        %1251 = vst.msk [vmem:[#allocation3 + $0x78] sm:$0xff] %vm957, %v1235
        %v1252 = vld [vmem:[#allocation6] sm:$0xff]
        %v1254 = vcombine.high %v1252, %v1252
        %v1256 = vunpack.c.l.s4 1966171168
        %v1257 = vunpack.c.0.s8 %v1256
        %v1258 = vlaneseq
        %v1259 = vshrl.u32 %v1258, 7
        %v1260 = vsub.s32 %v1257, %v1259
        %v1261 = vrot.slane %v1252, %v1260
        %v1263 = vunpack.c.l.s4 1966171168
        %v1264 = vunpack.c.0.s8 %v1263
        %v1265 = vlaneseq
        %v1266 = vshrl.u32 %v1265, 7
        %v1267 = vsub.s32 %v1264, %v1266
        %v1268 = vrot.slane %v1254, %v1267
        %v1269 = vcombine.high %v1261, %v1261
        %v1270 = vcombine.high %v1268, %v1268
        %v1272 = vunpack.c.l.s4 1966171168
        %v1273 = vunpack.c.0.s8 %v1272
        %v1274 = vlaneseq
        %v1275 = vshrl.u32 %v1274, 7
        %v1276 = vsub.s32 %v1273, %v1275
        %v1277 = vrot.slane %v1261, %v1276
        %v1279 = vunpack.c.l.s4 1966171168
        %v1280 = vunpack.c.0.s8 %v1279
        %v1281 = vlaneseq
        %v1282 = vshrl.u32 %v1281, 7
        %v1283 = vsub.s32 %v1280, %v1282
        %v1284 = vrot.slane %v1268, %v1283
        %v1286 = vunpack.c.l.s4 1966171168
        %v1287 = vunpack.c.0.s8 %v1286
        %v1288 = vlaneseq
        %v1289 = vshrl.u32 %v1288, 7
        %v1290 = vsub.s32 %v1287, %v1289
        %v1291 = vrot.slane %v1269, %v1290
        %v1293 = vunpack.c.l.s4 1966171168
        %v1294 = vunpack.c.0.s8 %v1293
        %v1295 = vlaneseq
        %v1296 = vshrl.u32 %v1295, 7
        %v1297 = vsub.s32 %v1294, %v1296
        %v1298 = vrot.slane %v1270, %v1297
        %v1299 = vcombine.high %v1277, %v1277
        %v1300 = vcombine.high %v1284, %v1284
        %v1301 = vcombine.high %v1291, %v1291
        %v1302 = vcombine.high %v1298, %v1298
        %v1303 = vld [vmem:[#allocation7] sm:$0xff]
        %v1304 = vlaneseq
        %v1305 = vshrl.u32 %v1304, 7
        %v1306 = vsub.s32 0, %v1305
        %v1307 = vrot.slane %v1303, %v1306
        %1309 = vbcast.lane.b32.xlu0 %v1307, 256
        %v1310 = vpop.permute.xlu0 %1309
        %s1312 = sor.u32 256, 8
        %1313 = vbcast.lane.b32.xlu0 %v1307, %s1312
        %v1314 = vpop.permute.xlu0 %1313
        %v1315 = vlaneseq
        %v1316 = vshrl.u32 %v1315, 7
        %v1317 = vsub.s32 1, %v1316
        %v1318 = vrot.slane %v1303, %v1317
        %1320 = vbcast.lane.b32.xlu0 %v1318, 256
        %v1321 = vpop.permute.xlu0 %1320
        %s1323 = sor.u32 256, 8
        %1324 = vbcast.lane.b32.xlu0 %v1318, %s1323
        %v1325 = vpop.permute.xlu0 %1324
        %v1326 = vlaneseq
        %v1327 = vshrl.u32 %v1326, 7
        %v1328 = vsub.s32 2, %v1327
        %v1329 = vrot.slane %v1303, %v1328
        %1331 = vbcast.lane.b32.xlu0 %v1329, 256
        %v1332 = vpop.permute.xlu0 %1331
        %s1334 = sor.u32 256, 8
        %1335 = vbcast.lane.b32.xlu0 %v1329, %s1334
        %v1336 = vpop.permute.xlu0 %1335
        %v1337 = vlaneseq
        %v1338 = vshrl.u32 %v1337, 7
        %v1339 = vsub.s32 3, %v1338
        %v1340 = vrot.slane %v1303, %v1339
        %1342 = vbcast.lane.b32.xlu0 %v1340, 256
        %v1343 = vpop.permute.xlu0 %1342
        %s1345 = sor.u32 256, 8
        %1346 = vbcast.lane.b32.xlu0 %v1340, %s1345
        %v1347 = vpop.permute.xlu0 %1346
        %v1348 = vlaneseq
        %v1349 = vshrl.u32 %v1348, 7
        %v1350 = vsub.s32 4, %v1349
        %v1351 = vrot.slane %v1303, %v1350
        %1353 = vbcast.lane.b32.xlu0 %v1351, 256
        %v1354 = vpop.permute.xlu0 %1353
        %s1356 = sor.u32 256, 8
        %1357 = vbcast.lane.b32.xlu0 %v1351, %s1356
        %v1358 = vpop.permute.xlu0 %1357
        %v1359 = vlaneseq
        %v1360 = vshrl.u32 %v1359, 7
        %v1361 = vsub.s32 5, %v1360
        %v1362 = vrot.slane %v1303, %v1361
        %1364 = vbcast.lane.b32.xlu0 %v1362, 256
        %v1365 = vpop.permute.xlu0 %1364
        %s1367 = sor.u32 256, 8
        %1368 = vbcast.lane.b32.xlu0 %v1362, %s1367
        %v1369 = vpop.permute.xlu0 %1368
        %v1370 = vlaneseq
        %v1371 = vshrl.u32 %v1370, 7
        %v1372 = vsub.s32 6, %v1371
        %v1373 = vrot.slane %v1303, %v1372
        %1375 = vbcast.lane.b32.xlu0 %v1373, 256
        %v1376 = vpop.permute.xlu0 %1375
        %s1378 = sor.u32 256, 8
        %1379 = vbcast.lane.b32.xlu0 %v1373, %s1378
        %v1380 = vpop.permute.xlu0 %1379
        %v1381 = vlaneseq
        %v1382 = vshrl.u32 %v1381, 7
        %v1383 = vsub.s32 7, %v1382
        %v1384 = vrot.slane %v1303, %v1383
        %1386 = vbcast.lane.b32.xlu0 %v1384, 256
        %v1387 = vpop.permute.xlu0 %1386
        %s1389 = sor.u32 256, 8
        %1390 = vbcast.lane.b32.xlu0 %v1384, %s1389
        %v1391 = vpop.permute.xlu0 %1390
        %v1392 = vlaneseq
        %v1393 = vshrl.u32 %v1392, 7
        %v1394 = vsub.s32 0, %v1393
        %v1395 = vrot.slane %v1277, %v1394
        %v1396 = vlaneseq
        %v1397 = vshrl.u32 %v1396, 7
        %v1398 = vsub.s32 0, %v1397
        %v1399 = vrot.slane %v1291, %v1398
        %v1400 = vlaneseq
        %v1401 = vshrl.u32 %v1400, 7
        %v1402 = vsub.s32 0, %v1401
        %v1403 = vrot.slane %v1299, %v1402
        %v1404 = vlaneseq
        %v1405 = vshrl.u32 %v1404, 7
        %v1406 = vsub.s32 0, %v1405
        %v1407 = vrot.slane %v1301, %v1406
        %v1408 = vlaneseq
        %v1409 = vshrl.u32 %v1408, 7
        %v1410 = vsub.s32 0, %v1409
        %v1411 = vrot.slane %v1284, %v1410
        %v1412 = vlaneseq
        %v1413 = vshrl.u32 %v1412, 7
        %v1414 = vsub.s32 0, %v1413
        %v1415 = vrot.slane %v1298, %v1414
        %v1416 = vlaneseq
        %v1417 = vshrl.u32 %v1416, 7
        %v1418 = vsub.s32 0, %v1417
        %v1419 = vrot.slane %v1300, %v1418
        %v1420 = vlaneseq
        %v1421 = vshrl.u32 %v1420, 7
        %v1422 = vsub.s32 0, %v1421
        %v1423 = vrot.slane %v1302, %v1422
        %v1432 = vmul.f32 %v1395, %v1310
        %v1433 = vmul.f32 %v1395, %v1314
        %v1434 = vmul.f32 %v1399, %v1321
        %v1435 = vmul.f32 %v1399, %v1325
        %v1436 = vmul.f32 %v1403, %v1332
        %v1437 = vmul.f32 %v1403, %v1336
        %v1438 = vmul.f32 %v1407, %v1343
        %v1439 = vmul.f32 %v1407, %v1347
        %v1440 = vmul.f32 %v1411, %v1354
        %v1441 = vmul.f32 %v1411, %v1358
        %v1442 = vmul.f32 %v1415, %v1365
        %v1443 = vmul.f32 %v1415, %v1369
        %v1444 = vmul.f32 %v1419, %v1376
        %v1445 = vmul.f32 %v1419, %v1380
        %v1446 = vmul.f32 %v1423, %v1387
        %v1447 = vmul.f32 %v1423, %v1391
        %1448 = vst.msk [vmem:[#allocation4] sm:$0xff] %vm957, %v1432
        %1449 = vst.msk [vmem:[#allocation4 + $0x8] sm:$0xff] %vm957, %v1433
        %1450 = vst.msk [vmem:[#allocation4 + $0x10] sm:$0xff] %vm957, %v1434
        %1451 = vst.msk [vmem:[#allocation4 + $0x18] sm:$0xff] %vm957, %v1435
        %1452 = vst.msk [vmem:[#allocation4 + $0x20] sm:$0xff] %vm957, %v1436
        %1453 = vst.msk [vmem:[#allocation4 + $0x28] sm:$0xff] %vm957, %v1437
        %1454 = vst.msk [vmem:[#allocation4 + $0x30] sm:$0xff] %vm957, %v1438
        %1455 = vst.msk [vmem:[#allocation4 + $0x38] sm:$0xff] %vm957, %v1439
        %1456 = vst.msk [vmem:[#allocation4 + $0x40] sm:$0xff] %vm957, %v1440
        %1457 = vst.msk [vmem:[#allocation4 + $0x48] sm:$0xff] %vm957, %v1441
        %1458 = vst.msk [vmem:[#allocation4 + $0x50] sm:$0xff] %vm957, %v1442
        %1459 = vst.msk [vmem:[#allocation4 + $0x58] sm:$0xff] %vm957, %v1443
        %1460 = vst.msk [vmem:[#allocation4 + $0x60] sm:$0xff] %vm957, %v1444
        %1461 = vst.msk [vmem:[#allocation4 + $0x68] sm:$0xff] %vm957, %v1445
        %1462 = vst.msk [vmem:[#allocation4 + $0x70] sm:$0xff] %vm957, %v1446
        %1463 = vst.msk [vmem:[#allocation4 + $0x78] sm:$0xff] %vm957, %v1447
        %s1464 = smul.u32 0, 16
        %s1465 = scalar_lea.vmem [#allocation3], %s1464
        %v1466 = vld [vmem:[%s1465] sm:$0xff]
        %v1467 = vld [vmem:[%s1465 + $0x8] sm:$0xff]
        %v1468 = vmul.f32 %v1466, 0.0
        %v1469 = vmul.f32 %v1467, 0.0
        %s1470 = scalar_lea.vmem [#allocation4], %s1464
        %v1471 = vld [vmem:[%s1470] sm:$0xff]
        %v1472 = vld [vmem:[%s1470 + $0x8] sm:$0xff]
        %v1473 = vadd.f32 %v1468, %v1471
        %v1474 = vadd.f32 %v1469, %v1472
        %s1475 = sadd.s32 0, 1
        %s1476 = smul.u32 %s1475, 16
        %s1477 = scalar_lea.vmem [#allocation3], %s1476
        %v1478 = vld [vmem:[%s1477] sm:$0xff]
        %v1479 = vld [vmem:[%s1477 + $0x8] sm:$0xff]
        %v1480 = vmul.f32 %v1478, %v1473
        %v1481 = vmul.f32 %v1479, %v1474
        %s1482 = scalar_lea.vmem [#allocation4], %s1476
        %v1483 = vld [vmem:[%s1482] sm:$0xff]
        %v1484 = vld [vmem:[%s1482 + $0x8] sm:$0xff]
        %v1485 = vadd.f32 %v1480, %v1483
        %v1486 = vadd.f32 %v1481, %v1484
        %s1487 = sadd.s32 0, 2
        %s1488 = smul.u32 %s1487, 16
        %s1489 = scalar_lea.vmem [#allocation3], %s1488
        %v1490 = vld [vmem:[%s1489] sm:$0xff]
        %v1491 = vld [vmem:[%s1489 + $0x8] sm:$0xff]
        %v1492 = vmul.f32 %v1490, %v1485
        %v1493 = vmul.f32 %v1491, %v1486
        %s1494 = scalar_lea.vmem [#allocation4], %s1488
        %v1495 = vld [vmem:[%s1494] sm:$0xff]
        %v1496 = vld [vmem:[%s1494 + $0x8] sm:$0xff]
        %v1497 = vadd.f32 %v1492, %v1495
        %v1498 = vadd.f32 %v1493, %v1496
        %s1499 = sadd.s32 0, 3
        %s1500 = smul.u32 %s1499, 16
        %s1501 = scalar_lea.vmem [#allocation3], %s1500
        %v1502 = vld [vmem:[%s1501] sm:$0xff]
        %v1503 = vld [vmem:[%s1501 + $0x8] sm:$0xff]
        %v1504 = vmul.f32 %v1502, %v1497
        %v1505 = vmul.f32 %v1503, %v1498
        %s1506 = scalar_lea.vmem [#allocation4], %s1500
        %v1507 = vld [vmem:[%s1506] sm:$0xff]
        %v1508 = vld [vmem:[%s1506 + $0x8] sm:$0xff]
        %v1509 = vadd.f32 %v1504, %v1507
        %v1510 = vadd.f32 %v1505, %v1508
        %s1511 = sadd.s32 0, 4
        %s1512 = smul.u32 %s1511, 16
        %s1513 = scalar_lea.vmem [#allocation3], %s1512
        %v1514 = vld [vmem:[%s1513] sm:$0xff]
        %v1515 = vld [vmem:[%s1513 + $0x8] sm:$0xff]
        %v1516 = vmul.f32 %v1514, %v1509
        %v1517 = vmul.f32 %v1515, %v1510
        %s1518 = scalar_lea.vmem [#allocation4], %s1512
        %v1519 = vld [vmem:[%s1518] sm:$0xff]
        %v1520 = vld [vmem:[%s1518 + $0x8] sm:$0xff]
        %v1521 = vadd.f32 %v1516, %v1519
        %v1522 = vadd.f32 %v1517, %v1520
        %s1523 = sadd.s32 0, 5
        %s1524 = smul.u32 %s1523, 16
        %s1525 = scalar_lea.vmem [#allocation3], %s1524
        %v1526 = vld [vmem:[%s1525] sm:$0xff]
        %v1527 = vld [vmem:[%s1525 + $0x8] sm:$0xff]
        %v1528 = vmul.f32 %v1526, %v1521
        %v1529 = vmul.f32 %v1527, %v1522
        %s1530 = scalar_lea.vmem [#allocation4], %s1524
        %v1531 = vld [vmem:[%s1530] sm:$0xff]
        %v1532 = vld [vmem:[%s1530 + $0x8] sm:$0xff]
        %v1533 = vadd.f32 %v1528, %v1531
        %v1534 = vadd.f32 %v1529, %v1532
        %s1535 = sadd.s32 0, 6
        %s1536 = smul.u32 %s1535, 16
        %s1537 = scalar_lea.vmem [#allocation3], %s1536
        %v1538 = vld [vmem:[%s1537] sm:$0xff]
        %v1539 = vld [vmem:[%s1537 + $0x8] sm:$0xff]
        %v1540 = vmul.f32 %v1538, %v1533
        %v1541 = vmul.f32 %v1539, %v1534
        %s1542 = scalar_lea.vmem [#allocation4], %s1536
        %v1543 = vld [vmem:[%s1542] sm:$0xff]
        %v1544 = vld [vmem:[%s1542 + $0x8] sm:$0xff]
        %v1545 = vadd.f32 %v1540, %v1543
        %v1546 = vadd.f32 %v1541, %v1544
        %s1547 = sadd.s32 0, 7
        %s1548 = smul.u32 %s1547, 16
        %s1549 = scalar_lea.vmem [#allocation3], %s1548
        %v1550 = vld [vmem:[%s1549] sm:$0xff]
        %v1551 = vld [vmem:[%s1549 + $0x8] sm:$0xff]
        %v1552 = vmul.f32 %v1550, %v1545
        %v1553 = vmul.f32 %v1551, %v1546
        %s1554 = scalar_lea.vmem [#allocation4], %s1548
        %v1555 = vld [vmem:[%s1554] sm:$0xff]
        %v1556 = vld [vmem:[%s1554 + $0x8] sm:$0xff]
        %v1557 = vadd.f32 %v1552, %v1555
        %v1558 = vadd.f32 %v1553, %v1556
        %s1559 = sadd.s32 0, 0
        %s1560 = scalar_lea.vmem [#allocation8], %s1559
        %v1561 = vld [vmem:[%s1560] sm:$0xff]
        %v1562 = vlaneseq
        %v1563 = vshrl.u32 %v1562, 7
        %v1564 = vsub.s32 0, %v1563
        %v1565 = vrot.slane %v1561, %v1564
        %1567 = vbcast.lane.b32.xlu0 %v1565, 256
        %v1568 = vpop.permute.xlu0 %1567
        %s1570 = sor.u32 256, 8
        %1571 = vbcast.lane.b32.xlu0 %v1565, %s1570
        %v1572 = vpop.permute.xlu0 %1571
        %v1573 = vlaneseq
        %v1574 = vshrl.u32 %v1573, 7
        %v1575 = vsub.s32 1, %v1574
        %v1576 = vrot.slane %v1561, %v1575
        %1578 = vbcast.lane.b32.xlu0 %v1576, 256
        %v1579 = vpop.permute.xlu0 %1578
        %s1581 = sor.u32 256, 8
        %1582 = vbcast.lane.b32.xlu0 %v1576, %s1581
        %v1583 = vpop.permute.xlu0 %1582
        %v1584 = vlaneseq
        %v1585 = vshrl.u32 %v1584, 7
        %v1586 = vsub.s32 2, %v1585
        %v1587 = vrot.slane %v1561, %v1586
        %1589 = vbcast.lane.b32.xlu0 %v1587, 256
        %v1590 = vpop.permute.xlu0 %1589
        %s1592 = sor.u32 256, 8
        %1593 = vbcast.lane.b32.xlu0 %v1587, %s1592
        %v1594 = vpop.permute.xlu0 %1593
        %v1595 = vlaneseq
        %v1596 = vshrl.u32 %v1595, 7
        %v1597 = vsub.s32 3, %v1596
        %v1598 = vrot.slane %v1561, %v1597
        %1600 = vbcast.lane.b32.xlu0 %v1598, 256
        %v1601 = vpop.permute.xlu0 %1600
        %s1603 = sor.u32 256, 8
        %1604 = vbcast.lane.b32.xlu0 %v1598, %s1603
        %v1605 = vpop.permute.xlu0 %1604
        %v1606 = vlaneseq
        %v1607 = vshrl.u32 %v1606, 7
        %v1608 = vsub.s32 4, %v1607
        %v1609 = vrot.slane %v1561, %v1608
        %1611 = vbcast.lane.b32.xlu0 %v1609, 256
        %v1612 = vpop.permute.xlu0 %1611
        %s1614 = sor.u32 256, 8
        %1615 = vbcast.lane.b32.xlu0 %v1609, %s1614
        %v1616 = vpop.permute.xlu0 %1615
        %v1617 = vlaneseq
        %v1618 = vshrl.u32 %v1617, 7
        %v1619 = vsub.s32 5, %v1618
        %v1620 = vrot.slane %v1561, %v1619
        %1622 = vbcast.lane.b32.xlu0 %v1620, 256
        %v1623 = vpop.permute.xlu0 %1622
        %s1625 = sor.u32 256, 8
        %1626 = vbcast.lane.b32.xlu0 %v1620, %s1625
        %v1627 = vpop.permute.xlu0 %1626
        %v1628 = vlaneseq
        %v1629 = vshrl.u32 %v1628, 7
        %v1630 = vsub.s32 6, %v1629
        %v1631 = vrot.slane %v1561, %v1630
        %1633 = vbcast.lane.b32.xlu0 %v1631, 256
        %v1634 = vpop.permute.xlu0 %1633
        %s1636 = sor.u32 256, 8
        %1637 = vbcast.lane.b32.xlu0 %v1631, %s1636
        %v1638 = vpop.permute.xlu0 %1637
        %v1639 = vlaneseq
        %v1640 = vshrl.u32 %v1639, 7
        %v1641 = vsub.s32 7, %v1640
        %v1642 = vrot.slane %v1561, %v1641
        %1644 = vbcast.lane.b32.xlu0 %v1642, 256
        %v1645 = vpop.permute.xlu0 %1644
        %s1647 = sor.u32 256, 8
        %1648 = vbcast.lane.b32.xlu0 %v1642, %s1647
        %v1649 = vpop.permute.xlu0 %1648
        %v1650 = vmul.f32 %v1473, %v1568
        %v1651 = vmul.f32 %v1474, %v1572
        %v1652 = vmul.f32 %v1485, %v1579
        %v1653 = vmul.f32 %v1486, %v1583
        %v1654 = vmul.f32 %v1497, %v1590
        %v1655 = vmul.f32 %v1498, %v1594
        %v1656 = vmul.f32 %v1509, %v1601
        %v1657 = vmul.f32 %v1510, %v1605
        %v1658 = vmul.f32 %v1521, %v1612
        %v1659 = vmul.f32 %v1522, %v1616
        %v1660 = vmul.f32 %v1533, %v1623
        %v1661 = vmul.f32 %v1534, %v1627
        %v1662 = vmul.f32 %v1545, %v1634
        %v1663 = vmul.f32 %v1546, %v1638
        %v1664 = vmul.f32 %v1557, %v1645
        %v1665 = vmul.f32 %v1558, %v1649
        %v1666 = vsel %vm957, %v1650, 0.0
        %v1667 = vsel %vm957, %v1651, 0.0
        %v1668 = vadd.f32 %v1666, %v1667
        %v1669 = vrot.slane %v1668, 4
        %v1670 = vadd.f32 %v1668, %v1669
        %v1671 = vrot.slane %v1670, 2
        %v1672 = vadd.f32 %v1670, %v1671
        %v1673 = vrot.slane %v1672, 1
        %v1674 = vadd.f32 %v1672, %v1673
        %v1675 = vsel %vm957, %v1652, 0.0
        %v1676 = vsel %vm957, %v1653, 0.0
        %v1677 = vadd.f32 %v1675, %v1676
        %v1678 = vrot.slane %v1677, 4
        %v1679 = vadd.f32 %v1677, %v1678
        %v1680 = vrot.slane %v1679, 2
        %v1681 = vadd.f32 %v1679, %v1680
        %v1682 = vrot.slane %v1681, 1
        %v1683 = vadd.f32 %v1681, %v1682
        %v1684 = vsel %vm957, %v1654, 0.0
        %v1685 = vsel %vm957, %v1655, 0.0
        %v1686 = vadd.f32 %v1684, %v1685
        %v1687 = vrot.slane %v1686, 4
        %v1688 = vadd.f32 %v1686, %v1687
        %v1689 = vrot.slane %v1688, 2
        %v1690 = vadd.f32 %v1688, %v1689
        %v1691 = vrot.slane %v1690, 1
        %v1692 = vadd.f32 %v1690, %v1691
        %v1693 = vsel %vm957, %v1656, 0.0
        %v1694 = vsel %vm957, %v1657, 0.0
        %v1695 = vadd.f32 %v1693, %v1694
        %v1696 = vrot.slane %v1695, 4
        %v1697 = vadd.f32 %v1695, %v1696
        %v1698 = vrot.slane %v1697, 2
        %v1699 = vadd.f32 %v1697, %v1698
        %v1700 = vrot.slane %v1699, 1
        %v1701 = vadd.f32 %v1699, %v1700
        %v1702 = vsel %vm957, %v1658, 0.0
        %v1703 = vsel %vm957, %v1659, 0.0
        %v1704 = vadd.f32 %v1702, %v1703
        %v1705 = vrot.slane %v1704, 4
        %v1706 = vadd.f32 %v1704, %v1705
        %v1707 = vrot.slane %v1706, 2
        %v1708 = vadd.f32 %v1706, %v1707
        %v1709 = vrot.slane %v1708, 1
        %v1710 = vadd.f32 %v1708, %v1709
        %v1711 = vsel %vm957, %v1660, 0.0
        %v1712 = vsel %vm957, %v1661, 0.0
        %v1713 = vadd.f32 %v1711, %v1712
        %v1714 = vrot.slane %v1713, 4
        %v1715 = vadd.f32 %v1713, %v1714
        %v1716 = vrot.slane %v1715, 2
        %v1717 = vadd.f32 %v1715, %v1716
        %v1718 = vrot.slane %v1717, 1
        %v1719 = vadd.f32 %v1717, %v1718
        %v1720 = vsel %vm957, %v1662, 0.0
        %v1721 = vsel %vm957, %v1663, 0.0
        %v1722 = vadd.f32 %v1720, %v1721
        %v1723 = vrot.slane %v1722, 4
        %v1724 = vadd.f32 %v1722, %v1723
        %v1725 = vrot.slane %v1724, 2
        %v1726 = vadd.f32 %v1724, %v1725
        %v1727 = vrot.slane %v1726, 1
        %v1728 = vadd.f32 %v1726, %v1727
        %v1729 = vsel %vm957, %v1664, 0.0
        %v1730 = vsel %vm957, %v1665, 0.0
        %v1731 = vadd.f32 %v1729, %v1730
        %v1732 = vrot.slane %v1731, 4
        %v1733 = vadd.f32 %v1731, %v1732
        %v1734 = vrot.slane %v1733, 2
        %v1735 = vadd.f32 %v1733, %v1734
        %v1736 = vrot.slane %v1735, 1
        %v1737 = vadd.f32 %v1735, %v1736
        %vm1746 = vcmask 1041409
        %v1747 = vsel %vm1746, %v1683, %v1674
        %vm1748 = vcmask 1042434
        %v1749 = vsel %vm1748, %v1692, %v1747
        %vm1750 = vcmask 1043459
        %v1751 = vsel %vm1750, %v1701, %v1749
        %vm1752 = vcmask 1044484
        %v1753 = vsel %vm1752, %v1710, %v1751
        %vm1754 = vcmask 1045509
        %v1755 = vsel %vm1754, %v1719, %v1753
        %vm1756 = vcmask 1046534
        %v1757 = vsel %vm1756, %v1728, %v1755
        %vm1758 = vcmask 1047559
        %v1759 = vsel %vm1758, %v1737, %v1757
        %s1761 = scalar_lea.vmem [#allocation9], %s1559
        %1762 = vst.msk [vmem:[%s1761] sm:$0xff] %vm957, %v1759
        %s1763 = scalar_lea.vmem [#allocation5], 8
        %v1764 = vld [vmem:[%s1763] sm:$0xff]
        %v1766 = vcombine.high %v1764, %v1764
        %v1768 = vunpack.c.l.s4 1966171168
        %v1769 = vunpack.c.0.s8 %v1768
        %v1770 = vlaneseq
        %v1771 = vshrl.u32 %v1770, 7
        %v1772 = vsub.s32 %v1769, %v1771
        %v1773 = vrot.slane %v1764, %v1772
        %v1775 = vunpack.c.l.s4 1966171168
        %v1776 = vunpack.c.0.s8 %v1775
        %v1777 = vlaneseq
        %v1778 = vshrl.u32 %v1777, 7
        %v1779 = vsub.s32 %v1776, %v1778
        %v1780 = vrot.slane %v1766, %v1779
        %v1781 = vcombine.high %v1773, %v1773
        %v1782 = vcombine.high %v1780, %v1780
        %v1784 = vunpack.c.l.s4 1966171168
        %v1785 = vunpack.c.0.s8 %v1784
        %v1786 = vlaneseq
        %v1787 = vshrl.u32 %v1786, 7
        %v1788 = vsub.s32 %v1785, %v1787
        %v1789 = vrot.slane %v1773, %v1788
        %v1791 = vunpack.c.l.s4 1966171168
        %v1792 = vunpack.c.0.s8 %v1791
        %v1793 = vlaneseq
        %v1794 = vshrl.u32 %v1793, 7
        %v1795 = vsub.s32 %v1792, %v1794
        %v1796 = vrot.slane %v1780, %v1795
        %v1798 = vunpack.c.l.s4 1966171168
        %v1799 = vunpack.c.0.s8 %v1798
        %v1800 = vlaneseq
        %v1801 = vshrl.u32 %v1800, 7
        %v1802 = vsub.s32 %v1799, %v1801
        %v1803 = vrot.slane %v1781, %v1802
        %v1805 = vunpack.c.l.s4 1966171168
        %v1806 = vunpack.c.0.s8 %v1805
        %v1807 = vlaneseq
        %v1808 = vshrl.u32 %v1807, 7
        %v1809 = vsub.s32 %v1806, %v1808
        %v1810 = vrot.slane %v1782, %v1809
        %v1811 = vcombine.high %v1789, %v1789
        %v1812 = vcombine.high %v1796, %v1796
        %v1813 = vcombine.high %v1803, %v1803
        %v1814 = vcombine.high %v1810, %v1810
        %v1815 = vlaneseq
        %v1816 = vshrl.u32 %v1815, 7
        %v1817 = vsub.s32 0, %v1816
        %v1818 = vrot.slane %v1789, %v1817
        %v1819 = vlaneseq
        %v1820 = vshrl.u32 %v1819, 7
        %v1821 = vsub.s32 0, %v1820
        %v1822 = vrot.slane %v1803, %v1821
        %v1823 = vlaneseq
        %v1824 = vshrl.u32 %v1823, 7
        %v1825 = vsub.s32 0, %v1824
        %v1826 = vrot.slane %v1811, %v1825
        %v1827 = vlaneseq
        %v1828 = vshrl.u32 %v1827, 7
        %v1829 = vsub.s32 0, %v1828
        %v1830 = vrot.slane %v1813, %v1829
        %v1831 = vlaneseq
        %v1832 = vshrl.u32 %v1831, 7
        %v1833 = vsub.s32 0, %v1832
        %v1834 = vrot.slane %v1796, %v1833
        %v1835 = vlaneseq
        %v1836 = vshrl.u32 %v1835, 7
        %v1837 = vsub.s32 0, %v1836
        %v1838 = vrot.slane %v1810, %v1837
        %v1839 = vlaneseq
        %v1840 = vshrl.u32 %v1839, 7
        %v1841 = vsub.s32 0, %v1840
        %v1842 = vrot.slane %v1812, %v1841
        %v1843 = vlaneseq
        %v1844 = vshrl.u32 %v1843, 7
        %v1845 = vsub.s32 0, %v1844
        %v1846 = vrot.slane %v1814, %v1845
        %v1855 = vmul.f32 %v1818, %v1095
        %v1856 = vmul.f32 %v1818, %v1096
        %v1857 = vmul.f32 %v1822, %v1095
        %v1858 = vmul.f32 %v1822, %v1096
        %v1859 = vmul.f32 %v1826, %v1095
        %v1860 = vmul.f32 %v1826, %v1096
        %v1861 = vmul.f32 %v1830, %v1095
        %v1862 = vmul.f32 %v1830, %v1096
        %v1863 = vmul.f32 %v1834, %v1095
        %v1864 = vmul.f32 %v1834, %v1096
        %v1865 = vmul.f32 %v1838, %v1095
        %v1866 = vmul.f32 %v1838, %v1096
        %v1867 = vmul.f32 %v1842, %v1095
        %v1868 = vmul.f32 %v1842, %v1096
        %v1869 = vmul.f32 %v1846, %v1095
        %v1870 = vmul.f32 %v1846, %v1096
        %v1871 = vmul.f32 %v1855, 1.442695
        %v1872 = vpow.pop %v1871
        %v1873 = vmul.f32 %v1856, 1.442695
        %v1874 = vpow.pop %v1873
        %v1875 = vmul.f32 %v1857, 1.442695
        %v1876 = vpow.pop %v1875
        %v1877 = vmul.f32 %v1858, 1.442695
        %v1878 = vpow.pop %v1877
        %v1879 = vmul.f32 %v1859, 1.442695
        %v1880 = vpow.pop %v1879
        %v1881 = vmul.f32 %v1860, 1.442695
        %v1882 = vpow.pop %v1881
        %v1883 = vmul.f32 %v1861, 1.442695
        %v1884 = vpow.pop %v1883
        %v1885 = vmul.f32 %v1862, 1.442695
        %v1886 = vpow.pop %v1885
        %v1887 = vmul.f32 %v1863, 1.442695
        %v1888 = vpow.pop %v1887
        %v1889 = vmul.f32 %v1864, 1.442695
        %v1890 = vpow.pop %v1889
        %v1891 = vmul.f32 %v1865, 1.442695
        %v1892 = vpow.pop %v1891
        %v1893 = vmul.f32 %v1866, 1.442695
        %v1894 = vpow.pop %v1893
        %v1895 = vmul.f32 %v1867, 1.442695
        %v1896 = vpow.pop %v1895
        %v1897 = vmul.f32 %v1868, 1.442695
        %v1898 = vpow.pop %v1897
        %v1899 = vmul.f32 %v1869, 1.442695
        %v1900 = vpow.pop %v1899
        %v1901 = vmul.f32 %v1870, 1.442695
        %v1902 = vpow.pop %v1901
        %1903 = vst.msk [vmem:[#allocation3] sm:$0xff] %vm957, %v1872
        %1904 = vst.msk [vmem:[#allocation3 + $0x8] sm:$0xff] %vm957, %v1874
        %1905 = vst.msk [vmem:[#allocation3 + $0x10] sm:$0xff] %vm957, %v1876
        %1906 = vst.msk [vmem:[#allocation3 + $0x18] sm:$0xff] %vm957, %v1878
        %1907 = vst.msk [vmem:[#allocation3 + $0x20] sm:$0xff] %vm957, %v1880
        %1908 = vst.msk [vmem:[#allocation3 + $0x28] sm:$0xff] %vm957, %v1882
        %1909 = vst.msk [vmem:[#allocation3 + $0x30] sm:$0xff] %vm957, %v1884
        %1910 = vst.msk [vmem:[#allocation3 + $0x38] sm:$0xff] %vm957, %v1886
        %1911 = vst.msk [vmem:[#allocation3 + $0x40] sm:$0xff] %vm957, %v1888
        %1912 = vst.msk [vmem:[#allocation3 + $0x48] sm:$0xff] %vm957, %v1890
        %1913 = vst.msk [vmem:[#allocation3 + $0x50] sm:$0xff] %vm957, %v1892
        %1914 = vst.msk [vmem:[#allocation3 + $0x58] sm:$0xff] %vm957, %v1894
        %1915 = vst.msk [vmem:[#allocation3 + $0x60] sm:$0xff] %vm957, %v1896
        %1916 = vst.msk [vmem:[#allocation3 + $0x68] sm:$0xff] %vm957, %v1898
        %1917 = vst.msk [vmem:[#allocation3 + $0x70] sm:$0xff] %vm957, %v1900
        %1918 = vst.msk [vmem:[#allocation3 + $0x78] sm:$0xff] %vm957, %v1902
        %s1919 = scalar_lea.vmem [#allocation6], 8
        %v1920 = vld [vmem:[%s1919] sm:$0xff]
        %v1922 = vcombine.high %v1920, %v1920
        %v1924 = vunpack.c.l.s4 1966171168
        %v1925 = vunpack.c.0.s8 %v1924
        %v1926 = vlaneseq
        %v1927 = vshrl.u32 %v1926, 7
        %v1928 = vsub.s32 %v1925, %v1927
        %v1929 = vrot.slane %v1920, %v1928
        %v1931 = vunpack.c.l.s4 1966171168
        %v1932 = vunpack.c.0.s8 %v1931
        %v1933 = vlaneseq
        %v1934 = vshrl.u32 %v1933, 7
        %v1935 = vsub.s32 %v1932, %v1934
        %v1936 = vrot.slane %v1922, %v1935
        %v1937 = vcombine.high %v1929, %v1929
        %v1938 = vcombine.high %v1936, %v1936
        %v1940 = vunpack.c.l.s4 1966171168
        %v1941 = vunpack.c.0.s8 %v1940
        %v1942 = vlaneseq
        %v1943 = vshrl.u32 %v1942, 7
        %v1944 = vsub.s32 %v1941, %v1943
        %v1945 = vrot.slane %v1929, %v1944
        %v1947 = vunpack.c.l.s4 1966171168
        %v1948 = vunpack.c.0.s8 %v1947
        %v1949 = vlaneseq
        %v1950 = vshrl.u32 %v1949, 7
        %v1951 = vsub.s32 %v1948, %v1950
        %v1952 = vrot.slane %v1936, %v1951
        %v1954 = vunpack.c.l.s4 1966171168
        %v1955 = vunpack.c.0.s8 %v1954
        %v1956 = vlaneseq
        %v1957 = vshrl.u32 %v1956, 7
        %v1958 = vsub.s32 %v1955, %v1957
        %v1959 = vrot.slane %v1937, %v1958
        %v1961 = vunpack.c.l.s4 1966171168
        %v1962 = vunpack.c.0.s8 %v1961
        %v1963 = vlaneseq
        %v1964 = vshrl.u32 %v1963, 7
        %v1965 = vsub.s32 %v1962, %v1964
        %v1966 = vrot.slane %v1938, %v1965
        %v1967 = vcombine.high %v1945, %v1945
        %v1968 = vcombine.high %v1952, %v1952
        %v1969 = vcombine.high %v1959, %v1959
        %v1970 = vcombine.high %v1966, %v1966
        %s1971 = scalar_lea.vmem [#allocation7], 8
        %v1972 = vld [vmem:[%s1971] sm:$0xff]
        %v1973 = vlaneseq
        %v1974 = vshrl.u32 %v1973, 7
        %v1975 = vsub.s32 0, %v1974
        %v1976 = vrot.slane %v1972, %v1975
        %1978 = vbcast.lane.b32.xlu0 %v1976, 256
        %v1979 = vpop.permute.xlu0 %1978
        %s1981 = sor.u32 256, 8
        %1982 = vbcast.lane.b32.xlu0 %v1976, %s1981
        %v1983 = vpop.permute.xlu0 %1982
        %v1984 = vlaneseq
        %v1985 = vshrl.u32 %v1984, 7
        %v1986 = vsub.s32 1, %v1985
        %v1987 = vrot.slane %v1972, %v1986
        %1989 = vbcast.lane.b32.xlu0 %v1987, 256
        %v1990 = vpop.permute.xlu0 %1989
        %s1992 = sor.u32 256, 8
        %1993 = vbcast.lane.b32.xlu0 %v1987, %s1992
        %v1994 = vpop.permute.xlu0 %1993
        %v1995 = vlaneseq
        %v1996 = vshrl.u32 %v1995, 7
        %v1997 = vsub.s32 2, %v1996
        %v1998 = vrot.slane %v1972, %v1997
        %2000 = vbcast.lane.b32.xlu0 %v1998, 256
        %v2001 = vpop.permute.xlu0 %2000
        %s2003 = sor.u32 256, 8
        %2004 = vbcast.lane.b32.xlu0 %v1998, %s2003
        %v2005 = vpop.permute.xlu0 %2004
        %v2006 = vlaneseq
        %v2007 = vshrl.u32 %v2006, 7
        %v2008 = vsub.s32 3, %v2007
        %v2009 = vrot.slane %v1972, %v2008
        %2011 = vbcast.lane.b32.xlu0 %v2009, 256
        %v2012 = vpop.permute.xlu0 %2011
        %s2014 = sor.u32 256, 8
        %2015 = vbcast.lane.b32.xlu0 %v2009, %s2014
        %v2016 = vpop.permute.xlu0 %2015
        %v2017 = vlaneseq
        %v2018 = vshrl.u32 %v2017, 7
        %v2019 = vsub.s32 4, %v2018
        %v2020 = vrot.slane %v1972, %v2019
        %2022 = vbcast.lane.b32.xlu0 %v2020, 256
        %v2023 = vpop.permute.xlu0 %2022
        %s2025 = sor.u32 256, 8
        %2026 = vbcast.lane.b32.xlu0 %v2020, %s2025
        %v2027 = vpop.permute.xlu0 %2026
        %v2028 = vlaneseq
        %v2029 = vshrl.u32 %v2028, 7
        %v2030 = vsub.s32 5, %v2029
        %v2031 = vrot.slane %v1972, %v2030
        %2033 = vbcast.lane.b32.xlu0 %v2031, 256
        %v2034 = vpop.permute.xlu0 %2033
        %s2036 = sor.u32 256, 8
        %2037 = vbcast.lane.b32.xlu0 %v2031, %s2036
        %v2038 = vpop.permute.xlu0 %2037
        %v2039 = vlaneseq
        %v2040 = vshrl.u32 %v2039, 7
        %v2041 = vsub.s32 6, %v2040
        %v2042 = vrot.slane %v1972, %v2041
        %2044 = vbcast.lane.b32.xlu0 %v2042, 256
        %v2045 = vpop.permute.xlu0 %2044
        %s2047 = sor.u32 256, 8
        %2048 = vbcast.lane.b32.xlu0 %v2042, %s2047
        %v2049 = vpop.permute.xlu0 %2048
        %v2050 = vlaneseq
        %v2051 = vshrl.u32 %v2050, 7
        %v2052 = vsub.s32 7, %v2051
        %v2053 = vrot.slane %v1972, %v2052
        %2055 = vbcast.lane.b32.xlu0 %v2053, 256
        %v2056 = vpop.permute.xlu0 %2055
        %s2058 = sor.u32 256, 8
        %2059 = vbcast.lane.b32.xlu0 %v2053, %s2058
        %v2060 = vpop.permute.xlu0 %2059
        %v2061 = vlaneseq
        %v2062 = vshrl.u32 %v2061, 7
        %v2063 = vsub.s32 0, %v2062
        %v2064 = vrot.slane %v1945, %v2063
        %v2065 = vlaneseq
        %v2066 = vshrl.u32 %v2065, 7
        %v2067 = vsub.s32 0, %v2066
        %v2068 = vrot.slane %v1959, %v2067
        %v2069 = vlaneseq
        %v2070 = vshrl.u32 %v2069, 7
        %v2071 = vsub.s32 0, %v2070
        %v2072 = vrot.slane %v1967, %v2071
        %v2073 = vlaneseq
        %v2074 = vshrl.u32 %v2073, 7
        %v2075 = vsub.s32 0, %v2074
        %v2076 = vrot.slane %v1969, %v2075
        %v2077 = vlaneseq
        %v2078 = vshrl.u32 %v2077, 7
        %v2079 = vsub.s32 0, %v2078
        %v2080 = vrot.slane %v1952, %v2079
        %v2081 = vlaneseq
        %v2082 = vshrl.u32 %v2081, 7
        %v2083 = vsub.s32 0, %v2082
        %v2084 = vrot.slane %v1966, %v2083
        %v2085 = vlaneseq
        %v2086 = vshrl.u32 %v2085, 7
        %v2087 = vsub.s32 0, %v2086
        %v2088 = vrot.slane %v1968, %v2087
        %v2089 = vlaneseq
        %v2090 = vshrl.u32 %v2089, 7
        %v2091 = vsub.s32 0, %v2090
        %v2092 = vrot.slane %v1970, %v2091
        %v2101 = vmul.f32 %v2064, %v1979
        %v2102 = vmul.f32 %v2064, %v1983
        %v2103 = vmul.f32 %v2068, %v1990
        %v2104 = vmul.f32 %v2068, %v1994
        %v2105 = vmul.f32 %v2072, %v2001
        %v2106 = vmul.f32 %v2072, %v2005
        %v2107 = vmul.f32 %v2076, %v2012
        %v2108 = vmul.f32 %v2076, %v2016
        %v2109 = vmul.f32 %v2080, %v2023
        %v2110 = vmul.f32 %v2080, %v2027
        %v2111 = vmul.f32 %v2084, %v2034
        %v2112 = vmul.f32 %v2084, %v2038
        %v2113 = vmul.f32 %v2088, %v2045
        %v2114 = vmul.f32 %v2088, %v2049
        %v2115 = vmul.f32 %v2092, %v2056
        %v2116 = vmul.f32 %v2092, %v2060
        %2117 = vst.msk [vmem:[#allocation4] sm:$0xff] %vm957, %v2101
        %2118 = vst.msk [vmem:[#allocation4 + $0x8] sm:$0xff] %vm957, %v2102
        %2119 = vst.msk [vmem:[#allocation4 + $0x10] sm:$0xff] %vm957, %v2103
        %2120 = vst.msk [vmem:[#allocation4 + $0x18] sm:$0xff] %vm957, %v2104
        %2121 = vst.msk [vmem:[#allocation4 + $0x20] sm:$0xff] %vm957, %v2105
        %2122 = vst.msk [vmem:[#allocation4 + $0x28] sm:$0xff] %vm957, %v2106
        %2123 = vst.msk [vmem:[#allocation4 + $0x30] sm:$0xff] %vm957, %v2107
        %2124 = vst.msk [vmem:[#allocation4 + $0x38] sm:$0xff] %vm957, %v2108
        %2125 = vst.msk [vmem:[#allocation4 + $0x40] sm:$0xff] %vm957, %v2109
        %2126 = vst.msk [vmem:[#allocation4 + $0x48] sm:$0xff] %vm957, %v2110
        %2127 = vst.msk [vmem:[#allocation4 + $0x50] sm:$0xff] %vm957, %v2111
        %2128 = vst.msk [vmem:[#allocation4 + $0x58] sm:$0xff] %vm957, %v2112
        %2129 = vst.msk [vmem:[#allocation4 + $0x60] sm:$0xff] %vm957, %v2113
        %2130 = vst.msk [vmem:[#allocation4 + $0x68] sm:$0xff] %vm957, %v2114
        %2131 = vst.msk [vmem:[#allocation4 + $0x70] sm:$0xff] %vm957, %v2115
        %2132 = vst.msk [vmem:[#allocation4 + $0x78] sm:$0xff] %vm957, %v2116
        %v2133 = vld [vmem:[%s1465] sm:$0xff]
        %v2134 = vld [vmem:[%s1465 + $0x8] sm:$0xff]
        %v2135 = vmul.f32 %v2133, 0.0
        %v2136 = vmul.f32 %v2134, 0.0
        %v2137 = vld [vmem:[%s1470] sm:$0xff]
        %v2138 = vld [vmem:[%s1470 + $0x8] sm:$0xff]
        %v2139 = vadd.f32 %v2135, %v2137
        %v2140 = vadd.f32 %v2136, %v2138
        %v2141 = vld [vmem:[%s1477] sm:$0xff]
        %v2142 = vld [vmem:[%s1477 + $0x8] sm:$0xff]
        %v2143 = vmul.f32 %v2141, %v2139
        %v2144 = vmul.f32 %v2142, %v2140
        %v2145 = vld [vmem:[%s1482] sm:$0xff]
        %v2146 = vld [vmem:[%s1482 + $0x8] sm:$0xff]
        %v2147 = vadd.f32 %v2143, %v2145
        %v2148 = vadd.f32 %v2144, %v2146
        %v2149 = vld [vmem:[%s1489] sm:$0xff]
        %v2150 = vld [vmem:[%s1489 + $0x8] sm:$0xff]
        %v2151 = vmul.f32 %v2149, %v2147
        %v2152 = vmul.f32 %v2150, %v2148
        %v2153 = vld [vmem:[%s1494] sm:$0xff]
        %v2154 = vld [vmem:[%s1494 + $0x8] sm:$0xff]
        %v2155 = vadd.f32 %v2151, %v2153
        %v2156 = vadd.f32 %v2152, %v2154
        %v2157 = vld [vmem:[%s1501] sm:$0xff]
        %v2158 = vld [vmem:[%s1501 + $0x8] sm:$0xff]
        %v2159 = vmul.f32 %v2157, %v2155
        %v2160 = vmul.f32 %v2158, %v2156
        %v2161 = vld [vmem:[%s1506] sm:$0xff]
        %v2162 = vld [vmem:[%s1506 + $0x8] sm:$0xff]
        %v2163 = vadd.f32 %v2159, %v2161
        %v2164 = vadd.f32 %v2160, %v2162
        %v2165 = vld [vmem:[%s1513] sm:$0xff]
        %v2166 = vld [vmem:[%s1513 + $0x8] sm:$0xff]
        %v2167 = vmul.f32 %v2165, %v2163
        %v2168 = vmul.f32 %v2166, %v2164
        %v2169 = vld [vmem:[%s1518] sm:$0xff]
        %v2170 = vld [vmem:[%s1518 + $0x8] sm:$0xff]
        %v2171 = vadd.f32 %v2167, %v2169
        %v2172 = vadd.f32 %v2168, %v2170
        %v2173 = vld [vmem:[%s1525] sm:$0xff]
        %v2174 = vld [vmem:[%s1525 + $0x8] sm:$0xff]
        %v2175 = vmul.f32 %v2173, %v2171
        %v2176 = vmul.f32 %v2174, %v2172
        %v2177 = vld [vmem:[%s1530] sm:$0xff]
        %v2178 = vld [vmem:[%s1530 + $0x8] sm:$0xff]
        %v2179 = vadd.f32 %v2175, %v2177
        %v2180 = vadd.f32 %v2176, %v2178
        %v2181 = vld [vmem:[%s1537] sm:$0xff]
        %v2182 = vld [vmem:[%s1537 + $0x8] sm:$0xff]
        %v2183 = vmul.f32 %v2181, %v2179
        %v2184 = vmul.f32 %v2182, %v2180
        %v2185 = vld [vmem:[%s1542] sm:$0xff]
        %v2186 = vld [vmem:[%s1542 + $0x8] sm:$0xff]
        %v2187 = vadd.f32 %v2183, %v2185
        %v2188 = vadd.f32 %v2184, %v2186
        %v2189 = vld [vmem:[%s1549] sm:$0xff]
        %v2190 = vld [vmem:[%s1549 + $0x8] sm:$0xff]
        %v2191 = vmul.f32 %v2189, %v2187
        %v2192 = vmul.f32 %v2190, %v2188
        %v2193 = vld [vmem:[%s1554] sm:$0xff]
        %v2194 = vld [vmem:[%s1554 + $0x8] sm:$0xff]
        %v2195 = vadd.f32 %v2191, %v2193
        %v2196 = vadd.f32 %v2192, %v2194
        %s2197 = sadd.s32 8, 0
        %s2198 = scalar_lea.vmem [#allocation8], %s2197
        %v2199 = vld [vmem:[%s2198] sm:$0xff]
        %v2200 = vlaneseq
        %v2201 = vshrl.u32 %v2200, 7
        %v2202 = vsub.s32 0, %v2201
        %v2203 = vrot.slane %v2199, %v2202
        %2205 = vbcast.lane.b32.xlu0 %v2203, 256
        %v2206 = vpop.permute.xlu0 %2205
        %s2208 = sor.u32 256, 8
        %2209 = vbcast.lane.b32.xlu0 %v2203, %s2208
        %v2210 = vpop.permute.xlu0 %2209
        %v2211 = vlaneseq
        %v2212 = vshrl.u32 %v2211, 7
        %v2213 = vsub.s32 1, %v2212
        %v2214 = vrot.slane %v2199, %v2213
        %2216 = vbcast.lane.b32.xlu0 %v2214, 256
        %v2217 = vpop.permute.xlu0 %2216
        %s2219 = sor.u32 256, 8
        %2220 = vbcast.lane.b32.xlu0 %v2214, %s2219
        %v2221 = vpop.permute.xlu0 %2220
        %v2222 = vlaneseq
        %v2223 = vshrl.u32 %v2222, 7
        %v2224 = vsub.s32 2, %v2223
        %v2225 = vrot.slane %v2199, %v2224
        %2227 = vbcast.lane.b32.xlu0 %v2225, 256
        %v2228 = vpop.permute.xlu0 %2227
        %s2230 = sor.u32 256, 8
        %2231 = vbcast.lane.b32.xlu0 %v2225, %s2230
        %v2232 = vpop.permute.xlu0 %2231
        %v2233 = vlaneseq
        %v2234 = vshrl.u32 %v2233, 7
        %v2235 = vsub.s32 3, %v2234
        %v2236 = vrot.slane %v2199, %v2235
        %2238 = vbcast.lane.b32.xlu0 %v2236, 256
        %v2239 = vpop.permute.xlu0 %2238
        %s2241 = sor.u32 256, 8
        %2242 = vbcast.lane.b32.xlu0 %v2236, %s2241
        %v2243 = vpop.permute.xlu0 %2242
        %v2244 = vlaneseq
        %v2245 = vshrl.u32 %v2244, 7
        %v2246 = vsub.s32 4, %v2245
        %v2247 = vrot.slane %v2199, %v2246
        %2249 = vbcast.lane.b32.xlu0 %v2247, 256
        %v2250 = vpop.permute.xlu0 %2249
        %s2252 = sor.u32 256, 8
        %2253 = vbcast.lane.b32.xlu0 %v2247, %s2252
        %v2254 = vpop.permute.xlu0 %2253
        %v2255 = vlaneseq
        %v2256 = vshrl.u32 %v2255, 7
        %v2257 = vsub.s32 5, %v2256
        %v2258 = vrot.slane %v2199, %v2257
        %2260 = vbcast.lane.b32.xlu0 %v2258, 256
        %v2261 = vpop.permute.xlu0 %2260
        %s2263 = sor.u32 256, 8
        %2264 = vbcast.lane.b32.xlu0 %v2258, %s2263
        %v2265 = vpop.permute.xlu0 %2264
        %v2266 = vlaneseq
        %v2267 = vshrl.u32 %v2266, 7
        %v2268 = vsub.s32 6, %v2267
        %v2269 = vrot.slane %v2199, %v2268
        %2271 = vbcast.lane.b32.xlu0 %v2269, 256
        %v2272 = vpop.permute.xlu0 %2271
        %s2274 = sor.u32 256, 8
        %2275 = vbcast.lane.b32.xlu0 %v2269, %s2274
        %v2276 = vpop.permute.xlu0 %2275
        %v2277 = vlaneseq
        %v2278 = vshrl.u32 %v2277, 7
        %v2279 = vsub.s32 7, %v2278
        %v2280 = vrot.slane %v2199, %v2279
        %2282 = vbcast.lane.b32.xlu0 %v2280, 256
        %v2283 = vpop.permute.xlu0 %2282
        %s2285 = sor.u32 256, 8
        %2286 = vbcast.lane.b32.xlu0 %v2280, %s2285
        %v2287 = vpop.permute.xlu0 %2286
        %v2288 = vmul.f32 %v2139, %v2206
        %v2289 = vmul.f32 %v2140, %v2210
        %v2290 = vmul.f32 %v2147, %v2217
        %v2291 = vmul.f32 %v2148, %v2221
        %v2292 = vmul.f32 %v2155, %v2228
        %v2293 = vmul.f32 %v2156, %v2232
        %v2294 = vmul.f32 %v2163, %v2239
        %v2295 = vmul.f32 %v2164, %v2243
        %v2296 = vmul.f32 %v2171, %v2250
        %v2297 = vmul.f32 %v2172, %v2254
        %v2298 = vmul.f32 %v2179, %v2261
        %v2299 = vmul.f32 %v2180, %v2265
        %v2300 = vmul.f32 %v2187, %v2272
        %v2301 = vmul.f32 %v2188, %v2276
        %v2302 = vmul.f32 %v2195, %v2283
        %v2303 = vmul.f32 %v2196, %v2287
        %v2304 = vsel %vm957, %v2288, 0.0
        %v2305 = vsel %vm957, %v2289, 0.0
        %v2306 = vadd.f32 %v2304, %v2305
        %v2307 = vrot.slane %v2306, 4
        %v2308 = vadd.f32 %v2306, %v2307
        %v2309 = vrot.slane %v2308, 2
        %v2310 = vadd.f32 %v2308, %v2309
        %v2311 = vrot.slane %v2310, 1
        %v2312 = vadd.f32 %v2310, %v2311
        %v2313 = vsel %vm957, %v2290, 0.0
        %v2314 = vsel %vm957, %v2291, 0.0
        %v2315 = vadd.f32 %v2313, %v2314
        %v2316 = vrot.slane %v2315, 4
        %v2317 = vadd.f32 %v2315, %v2316
        %v2318 = vrot.slane %v2317, 2
        %v2319 = vadd.f32 %v2317, %v2318
        %v2320 = vrot.slane %v2319, 1
        %v2321 = vadd.f32 %v2319, %v2320
        %v2322 = vsel %vm957, %v2292, 0.0
        %v2323 = vsel %vm957, %v2293, 0.0
        %v2324 = vadd.f32 %v2322, %v2323
        %v2325 = vrot.slane %v2324, 4
        %v2326 = vadd.f32 %v2324, %v2325
        %v2327 = vrot.slane %v2326, 2
        %v2328 = vadd.f32 %v2326, %v2327
        %v2329 = vrot.slane %v2328, 1
        %v2330 = vadd.f32 %v2328, %v2329
        %v2331 = vsel %vm957, %v2294, 0.0
        %v2332 = vsel %vm957, %v2295, 0.0
        %v2333 = vadd.f32 %v2331, %v2332
        %v2334 = vrot.slane %v2333, 4
        %v2335 = vadd.f32 %v2333, %v2334
        %v2336 = vrot.slane %v2335, 2
        %v2337 = vadd.f32 %v2335, %v2336
        %v2338 = vrot.slane %v2337, 1
        %v2339 = vadd.f32 %v2337, %v2338
        %v2340 = vsel %vm957, %v2296, 0.0
        %v2341 = vsel %vm957, %v2297, 0.0
        %v2342 = vadd.f32 %v2340, %v2341
        %v2343 = vrot.slane %v2342, 4
        %v2344 = vadd.f32 %v2342, %v2343
        %v2345 = vrot.slane %v2344, 2
        %v2346 = vadd.f32 %v2344, %v2345
        %v2347 = vrot.slane %v2346, 1
        %v2348 = vadd.f32 %v2346, %v2347
        %v2349 = vsel %vm957, %v2298, 0.0
        %v2350 = vsel %vm957, %v2299, 0.0
        %v2351 = vadd.f32 %v2349, %v2350
        %v2352 = vrot.slane %v2351, 4
        %v2353 = vadd.f32 %v2351, %v2352
        %v2354 = vrot.slane %v2353, 2
        %v2355 = vadd.f32 %v2353, %v2354
        %v2356 = vrot.slane %v2355, 1
        %v2357 = vadd.f32 %v2355, %v2356
        %v2358 = vsel %vm957, %v2300, 0.0
        %v2359 = vsel %vm957, %v2301, 0.0
        %v2360 = vadd.f32 %v2358, %v2359
        %v2361 = vrot.slane %v2360, 4
        %v2362 = vadd.f32 %v2360, %v2361
        %v2363 = vrot.slane %v2362, 2
        %v2364 = vadd.f32 %v2362, %v2363
        %v2365 = vrot.slane %v2364, 1
        %v2366 = vadd.f32 %v2364, %v2365
        %v2367 = vsel %vm957, %v2302, 0.0
        %v2368 = vsel %vm957, %v2303, 0.0
        %v2369 = vadd.f32 %v2367, %v2368
        %v2370 = vrot.slane %v2369, 4
        %v2371 = vadd.f32 %v2369, %v2370
        %v2372 = vrot.slane %v2371, 2
        %v2373 = vadd.f32 %v2371, %v2372
        %v2374 = vrot.slane %v2373, 1
        %v2375 = vadd.f32 %v2373, %v2374
        %v2384 = vsel %vm1746, %v2321, %v2312
        %v2385 = vsel %vm1748, %v2330, %v2384
        %v2386 = vsel %vm1750, %v2339, %v2385
        %v2387 = vsel %vm1752, %v2348, %v2386
        %v2388 = vsel %vm1754, %v2357, %v2387
        %v2389 = vsel %vm1756, %v2366, %v2388
        %v2390 = vsel %vm1758, %v2375, %v2389
        %s2392 = scalar_lea.vmem [#allocation9], %s2197
        %2393 = vst.msk [vmem:[%s2392] sm:$0xff] %vm957, %v2390
        %v2394 = vld [vmem:[#allocation9] sm:$0xff]
        %v2395 = vld [vmem:[#allocation9 + $0x8] sm:$0xff]
        %v2396 = vld [vmem:[%s629] sm:$0x1]
        %v2398 = vlaneseq
        %v2399 = vshrl.u32 %v2398, 7
        %v2400 = vsub.s32 0, %v2399
        %v2401 = vrot.slane %v2396, %v2400
        %v2403 = vmul.f32 %v2401, %v874
        %v2404 = vmul.f32 %v2401, %v875
        %v2405 = vadd.f32 %v2394, %v2403
        %v2406 = vadd.f32 %v2395, %v2404
        %v2407 = vxor.u32 %v759, 2147483648
        %v2408 = vxor.u32 %v763, 2147483648
        %v2409 = vmul.f32 %v2407, 1.442695
        %v2410 = vpow.pop %v2409
        %v2411 = vmul.f32 %v2408, 1.442695
        %v2412 = vpow.pop %v2411
        %v2413 = vadd.f32 %v2410, 1.0
        %v2414 = vadd.f32 %v2412, 1.0
        %v2415 = vrcp.pop %v2413
        %v2416 = vmul.f32 1.0, %v2415
        %v2417 = vrcp.pop %v2414
        %v2418 = vmul.f32 1.0, %v2417
        %v2419 = vmul.f32 %v759, %v2416
        %v2420 = vmul.f32 %v763, %v2418
        %v2421 = vmul.f32 %v2405, %v2419
        %v2422 = vmul.f32 %v2406, %v2420
        %v2423 = vpack.c.bf16 %v2422, %v2421
        %v2424 = vld [vmem:[%s634] sm:$0xf]
        %v2425 = vld [vmem:[%s634 + $0x4] sm:$0xf]
        %v2426 = vld [vmem:[%s634 + $0x8] sm:$0xf]
        %v2427 = vld [vmem:[%s634 + $0xc] sm:$0xf]
        %v2428 = vld [vmem:[%s634 + $0x10] sm:$0xf]
        %v2429 = vld [vmem:[%s634 + $0x14] sm:$0xf]
        %v2430 = vld [vmem:[%s634 + $0x18] sm:$0xf]
        %v2431 = vld [vmem:[%s634 + $0x1c] sm:$0xf]
        %v2440 = vunpack.c.l.b16 %v2424
        %v2441 = vunpack.c.l.b16 %v2425
        %v2442 = vunpack.c.l.b16 %v2426
        %v2443 = vunpack.c.l.b16 %v2427
        %v2444 = vunpack.c.l.b16 %v2428
        %v2445 = vunpack.c.l.b16 %v2429
        %v2446 = vunpack.c.l.b16 %v2430
        %v2447 = vunpack.c.l.b16 %v2431
        %v2448 = vpack.c.b16 %v2441, %v2440
        %v2449 = vpack.c.b16 %v2443, %v2442
        %v2450 = vpack.c.b16 %v2445, %v2444
        %v2451 = vpack.c.b16 %v2447, %v2446
        %v2457 = vsel %vm957, %v2423, 0
        %2459 = vmatprep.subr.bf16.mxu0 0
        %2460 = vmatpush1.bf16.msra.mxu0 %v2448
        %2461 = vmatprep.subr.bf16.mxu0 0
        %2462 = vmatpush1.bf16.msra.mxu0 %v2449
        %2463 = vmatprep.subr.bf16.mxu0 0
        %2464 = vmatpush1.bf16.msra.mxu0 %v2450
        %2465 = vmatprep.subr.bf16.mxu0 0
        %2466 = vmatpush1.bf16.msra.mxu0 %v2451
        %2467 = vmatprep.subr.bf16.mxu0 0
        %2468 = vmatpush1.bf16.msra.mxu0 0
        %2469 = vmatprep.subr.bf16.mxu0 0
        %2470 = vmatpush1.bf16.msra.mxu0 0
        %2471 = vmatprep.subr.bf16.mxu0 0
        %2472 = vmatpush1.bf16.msra.mxu0 0
        %2473 = vmatprep.subr.bf16.mxu0 0
        %2474 = vmatpush1.bf16.msra.mxu0 0
        %2475 = vmatprep.subr.bf16.mxu0 0
        %2476 = vmatpush1.bf16.msra.mxu0 0
        %2477 = vmatprep.subr.bf16.mxu0 0
        %2478 = vmatpush1.bf16.msra.mxu0 0
        %2479 = vmatprep.subr.bf16.mxu0 0
        %2480 = vmatpush1.bf16.msra.mxu0 0
        %2481 = vmatprep.subr.bf16.mxu0 0
        %2482 = vmatpush1.bf16.msra.mxu0 0
        %2483 = vmatprep.subr.bf16.mxu0 0
        %2484 = vmatpush1.bf16.msra.mxu0 0
        %2485 = vmatprep.subr.bf16.mxu0 0
        %2486 = vmatpush1.bf16.msra.mxu0 0
        %2487 = vmatprep.subr.bf16.mxu0 0
        %2488 = vmatpush1.bf16.msra.mxu0 0
        %2489 = vmatprep.subr.bf16.mxu0 0
        %2490 = vmatpush1.bf16.msra.mxu0 0
        %2491 = vmatprep.mubr.bf16.mxu0 0
        %2492 = vmatmul.mubr.bf16.gmra.mrb[0].mxu0 %v2457
        %v2493 = vpop.f32.mrb[0].mxu0
        %v2494 = vadd.f32 0.0, %v2493
        %v2495 = vpop.f32.mrb[0].mxu0
        %v2496 = vpop.f32.mrb[0].mxu0
        %v2497 = vadd.f32 0.0, %v2496
        %v2498 = vpop.f32.mrb[0].mxu0
        %2499 = vdwg.mxu0
        %v2500 = vadd.f32 %v646, %v2494
        %v2501 = vadd.f32 %v647, %v2497
        %2502 = vst.msk [vmem:[#allocation2] sm:$0xff] %vm650, %v2500
        %2503 = vst.msk [vmem:[#allocation2 + $0x8] sm:$0xff] %vm650, %v2501
        %p2504 = scmp.eq.s32.totalorder %s34, 1
        // Predicated region
        $region85: #{mixer_model_forward.1} parent=71 // pred_check
          %p2505 = pneg %p2504
        $region86: #{mixer_model_forward.1} parent=71 // pred_check_branch
          %2507 = sbr.rel (%p2505) target = $region88
        $region87: #{mixer_model_forward.1} parent=71 // pred_region
          %v2508 = vld [vmem:[%s11] sm:$0x1]
          %v2509 = vld [vmem:[%s12] sm:$0x1]
          %v2510 = vsel %vm650, %v2500, 0.0
          %2511 = vadd.xlane.f32.xlu0 %v2510
          %v2512 = vpop.xlane.xlu0 %2511
          %v2513 = vsel %vm650, %v2501, 0.0
          %2514 = vadd.xlane.f32.xlu0 %v2513
          %v2515 = vpop.xlane.xlu0 %2514
          %v2516 = vmul.f32 %v2512, %v657
          %v2517 = vmul.f32 %v2515, %v657
          %v2518 = vsub.f32 %v2500, %v2516
          %v2519 = vsub.f32 %v2501, %v2517
          %v2520 = vmul.f32 %v2518, %v2518
          %v2521 = vmul.f32 %v2519, %v2519
          %v2522 = vsel %vm650, %v2520, 0.0
          %2523 = vadd.xlane.f32.xlu0 %v2522
          %v2524 = vpop.xlane.xlu0 %2523
          %v2525 = vsel %vm650, %v2521, 0.0
          %2526 = vadd.xlane.f32.xlu0 %v2525
          %v2527 = vpop.xlane.xlu0 %2526
          %v2528 = vmul.f32 %v2524, %v657
          %v2529 = vmul.f32 %v2527, %v657
          %v2530 = vadd.f32 %v2528, 1e-05
          %v2531 = vadd.f32 %v2529, 1e-05
          %v2532 = vrsqrt.pop %v2530
          %v2533 = vrsqrt.pop %v2531
          %v2534 = vmul.f32 %v2518, %v2532
          %v2535 = vmul.f32 %v2519, %v2533
          %v2537 = vlaneseq
          %v2538 = vshrl.u32 %v2537, 7
          %v2539 = vsub.s32 0, %v2538
          %v2540 = vrot.slane %v2508, %v2539
          %v2542 = vmul.f32 %v2534, %v2540
          %v2543 = vmul.f32 %v2535, %v2540
          %v2545 = vlaneseq
          %v2546 = vshrl.u32 %v2545, 7
          %v2547 = vsub.s32 0, %v2546
          %v2548 = vrot.slane %v2509, %v2547
          %v2550 = vadd.f32 %v2542, %v2548
          %v2551 = vadd.f32 %v2543, %v2548
          %2552 = vst.msk [vmem:[#allocation15] sm:$0xff] %vm650, %v2550
          %2553 = vst.msk [vmem:[#allocation15 + $0x8] sm:$0xff] %vm650, %v2551
        $region88: #{mixer_model_forward.1} parent=71 // pred_fallthru
          _
        // Predicated region
        $region89: #{mixer_model_forward.1} parent=71 // pred_check
          %p2554 = pneg %p387
        $region90: #{mixer_model_forward.1} parent=71 // pred_check_branch
          %2556 = sbr.rel (%p2554) target = $region92
        $region91: #{mixer_model_forward.1} parent=71 // pred_region
          %s2557 = smul.u32 2, %s33
          %s2559 = ssub.s32 256, 256
          %2560 = vsyncadd [#allocation12], %s2559
          %s2561 = smul.addr %s2557, 128
          %s2562 = scalar_lea.hbm %s13, %s2561
          %s2563 = sshll.u32 [#allocation15], 4
          %s2564 = int_to_ptr.vmem [resolvable:$true] %s2563
          %2569 = dma.vmem_to_hbm [thread:$0]  %s2564, 256, %s2562, [#allocation12], 128, 128, 8
        $region92: #{mixer_model_forward.1} parent=71 // pred_fallthru
          _
        // Predicated region
        $region93: #{mixer_model_forward.1} parent=71 // pred_check
          %p2570 = pneg %p387
        $region94: #{mixer_model_forward.1} parent=71 // pred_check_branch
          %2572 = sbr.rel (%p2570) target = $region96
        $region95: #{mixer_model_forward.1} parent=71 // pred_region
          %2573 = dma.done [#allocation12], 256
        $region96: #{mixer_model_forward.1} parent=71 // pred_fallthru
          _
      $region72: #{mixer_model_forward.1} parent=5 // pred_fallthru
        _
      %p2574 = scmp.le.s32.totalorder 2, %s24
      // Predicated region
      $region97: #{mixer_model_forward.1} parent=5 // pred_check
        %p2575 = pneg %p2574
      $region98: #{mixer_model_forward.1} parent=5 // pred_check_branch
        %2577 = sbr.rel (%p2575) target = $region100
      $region99: #{mixer_model_forward.1} parent=5 // pred_region
        %s2578 = ssub.s32 %s24, 2
      $region100: #{mixer_model_forward.1} parent=5 // pred_fallthru
        _
    $region6: #{mixer_model_forward.1} parent=1 // loop_footer
      %s28 = sadd.s32 1, %s24
    $region7: #{mixer_model_forward.1} parent=1 // loop_footer_branch
      %23 = sbr.rel target = $region3
    $region8: #{mixer_model_forward.1} parent=1 // loop_exit
      _
    %2579 = vsyncpa [#allocation11], 1
    %s2580 = scalar_lea.sflag [#allocation11], 1
    %2581 = vsyncpa %s2580, 1
    %2582 = vsyncpa [#allocation14], 1
    %s2583 = scalar_lea.sflag [#allocation14], 1
    %2584 = vsyncpa %s2583, 1
    %2585 = vsyncpa [#allocation12], 1
    %s2586 = scalar_lea.sflag [#allocation12], 1
    %2587 = vsyncpa %s2586, 1

</llo_original>
